<compile_context>
chip_gen: v7x
topology: tpu7x:2x2x1
jax: 0.10.0
libtpu: 0.0.40
codegen_flags: <defaults>
</compile_context>

<pallas_src>
import jax
import jax.numpy as jnp
from jax.experimental import pallas as pl
from jax.experimental.pallas import tpu as pltpu

X_DIM = 150
H_DIM = 150
NUM_STEPS = 10
LANE = 128


def _lstm_seq_kernel(x_ref, wih_ref, whh_ref, b_ref, h_out_ref):
    # x_ref   : (T, X)      bf16  input sequence (B=1 squeezed)
    # wih_ref : (X, 4*Hp)   bf16  input->gates weights, gate-padded columns
    # whh_ref : (Hp, 4*Hp)  bf16  hidden->gates weights, gate-padded rows & cols
    # b_ref   : (1, 4*Hp)   f32   b_ih + b_hh, gate-padded
    # h_out_ref: (B, Hp)    f32   final hidden state (padded; wrapper slices to H)
    T = x_ref.shape[0]
    Hp = whh_ref.shape[0]

    # Prologue (off the serial chain): one MXU matmul for all time steps,
    # bias folded in.  bf16 operands, f32 accumulation.
    xw = (
        jnp.dot(x_ref[...], wih_ref[...], preferred_element_type=jnp.float32)
        + b_ref[...]
    )  # (T, 4*Hp) f32

    whh = whh_ref[...]  # (Hp, 4*Hp) bf16

    def sigmoid(z):
        # One EUP tanh per sigmoid instead of exp + divide.
        return 0.5 * jnp.tanh(0.5 * z) + 0.5

    def step(gates, c_prev, first):
        i_g = sigmoid(gates[:, 0 * Hp:1 * Hp])
        g_g = jnp.tanh(gates[:, 2 * Hp:3 * Hp])
        o_g = sigmoid(gates[:, 3 * Hp:4 * Hp])
        if first:
            # c_prev == 0: no forget-gate term needed.
            c = i_g * g_g
        else:
            f_g = sigmoid(gates[:, 1 * Hp:2 * Hp])
            c = f_g * c_prev + i_g * g_g
        h = o_g * jnp.tanh(c)
        return h, c

    # t = 0: h == 0, so the h @ W_hh matmul is skipped entirely.
    h, c = step(xw[0:1, :], None, True)

    # Serial recurrence, fully unrolled (T is static and small).
    for t in range(1, T):
        gates = xw[t:t + 1, :] + jnp.dot(
            h.astype(whh.dtype), whh, preferred_element_type=jnp.float32
        )  # (1, 4*Hp) f32
        h, c = step(gates, c, False)

    h_out_ref[...] = h


def lstm_sequence_pallas(x_seq, w_ih, w_hh, b_ih, b_hh):
    """Run NUM_STEPS LSTMCell steps over x_seq (T, B=1, X); return final h (B, H)."""
    T, B, X = x_seq.shape
    assert B == 1, "module semantics use batch size 1"
    H = w_hh.shape[1]
    Hp = ((H + LANE - 1) // LANE) * LANE  # 150 -> 256 (gate slices lane-aligned)

    # PyTorch LSTMCell layout: weight rows are [i; f; g; o], each H rows.
    wih_t = jnp.transpose(w_ih)              # (X, 4H)
    whh_t = jnp.transpose(w_hh)              # (H, 4H)
    bias = (b_ih + b_hh).reshape(1, 4 * H)   # (1, 4H)

    def pad_gate_cols(m):  # (rows, 4H) -> (rows, 4*Hp), per-gate zero padding
        rows = m.shape[0]
        m4 = m.reshape(rows, 4, H)
        m4 = jnp.pad(m4, ((0, 0), (0, 0), (0, Hp - H)))
        return m4.reshape(rows, 4 * Hp)

    wih_p = pad_gate_cols(wih_t).astype(jnp.bfloat16)                # (X, 4Hp)
    whh_p = jnp.pad(pad_gate_cols(whh_t),
                    ((0, Hp - H), (0, 0))).astype(jnp.bfloat16)       # (Hp, 4Hp)
    bias_p = pad_gate_cols(bias)                                      # (1, 4Hp) f32
    x2d = x_seq.reshape(T, X).astype(jnp.bfloat16)                    # (T, X)

    vmem = pltpu.MemorySpace.VMEM
    h_out_padded = pl.pallas_call(
        _lstm_seq_kernel,
        out_shape=jax.ShapeDtypeStruct((B, Hp), jnp.float32),
        in_specs=[
            pl.BlockSpec(memory_space=vmem),   # x (full array)
            pl.BlockSpec(memory_space=vmem),   # W_ih
            pl.BlockSpec(memory_space=vmem),   # W_hh
            pl.BlockSpec(memory_space=vmem),   # bias
        ],
        out_specs=pl.BlockSpec(memory_space=vmem),
    )(x2d, wih_p, whh_p, bias_p)

    return h_out_padded[:, :H]


def sequence_forward(x_index, inputx, params):
    """Equivalent of Sequence.forward(x): uses inputx[x-10 .. x-1]."""
    x_seq = inputx[x_index - NUM_STEPS:x_index]          # (10, 1, 150)
    return lstm_sequence_pallas(x_seq, *params)


def _reference_forward(x_index, inputx, params):
    """Pure-JAX f32 reference of the same LSTMCell recurrence (for validation)."""
    w_ih, w_hh, b_ih, b_hh = params
    H = w_hh.shape[1]
    h = jnp.zeros((1, H), jnp.float32)
    c = jnp.zeros((1, H), jnp.float32)
    for i in range(NUM_STEPS):
        x_t = inputx[x_index - (NUM_STEPS - i)]           # (1, 150)
        gates = x_t @ w_ih.T + b_ih + h @ w_hh.T + b_hh
        i_g = jax.nn.sigmoid(gates[:, 0 * H:1 * H])
        f_g = jax.nn.sigmoid(gates[:, 1 * H:2 * H])
        g_g = jnp.tanh(gates[:, 2 * H:3 * H])
        o_g = jax.nn.sigmoid(gates[:, 3 * H:4 * H])
        c = f_g * c + i_g * g_g
        h = o_g * jnp.tanh(c)
    return h


if __name__ == "__main__":
    key = jax.random.PRNGKey(0)
    k_in, k_wih, k_whh, k_bih, k_bhh = jax.random.split(key, 5)

    n_days = 16                                   # enough history for x=13
    inputx = jax.random.normal(k_in, (n_days, 1, X_DIM), jnp.float32)

    # Deterministic LSTMCell parameter init (PyTorch-style uniform(-1/sqrt(H), 1/sqrt(H))).
    bound = 1.0 / jnp.sqrt(jnp.float32(H_DIM))
    w_ih = jax.random.uniform(k_wih, (4 * H_DIM, X_DIM), jnp.float32, -bound, bound)
    w_hh = jax.random.uniform(k_whh, (4 * H_DIM, H_DIM), jnp.float32, -bound, bound)
    b_ih = jax.random.uniform(k_bih, (4 * H_DIM,), jnp.float32, -bound, bound)
    b_hh = jax.random.uniform(k_bhh, (4 * H_DIM,), jnp.float32, -bound, bound)
    params = (w_ih, w_hh, b_ih, b_hh)

    x_index = 13                                  # as in: pred_loss(model(13), inputx[13])
    h_out = sequence_forward(x_index, inputx, params)
    h_out = jax.block_until_ready(h_out)

    h_ref = _reference_forward(x_index, inputx, params)
    assert h_out.shape == (1, H_DIM)
    # bf16 weights in the kernel vs. f32 reference weights => looser tolerance.
    assert jnp.allclose(h_out, h_ref, atol=2e-2, rtol=2e-2), "mismatch vs reference"

    # (Optional) same MSE the original script computes — plain JAX glue.
    _ = jnp.mean((h_out - inputx[x_index]) ** 2)

    print("KERNEL_OK")
</pallas_src>

<mosaic_0001>
module attributes {stable_mosaic.version = 11 : i64} {
  func.func @_lstm_seq_kernel(%arg0: memref<10x150xbf16, #tpu.memory_space<vmem>>, %arg1: memref<150x1024xbf16, #tpu.memory_space<vmem>>, %arg2: memref<256x1024xbf16, #tpu.memory_space<vmem>>, %arg3: memref<1x1024xf32, #tpu.memory_space<vmem>>, %arg4: memref<1x256xf32, #tpu.memory_space<vmem>>) attributes {dimension_semantics = [], scalar_prefetch = 0 : i64, scratch_operands = 0 : i64, tpu.core_type = #tpu.core_type<tc>} {
    %c0 = arith.constant 0 : index
    %c0_0 = arith.constant 0 : index
    %0 = vector.load %arg0[%c0, %c0_0] : memref<10x150xbf16, #tpu.memory_space<vmem>>, vector<10x150xbf16>
    %c0_1 = arith.constant 0 : index
    %c0_2 = arith.constant 0 : index
    %1 = vector.load %arg1[%c0_1, %c0_2] : memref<150x1024xbf16, #tpu.memory_space<vmem>>, vector<150x1024xbf16>
    %cst = arith.constant dense<0.000000e+00> : vector<10x1024xf32>
    %2 = tpu.matmul %0, %1, %cst {dimension_numbers = #tpu.dot_dimension_numbers<[1], [0], [0], [1], [0, 0, 1, 1], [], []>} : vector<10x150xbf16>, vector<150x1024xbf16>, vector<10x1024xf32> -> vector<10x1024xf32>
    %c0_3 = arith.constant 0 : index
    %c0_4 = arith.constant 0 : index
    %3 = vector.load %arg3[%c0_3, %c0_4] : memref<1x1024xf32, #tpu.memory_space<vmem>>, vector<1x1024xf32>
    %4 = vector.broadcast %3 : vector<1x1024xf32> to vector<10x1024xf32>
    %5 = arith.addf %2, %4 : vector<10x1024xf32>
    %c0_5 = arith.constant 0 : index
    %c0_6 = arith.constant 0 : index
    %6 = vector.load %arg2[%c0_5, %c0_6] : memref<256x1024xbf16, #tpu.memory_space<vmem>>, vector<256x1024xbf16>
    %7 = vector.extract_strided_slice %5 {offsets = [0, 0], sizes = [1, 1024], strides = [1, 1]} : vector<10x1024xf32> to vector<1x1024xf32>
    %8 = vector.extract_strided_slice %7 {offsets = [0, 0], sizes = [1, 256], strides = [1, 1]} : vector<1x1024xf32> to vector<1x256xf32>
    %cst_7 = arith.constant 5.000000e-01 : f32
    %9 = vector.broadcast %cst_7 : f32 to vector<1x256xf32>
    %10 = arith.mulf %9, %8 : vector<1x256xf32>
    %11 = math.tanh %10 : vector<1x256xf32>
    %cst_8 = arith.constant 5.000000e-01 : f32
    %12 = vector.broadcast %cst_8 : f32 to vector<1x256xf32>
    %13 = arith.mulf %12, %11 : vector<1x256xf32>
    %cst_9 = arith.constant 5.000000e-01 : f32
    %14 = vector.broadcast %cst_9 : f32 to vector<1x256xf32>
    %15 = arith.addf %13, %14 : vector<1x256xf32>
    %16 = vector.extract_strided_slice %7 {offsets = [0, 512], sizes = [1, 256], strides = [1, 1]} : vector<1x1024xf32> to vector<1x256xf32>
    %17 = math.tanh %16 : vector<1x256xf32>
    %18 = vector.extract_strided_slice %7 {offsets = [0, 768], sizes = [1, 256], strides = [1, 1]} : vector<1x1024xf32> to vector<1x256xf32>
    %cst_10 = arith.constant 5.000000e-01 : f32
    %19 = vector.broadcast %cst_10 : f32 to vector<1x256xf32>
    %20 = arith.mulf %19, %18 : vector<1x256xf32>
    %21 = math.tanh %20 : vector<1x256xf32>
    %cst_11 = arith.constant 5.000000e-01 : f32
    %22 = vector.broadcast %cst_11 : f32 to vector<1x256xf32>
    %23 = arith.mulf %22, %21 : vector<1x256xf32>
    %cst_12 = arith.constant 5.000000e-01 : f32
    %24 = vector.broadcast %cst_12 : f32 to vector<1x256xf32>
    %25 = arith.addf %23, %24 : vector<1x256xf32>
    %26 = arith.mulf %15, %17 : vector<1x256xf32>
    %27 = math.tanh %26 : vector<1x256xf32>
    %28 = arith.mulf %25, %27 : vector<1x256xf32>
    %29 = vector.extract_strided_slice %5 {offsets = [1, 0], sizes = [1, 1024], strides = [1, 1]} : vector<10x1024xf32> to vector<1x1024xf32>
    %30 = arith.truncf %28 : vector<1x256xf32> to vector<1x256xbf16>
    %cst_13 = arith.constant dense<0.000000e+00> : vector<1x1024xf32>
    %31 = tpu.matmul %30, %6, %cst_13 {dimension_numbers = #tpu.dot_dimension_numbers<[1], [0], [0], [1], [0, 0, 1, 1], [], []>} : vector<1x256xbf16>, vector<256x1024xbf16>, vector<1x1024xf32> -> vector<1x1024xf32>
    %32 = arith.addf %29, %31 : vector<1x1024xf32>
    %33 = vector.extract_strided_slice %32 {offsets = [0, 0], sizes = [1, 256], strides = [1, 1]} : vector<1x1024xf32> to vector<1x256xf32>
    %cst_14 = arith.constant 5.000000e-01 : f32
    %34 = vector.broadcast %cst_14 : f32 to vector<1x256xf32>
    %35 = arith.mulf %34, %33 : vector<1x256xf32>
    %36 = math.tanh %35 : vector<1x256xf32>
    %cst_15 = arith.constant 5.000000e-01 : f32
    %37 = vector.broadcast %cst_15 : f32 to vector<1x256xf32>
    %38 = arith.mulf %37, %36 : vector<1x256xf32>
    %cst_16 = arith.constant 5.000000e-01 : f32
    %39 = vector.broadcast %cst_16 : f32 to vector<1x256xf32>
    %40 = arith.addf %38, %39 : vector<1x256xf32>
    %41 = vector.extract_strided_slice %32 {offsets = [0, 512], sizes = [1, 256], strides = [1, 1]} : vector<1x1024xf32> to vector<1x256xf32>
    %42 = math.tanh %41 : vector<1x256xf32>
    %43 = vector.extract_strided_slice %32 {offsets = [0, 768], sizes = [1, 256], strides = [1, 1]} : vector<1x1024xf32> to vector<1x256xf32>
    %cst_17 = arith.constant 5.000000e-01 : f32
    %44 = vector.broadcast %cst_17 : f32 to vector<1x256xf32>
    %45 = arith.mulf %44, %43 : vector<1x256xf32>
    %46 = math.tanh %45 : vector<1x256xf32>
    %cst_18 = arith.constant 5.000000e-01 : f32
    %47 = vector.broadcast %cst_18 : f32 to vector<1x256xf32>
    %48 = arith.mulf %47, %46 : vector<1x256xf32>
    %cst_19 = arith.constant 5.000000e-01 : f32
    %49 = vector.broadcast %cst_19 : f32 to vector<1x256xf32>
    %50 = arith.addf %48, %49 : vector<1x256xf32>
    %51 = vector.extract_strided_slice %32 {offsets = [0, 256], sizes = [1, 256], strides = [1, 1]} : vector<1x1024xf32> to vector<1x256xf32>
    %cst_20 = arith.constant 5.000000e-01 : f32
    %52 = vector.broadcast %cst_20 : f32 to vector<1x256xf32>
    %53 = arith.mulf %52, %51 : vector<1x256xf32>
    %54 = math.tanh %53 : vector<1x256xf32>
    %cst_21 = arith.constant 5.000000e-01 : f32
    %55 = vector.broadcast %cst_21 : f32 to vector<1x256xf32>
    %56 = arith.mulf %55, %54 : vector<1x256xf32>
    %cst_22 = arith.constant 5.000000e-01 : f32
    %57 = vector.broadcast %cst_22 : f32 to vector<1x256xf32>
    %58 = arith.addf %56, %57 : vector<1x256xf32>
    %59 = arith.mulf %58, %26 : vector<1x256xf32>
    %60 = arith.mulf %40, %42 : vector<1x256xf32>
    %61 = arith.addf %59, %60 : vector<1x256xf32>
    %62 = math.tanh %61 : vector<1x256xf32>
    %63 = arith.mulf %50, %62 : vector<1x256xf32>
    %64 = vector.extract_strided_slice %5 {offsets = [2, 0], sizes = [1, 1024], strides = [1, 1]} : vector<10x1024xf32> to vector<1x1024xf32>
    %65 = arith.truncf %63 : vector<1x256xf32> to vector<1x256xbf16>
    %cst_23 = arith.constant dense<0.000000e+00> : vector<1x1024xf32>
    %66 = tpu.matmul %65, %6, %cst_23 {dimension_numbers = #tpu.dot_dimension_numbers<[1], [0], [0], [1], [0, 0, 1, 1], [], []>} : vector<1x256xbf16>, vector<256x1024xbf16>, vector<1x1024xf32> -> vector<1x1024xf32>
    %67 = arith.addf %64, %66 : vector<1x1024xf32>
    %68 = vector.extract_strided_slice %67 {offsets = [0, 0], sizes = [1, 256], strides = [1, 1]} : vector<1x1024xf32> to vector<1x256xf32>
    %cst_24 = arith.constant 5.000000e-01 : f32
    %69 = vector.broadcast %cst_24 : f32 to vector<1x256xf32>
    %70 = arith.mulf %69, %68 : vector<1x256xf32>
    %71 = math.tanh %70 : vector<1x256xf32>
    %cst_25 = arith.constant 5.000000e-01 : f32
    %72 = vector.broadcast %cst_25 : f32 to vector<1x256xf32>
    %73 = arith.mulf %72, %71 : vector<1x256xf32>
    %cst_26 = arith.constant 5.000000e-01 : f32
    %74 = vector.broadcast %cst_26 : f32 to vector<1x256xf32>
    %75 = arith.addf %73, %74 : vector<1x256xf32>
    %76 = vector.extract_strided_slice %67 {offsets = [0, 512], sizes = [1, 256], strides = [1, 1]} : vector<1x1024xf32> to vector<1x256xf32>
    %77 = math.tanh %76 : vector<1x256xf32>
    %78 = vector.extract_strided_slice %67 {offsets = [0, 768], sizes = [1, 256], strides = [1, 1]} : vector<1x1024xf32> to vector<1x256xf32>
    %cst_27 = arith.constant 5.000000e-01 : f32
    %79 = vector.broadcast %cst_27 : f32 to vector<1x256xf32>
    %80 = arith.mulf %79, %78 : vector<1x256xf32>
    %81 = math.tanh %80 : vector<1x256xf32>
    %cst_28 = arith.constant 5.000000e-01 : f32
    %82 = vector.broadcast %cst_28 : f32 to vector<1x256xf32>
    %83 = arith.mulf %82, %81 : vector<1x256xf32>
    %cst_29 = arith.constant 5.000000e-01 : f32
    %84 = vector.broadcast %cst_29 : f32 to vector<1x256xf32>
    %85 = arith.addf %83, %84 : vector<1x256xf32>
    %86 = vector.extract_strided_slice %67 {offsets = [0, 256], sizes = [1, 256], strides = [1, 1]} : vector<1x1024xf32> to vector<1x256xf32>
    %cst_30 = arith.constant 5.000000e-01 : f32
    %87 = vector.broadcast %cst_30 : f32 to vector<1x256xf32>
    %88 = arith.mulf %87, %86 : vector<1x256xf32>
    %89 = math.tanh %88 : vector<1x256xf32>
    %cst_31 = arith.constant 5.000000e-01 : f32
    %90 = vector.broadcast %cst_31 : f32 to vector<1x256xf32>
    %91 = arith.mulf %90, %89 : vector<1x256xf32>
    %cst_32 = arith.constant 5.000000e-01 : f32
    %92 = vector.broadcast %cst_32 : f32 to vector<1x256xf32>
    %93 = arith.addf %91, %92 : vector<1x256xf32>
    %94 = arith.mulf %93, %61 : vector<1x256xf32>
    %95 = arith.mulf %75, %77 : vector<1x256xf32>
    %96 = arith.addf %94, %95 : vector<1x256xf32>
    %97 = math.tanh %96 : vector<1x256xf32>
    %98 = arith.mulf %85, %97 : vector<1x256xf32>
    %99 = vector.extract_strided_slice %5 {offsets = [3, 0], sizes = [1, 1024], strides = [1, 1]} : vector<10x1024xf32> to vector<1x1024xf32>
    %100 = arith.truncf %98 : vector<1x256xf32> to vector<1x256xbf16>
    %cst_33 = arith.constant dense<0.000000e+00> : vector<1x1024xf32>
    %101 = tpu.matmul %100, %6, %cst_33 {dimension_numbers = #tpu.dot_dimension_numbers<[1], [0], [0], [1], [0, 0, 1, 1], [], []>} : vector<1x256xbf16>, vector<256x1024xbf16>, vector<1x1024xf32> -> vector<1x1024xf32>
    %102 = arith.addf %99, %101 : vector<1x1024xf32>
    %103 = vector.extract_strided_slice %102 {offsets = [0, 0], sizes = [1, 256], strides = [1, 1]} : vector<1x1024xf32> to vector<1x256xf32>
    %cst_34 = arith.constant 5.000000e-01 : f32
    %104 = vector.broadcast %cst_34 : f32 to vector<1x256xf32>
    %105 = arith.mulf %104, %103 : vector<1x256xf32>
    %106 = math.tanh %105 : vector<1x256xf32>
    %cst_35 = arith.constant 5.000000e-01 : f32
    %107 = vector.broadcast %cst_35 : f32 to vector<1x256xf32>
    %108 = arith.mulf %107, %106 : vector<1x256xf32>
    %cst_36 = arith.constant 5.000000e-01 : f32
    %109 = vector.broadcast %cst_36 : f32 to vector<1x256xf32>
    %110 = arith.addf %108, %109 : vector<1x256xf32>
    %111 = vector.extract_strided_slice %102 {offsets = [0, 512], sizes = [1, 256], strides = [1, 1]} : vector<1x1024xf32> to vector<1x256xf32>
    %112 = math.tanh %111 : vector<1x256xf32>
    %113 = vector.extract_strided_slice %102 {offsets = [0, 768], sizes = [1, 256], strides = [1, 1]} : vector<1x1024xf32> to vector<1x256xf32>
    %cst_37 = arith.constant 5.000000e-01 : f32
    %114 = vector.broadcast %cst_37 : f32 to vector<1x256xf32>
    %115 = arith.mulf %114, %113 : vector<1x256xf32>
    %116 = math.tanh %115 : vector<1x256xf32>
    %cst_38 = arith.constant 5.000000e-01 : f32
    %117 = vector.broadcast %cst_38 : f32 to vector<1x256xf32>
    %118 = arith.mulf %117, %116 : vector<1x256xf32>
    %cst_39 = arith.constant 5.000000e-01 : f32
    %119 = vector.broadcast %cst_39 : f32 to vector<1x256xf32>
    %120 = arith.addf %118, %119 : vector<1x256xf32>
    %121 = vector.extract_strided_slice %102 {offsets = [0, 256], sizes = [1, 256], strides = [1, 1]} : vector<1x1024xf32> to vector<1x256xf32>
    %cst_40 = arith.constant 5.000000e-01 : f32
    %122 = vector.broadcast %cst_40 : f32 to vector<1x256xf32>
    %123 = arith.mulf %122, %121 : vector<1x256xf32>
    %124 = math.tanh %123 : vector<1x256xf32>
    %cst_41 = arith.constant 5.000000e-01 : f32
    %125 = vector.broadcast %cst_41 : f32 to vector<1x256xf32>
    %126 = arith.mulf %125, %124 : vector<1x256xf32>
    %cst_42 = arith.constant 5.000000e-01 : f32
    %127 = vector.broadcast %cst_42 : f32 to vector<1x256xf32>
    %128 = arith.addf %126, %127 : vector<1x256xf32>
    %129 = arith.mulf %128, %96 : vector<1x256xf32>
    %130 = arith.mulf %110, %112 : vector<1x256xf32>
    %131 = arith.addf %129, %130 : vector<1x256xf32>
    %132 = math.tanh %131 : vector<1x256xf32>
    %133 = arith.mulf %120, %132 : vector<1x256xf32>
    %134 = vector.extract_strided_slice %5 {offsets = [4, 0], sizes = [1, 1024], strides = [1, 1]} : vector<10x1024xf32> to vector<1x1024xf32>
    %135 = arith.truncf %133 : vector<1x256xf32> to vector<1x256xbf16>
    %cst_43 = arith.constant dense<0.000000e+00> : vector<1x1024xf32>
    %136 = tpu.matmul %135, %6, %cst_43 {dimension_numbers = #tpu.dot_dimension_numbers<[1], [0], [0], [1], [0, 0, 1, 1], [], []>} : vector<1x256xbf16>, vector<256x1024xbf16>, vector<1x1024xf32> -> vector<1x1024xf32>
    %137 = arith.addf %134, %136 : vector<1x1024xf32>
    %138 = vector.extract_strided_slice %137 {offsets = [0, 0], sizes = [1, 256], strides = [1, 1]} : vector<1x1024xf32> to vector<1x256xf32>
    %cst_44 = arith.constant 5.000000e-01 : f32
    %139 = vector.broadcast %cst_44 : f32 to vector<1x256xf32>
    %140 = arith.mulf %139, %138 : vector<1x256xf32>
    %141 = math.tanh %140 : vector<1x256xf32>
    %cst_45 = arith.constant 5.000000e-01 : f32
    %142 = vector.broadcast %cst_45 : f32 to vector<1x256xf32>
    %143 = arith.mulf %142, %141 : vector<1x256xf32>
    %cst_46 = arith.constant 5.000000e-01 : f32
    %144 = vector.broadcast %cst_46 : f32 to vector<1x256xf32>
    %145 = arith.addf %143, %144 : vector<1x256xf32>
    %146 = vector.extract_strided_slice %137 {offsets = [0, 512], sizes = [1, 256], strides = [1, 1]} : vector<1x1024xf32> to vector<1x256xf32>
    %147 = math.tanh %146 : vector<1x256xf32>
    %148 = vector.extract_strided_slice %137 {offsets = [0, 768], sizes = [1, 256], strides = [1, 1]} : vector<1x1024xf32> to vector<1x256xf32>
    %cst_47 = arith.constant 5.000000e-01 : f32
    %149 = vector.broadcast %cst_47 : f32 to vector<1x256xf32>
    %150 = arith.mulf %149, %148 : vector<1x256xf32>
    %151 = math.tanh %150 : vector<1x256xf32>
    %cst_48 = arith.constant 5.000000e-01 : f32
    %152 = vector.broadcast %cst_48 : f32 to vector<1x256xf32>
    %153 = arith.mulf %152, %151 : vector<1x256xf32>
    %cst_49 = arith.constant 5.000000e-01 : f32
    %154 = vector.broadcast %cst_49 : f32 to vector<1x256xf32>
    %155 = arith.addf %153, %154 : vector<1x256xf32>
    %156 = vector.extract_strided_slice %137 {offsets = [0, 256], sizes = [1, 256], strides = [1, 1]} : vector<1x1024xf32> to vector<1x256xf32>
    %cst_50 = arith.constant 5.000000e-01 : f32
    %157 = vector.broadcast %cst_50 : f32 to vector<1x256xf32>
    %158 = arith.mulf %157, %156 : vector<1x256xf32>
    %159 = math.tanh %158 : vector<1x256xf32>
    %cst_51 = arith.constant 5.000000e-01 : f32
    %160 = vector.broadcast %cst_51 : f32 to vector<1x256xf32>
    %161 = arith.mulf %160, %159 : vector<1x256xf32>
    %cst_52 = arith.constant 5.000000e-01 : f32
    %162 = vector.broadcast %cst_52 : f32 to vector<1x256xf32>
    %163 = arith.addf %161, %162 : vector<1x256xf32>
    %164 = arith.mulf %163, %131 : vector<1x256xf32>
    %165 = arith.mulf %145, %147 : vector<1x256xf32>
    %166 = arith.addf %164, %165 : vector<1x256xf32>
    %167 = math.tanh %166 : vector<1x256xf32>
    %168 = arith.mulf %155, %167 : vector<1x256xf32>
    %169 = vector.extract_strided_slice %5 {offsets = [5, 0], sizes = [1, 1024], strides = [1, 1]} : vector<10x1024xf32> to vector<1x1024xf32>
    %170 = arith.truncf %168 : vector<1x256xf32> to vector<1x256xbf16>
    %cst_53 = arith.constant dense<0.000000e+00> : vector<1x1024xf32>
    %171 = tpu.matmul %170, %6, %cst_53 {dimension_numbers = #tpu.dot_dimension_numbers<[1], [0], [0], [1], [0, 0, 1, 1], [], []>} : vector<1x256xbf16>, vector<256x1024xbf16>, vector<1x1024xf32> -> vector<1x1024xf32>
    %172 = arith.addf %169, %171 : vector<1x1024xf32>
    %173 = vector.extract_strided_slice %172 {offsets = [0, 0], sizes = [1, 256], strides = [1, 1]} : vector<1x1024xf32> to vector<1x256xf32>
    %cst_54 = arith.constant 5.000000e-01 : f32
    %174 = vector.broadcast %cst_54 : f32 to vector<1x256xf32>
    %175 = arith.mulf %174, %173 : vector<1x256xf32>
    %176 = math.tanh %175 : vector<1x256xf32>
    %cst_55 = arith.constant 5.000000e-01 : f32
    %177 = vector.broadcast %cst_55 : f32 to vector<1x256xf32>
    %178 = arith.mulf %177, %176 : vector<1x256xf32>
    %cst_56 = arith.constant 5.000000e-01 : f32
    %179 = vector.broadcast %cst_56 : f32 to vector<1x256xf32>
    %180 = arith.addf %178, %179 : vector<1x256xf32>
    %181 = vector.extract_strided_slice %172 {offsets = [0, 512], sizes = [1, 256], strides = [1, 1]} : vector<1x1024xf32> to vector<1x256xf32>
    %182 = math.tanh %181 : vector<1x256xf32>
    %183 = vector.extract_strided_slice %172 {offsets = [0, 768], sizes = [1, 256], strides = [1, 1]} : vector<1x1024xf32> to vector<1x256xf32>
    %cst_57 = arith.constant 5.000000e-01 : f32
    %184 = vector.broadcast %cst_57 : f32 to vector<1x256xf32>
    %185 = arith.mulf %184, %183 : vector<1x256xf32>
    %186 = math.tanh %185 : vector<1x256xf32>
    %cst_58 = arith.constant 5.000000e-01 : f32
    %187 = vector.broadcast %cst_58 : f32 to vector<1x256xf32>
    %188 = arith.mulf %187, %186 : vector<1x256xf32>
    %cst_59 = arith.constant 5.000000e-01 : f32
    %189 = vector.broadcast %cst_59 : f32 to vector<1x256xf32>
    %190 = arith.addf %188, %189 : vector<1x256xf32>
    %191 = vector.extract_strided_slice %172 {offsets = [0, 256], sizes = [1, 256], strides = [1, 1]} : vector<1x1024xf32> to vector<1x256xf32>
    %cst_60 = arith.constant 5.000000e-01 : f32
    %192 = vector.broadcast %cst_60 : f32 to vector<1x256xf32>
    %193 = arith.mulf %192, %191 : vector<1x256xf32>
    %194 = math.tanh %193 : vector<1x256xf32>
    %cst_61 = arith.constant 5.000000e-01 : f32
    %195 = vector.broadcast %cst_61 : f32 to vector<1x256xf32>
    %196 = arith.mulf %195, %194 : vector<1x256xf32>
    %cst_62 = arith.constant 5.000000e-01 : f32
    %197 = vector.broadcast %cst_62 : f32 to vector<1x256xf32>
    %198 = arith.addf %196, %197 : vector<1x256xf32>
    %199 = arith.mulf %198, %166 : vector<1x256xf32>
    %200 = arith.mulf %180, %182 : vector<1x256xf32>
    %201 = arith.addf %199, %200 : vector<1x256xf32>
    %202 = math.tanh %201 : vector<1x256xf32>
    %203 = arith.mulf %190, %202 : vector<1x256xf32>
    %204 = vector.extract_strided_slice %5 {offsets = [6, 0], sizes = [1, 1024], strides = [1, 1]} : vector<10x1024xf32> to vector<1x1024xf32>
    %205 = arith.truncf %203 : vector<1x256xf32> to vector<1x256xbf16>
    %cst_63 = arith.constant dense<0.000000e+00> : vector<1x1024xf32>
    %206 = tpu.matmul %205, %6, %cst_63 {dimension_numbers = #tpu.dot_dimension_numbers<[1], [0], [0], [1], [0, 0, 1, 1], [], []>} : vector<1x256xbf16>, vector<256x1024xbf16>, vector<1x1024xf32> -> vector<1x1024xf32>
    %207 = arith.addf %204, %206 : vector<1x1024xf32>
    %208 = vector.extract_strided_slice %207 {offsets = [0, 0], sizes = [1, 256], strides = [1, 1]} : vector<1x1024xf32> to vector<1x256xf32>
    %cst_64 = arith.constant 5.000000e-01 : f32
    %209 = vector.broadcast %cst_64 : f32 to vector<1x256xf32>
    %210 = arith.mulf %209, %208 : vector<1x256xf32>
    %211 = math.tanh %210 : vector<1x256xf32>
    %cst_65 = arith.constant 5.000000e-01 : f32
    %212 = vector.broadcast %cst_65 : f32 to vector<1x256xf32>
    %213 = arith.mulf %212, %211 : vector<1x256xf32>
    %cst_66 = arith.constant 5.000000e-01 : f32
    %214 = vector.broadcast %cst_66 : f32 to vector<1x256xf32>
    %215 = arith.addf %213, %214 : vector<1x256xf32>
    %216 = vector.extract_strided_slice %207 {offsets = [0, 512], sizes = [1, 256], strides = [1, 1]} : vector<1x1024xf32> to vector<1x256xf32>
    %217 = math.tanh %216 : vector<1x256xf32>
    %218 = vector.extract_strided_slice %207 {offsets = [0, 768], sizes = [1, 256], strides = [1, 1]} : vector<1x1024xf32> to vector<1x256xf32>
    %cst_67 = arith.constant 5.000000e-01 : f32
    %219 = vector.broadcast %cst_67 : f32 to vector<1x256xf32>
    %220 = arith.mulf %219, %218 : vector<1x256xf32>
    %221 = math.tanh %220 : vector<1x256xf32>
    %cst_68 = arith.constant 5.000000e-01 : f32
    %222 = vector.broadcast %cst_68 : f32 to vector<1x256xf32>
    %223 = arith.mulf %222, %221 : vector<1x256xf32>
    %cst_69 = arith.constant 5.000000e-01 : f32
    %224 = vector.broadcast %cst_69 : f32 to vector<1x256xf32>
    %225 = arith.addf %223, %224 : vector<1x256xf32>
    %226 = vector.extract_strided_slice %207 {offsets = [0, 256], sizes = [1, 256], strides = [1, 1]} : vector<1x1024xf32> to vector<1x256xf32>
    %cst_70 = arith.constant 5.000000e-01 : f32
    %227 = vector.broadcast %cst_70 : f32 to vector<1x256xf32>
    %228 = arith.mulf %227, %226 : vector<1x256xf32>
    %229 = math.tanh %228 : vector<1x256xf32>
    %cst_71 = arith.constant 5.000000e-01 : f32
    %230 = vector.broadcast %cst_71 : f32 to vector<1x256xf32>
    %231 = arith.mulf %230, %229 : vector<1x256xf32>
    %cst_72 = arith.constant 5.000000e-01 : f32
    %232 = vector.broadcast %cst_72 : f32 to vector<1x256xf32>
    %233 = arith.addf %231, %232 : vector<1x256xf32>
    %234 = arith.mulf %233, %201 : vector<1x256xf32>
    %235 = arith.mulf %215, %217 : vector<1x256xf32>
    %236 = arith.addf %234, %235 : vector<1x256xf32>
    %237 = math.tanh %236 : vector<1x256xf32>
    %238 = arith.mulf %225, %237 : vector<1x256xf32>
    %239 = vector.extract_strided_slice %5 {offsets = [7, 0], sizes = [1, 1024], strides = [1, 1]} : vector<10x1024xf32> to vector<1x1024xf32>
    %240 = arith.truncf %238 : vector<1x256xf32> to vector<1x256xbf16>
    %cst_73 = arith.constant dense<0.000000e+00> : vector<1x1024xf32>
    %241 = tpu.matmul %240, %6, %cst_73 {dimension_numbers = #tpu.dot_dimension_numbers<[1], [0], [0], [1], [0, 0, 1, 1], [], []>} : vector<1x256xbf16>, vector<256x1024xbf16>, vector<1x1024xf32> -> vector<1x1024xf32>
    %242 = arith.addf %239, %241 : vector<1x1024xf32>
    %243 = vector.extract_strided_slice %242 {offsets = [0, 0], sizes = [1, 256], strides = [1, 1]} : vector<1x1024xf32> to vector<1x256xf32>
    %cst_74 = arith.constant 5.000000e-01 : f32
    %244 = vector.broadcast %cst_74 : f32 to vector<1x256xf32>
    %245 = arith.mulf %244, %243 : vector<1x256xf32>
    %246 = math.tanh %245 : vector<1x256xf32>
    %cst_75 = arith.constant 5.000000e-01 : f32
    %247 = vector.broadcast %cst_75 : f32 to vector<1x256xf32>
    %248 = arith.mulf %247, %246 : vector<1x256xf32>
    %cst_76 = arith.constant 5.000000e-01 : f32
    %249 = vector.broadcast %cst_76 : f32 to vector<1x256xf32>
    %250 = arith.addf %248, %249 : vector<1x256xf32>
    %251 = vector.extract_strided_slice %242 {offsets = [0, 512], sizes = [1, 256], strides = [1, 1]} : vector<1x1024xf32> to vector<1x256xf32>
    %252 = math.tanh %251 : vector<1x256xf32>
    %253 = vector.extract_strided_slice %242 {offsets = [0, 768], sizes = [1, 256], strides = [1, 1]} : vector<1x1024xf32> to vector<1x256xf32>
    %cst_77 = arith.constant 5.000000e-01 : f32
    %254 = vector.broadcast %cst_77 : f32 to vector<1x256xf32>
    %255 = arith.mulf %254, %253 : vector<1x256xf32>
    %256 = math.tanh %255 : vector<1x256xf32>
    %cst_78 = arith.constant 5.000000e-01 : f32
    %257 = vector.broadcast %cst_78 : f32 to vector<1x256xf32>
    %258 = arith.mulf %257, %256 : vector<1x256xf32>
    %cst_79 = arith.constant 5.000000e-01 : f32
    %259 = vector.broadcast %cst_79 : f32 to vector<1x256xf32>
    %260 = arith.addf %258, %259 : vector<1x256xf32>
    %261 = vector.extract_strided_slice %242 {offsets = [0, 256], sizes = [1, 256], strides = [1, 1]} : vector<1x1024xf32> to vector<1x256xf32>
    %cst_80 = arith.constant 5.000000e-01 : f32
    %262 = vector.broadcast %cst_80 : f32 to vector<1x256xf32>
    %263 = arith.mulf %262, %261 : vector<1x256xf32>
    %264 = math.tanh %263 : vector<1x256xf32>
    %cst_81 = arith.constant 5.000000e-01 : f32
    %265 = vector.broadcast %cst_81 : f32 to vector<1x256xf32>
    %266 = arith.mulf %265, %264 : vector<1x256xf32>
    %cst_82 = arith.constant 5.000000e-01 : f32
    %267 = vector.broadcast %cst_82 : f32 to vector<1x256xf32>
    %268 = arith.addf %266, %267 : vector<1x256xf32>
    %269 = arith.mulf %268, %236 : vector<1x256xf32>
    %270 = arith.mulf %250, %252 : vector<1x256xf32>
    %271 = arith.addf %269, %270 : vector<1x256xf32>
    %272 = math.tanh %271 : vector<1x256xf32>
    %273 = arith.mulf %260, %272 : vector<1x256xf32>
    %274 = vector.extract_strided_slice %5 {offsets = [8, 0], sizes = [1, 1024], strides = [1, 1]} : vector<10x1024xf32> to vector<1x1024xf32>
    %275 = arith.truncf %273 : vector<1x256xf32> to vector<1x256xbf16>
    %cst_83 = arith.constant dense<0.000000e+00> : vector<1x1024xf32>
    %276 = tpu.matmul %275, %6, %cst_83 {dimension_numbers = #tpu.dot_dimension_numbers<[1], [0], [0], [1], [0, 0, 1, 1], [], []>} : vector<1x256xbf16>, vector<256x1024xbf16>, vector<1x1024xf32> -> vector<1x1024xf32>
    %277 = arith.addf %274, %276 : vector<1x1024xf32>
    %278 = vector.extract_strided_slice %277 {offsets = [0, 0], sizes = [1, 256], strides = [1, 1]} : vector<1x1024xf32> to vector<1x256xf32>
    %cst_84 = arith.constant 5.000000e-01 : f32
    %279 = vector.broadcast %cst_84 : f32 to vector<1x256xf32>
    %280 = arith.mulf %279, %278 : vector<1x256xf32>
    %281 = math.tanh %280 : vector<1x256xf32>
    %cst_85 = arith.constant 5.000000e-01 : f32
    %282 = vector.broadcast %cst_85 : f32 to vector<1x256xf32>
    %283 = arith.mulf %282, %281 : vector<1x256xf32>
    %cst_86 = arith.constant 5.000000e-01 : f32
    %284 = vector.broadcast %cst_86 : f32 to vector<1x256xf32>
    %285 = arith.addf %283, %284 : vector<1x256xf32>
    %286 = vector.extract_strided_slice %277 {offsets = [0, 512], sizes = [1, 256], strides = [1, 1]} : vector<1x1024xf32> to vector<1x256xf32>
    %287 = math.tanh %286 : vector<1x256xf32>
    %288 = vector.extract_strided_slice %277 {offsets = [0, 768], sizes = [1, 256], strides = [1, 1]} : vector<1x1024xf32> to vector<1x256xf32>
    %cst_87 = arith.constant 5.000000e-01 : f32
    %289 = vector.broadcast %cst_87 : f32 to vector<1x256xf32>
    %290 = arith.mulf %289, %288 : vector<1x256xf32>
    %291 = math.tanh %290 : vector<1x256xf32>
    %cst_88 = arith.constant 5.000000e-01 : f32
    %292 = vector.broadcast %cst_88 : f32 to vector<1x256xf32>
    %293 = arith.mulf %292, %291 : vector<1x256xf32>
    %cst_89 = arith.constant 5.000000e-01 : f32
    %294 = vector.broadcast %cst_89 : f32 to vector<1x256xf32>
    %295 = arith.addf %293, %294 : vector<1x256xf32>
    %296 = vector.extract_strided_slice %277 {offsets = [0, 256], sizes = [1, 256], strides = [1, 1]} : vector<1x1024xf32> to vector<1x256xf32>
    %cst_90 = arith.constant 5.000000e-01 : f32
    %297 = vector.broadcast %cst_90 : f32 to vector<1x256xf32>
    %298 = arith.mulf %297, %296 : vector<1x256xf32>
    %299 = math.tanh %298 : vector<1x256xf32>
    %cst_91 = arith.constant 5.000000e-01 : f32
    %300 = vector.broadcast %cst_91 : f32 to vector<1x256xf32>
    %301 = arith.mulf %300, %299 : vector<1x256xf32>
    %cst_92 = arith.constant 5.000000e-01 : f32
    %302 = vector.broadcast %cst_92 : f32 to vector<1x256xf32>
    %303 = arith.addf %301, %302 : vector<1x256xf32>
    %304 = arith.mulf %303, %271 : vector<1x256xf32>
    %305 = arith.mulf %285, %287 : vector<1x256xf32>
    %306 = arith.addf %304, %305 : vector<1x256xf32>
    %307 = math.tanh %306 : vector<1x256xf32>
    %308 = arith.mulf %295, %307 : vector<1x256xf32>
    %309 = vector.extract_strided_slice %5 {offsets = [9, 0], sizes = [1, 1024], strides = [1, 1]} : vector<10x1024xf32> to vector<1x1024xf32>
    %310 = arith.truncf %308 : vector<1x256xf32> to vector<1x256xbf16>
    %cst_93 = arith.constant dense<0.000000e+00> : vector<1x1024xf32>
    %311 = tpu.matmul %310, %6, %cst_93 {dimension_numbers = #tpu.dot_dimension_numbers<[1], [0], [0], [1], [0, 0, 1, 1], [], []>} : vector<1x256xbf16>, vector<256x1024xbf16>, vector<1x1024xf32> -> vector<1x1024xf32>
    %312 = arith.addf %309, %311 : vector<1x1024xf32>
    %313 = vector.extract_strided_slice %312 {offsets = [0, 0], sizes = [1, 256], strides = [1, 1]} : vector<1x1024xf32> to vector<1x256xf32>
    %cst_94 = arith.constant 5.000000e-01 : f32
    %314 = vector.broadcast %cst_94 : f32 to vector<1x256xf32>
    %315 = arith.mulf %314, %313 : vector<1x256xf32>
    %316 = math.tanh %315 : vector<1x256xf32>
    %cst_95 = arith.constant 5.000000e-01 : f32
    %317 = vector.broadcast %cst_95 : f32 to vector<1x256xf32>
    %318 = arith.mulf %317, %316 : vector<1x256xf32>
    %cst_96 = arith.constant 5.000000e-01 : f32
    %319 = vector.broadcast %cst_96 : f32 to vector<1x256xf32>
    %320 = arith.addf %318, %319 : vector<1x256xf32>
    %321 = vector.extract_strided_slice %312 {offsets = [0, 512], sizes = [1, 256], strides = [1, 1]} : vector<1x1024xf32> to vector<1x256xf32>
    %322 = math.tanh %321 : vector<1x256xf32>
    %323 = vector.extract_strided_slice %312 {offsets = [0, 768], sizes = [1, 256], strides = [1, 1]} : vector<1x1024xf32> to vector<1x256xf32>
    %cst_97 = arith.constant 5.000000e-01 : f32
    %324 = vector.broadcast %cst_97 : f32 to vector<1x256xf32>
    %325 = arith.mulf %324, %323 : vector<1x256xf32>
    %326 = math.tanh %325 : vector<1x256xf32>
    %cst_98 = arith.constant 5.000000e-01 : f32
    %327 = vector.broadcast %cst_98 : f32 to vector<1x256xf32>
    %328 = arith.mulf %327, %326 : vector<1x256xf32>
    %cst_99 = arith.constant 5.000000e-01 : f32
    %329 = vector.broadcast %cst_99 : f32 to vector<1x256xf32>
    %330 = arith.addf %328, %329 : vector<1x256xf32>
    %331 = vector.extract_strided_slice %312 {offsets = [0, 256], sizes = [1, 256], strides = [1, 1]} : vector<1x1024xf32> to vector<1x256xf32>
    %cst_100 = arith.constant 5.000000e-01 : f32
    %332 = vector.broadcast %cst_100 : f32 to vector<1x256xf32>
    %333 = arith.mulf %332, %331 : vector<1x256xf32>
    %334 = math.tanh %333 : vector<1x256xf32>
    %cst_101 = arith.constant 5.000000e-01 : f32
    %335 = vector.broadcast %cst_101 : f32 to vector<1x256xf32>
    %336 = arith.mulf %335, %334 : vector<1x256xf32>
    %cst_102 = arith.constant 5.000000e-01 : f32
    %337 = vector.broadcast %cst_102 : f32 to vector<1x256xf32>
    %338 = arith.addf %336, %337 : vector<1x256xf32>
    %339 = arith.mulf %338, %306 : vector<1x256xf32>
    %340 = arith.mulf %320, %322 : vector<1x256xf32>
    %341 = arith.addf %339, %340 : vector<1x256xf32>
    %342 = math.tanh %341 : vector<1x256xf32>
    %343 = arith.mulf %330, %342 : vector<1x256xf32>
    %c0_103 = arith.constant 0 : index
    %c0_104 = arith.constant 0 : index
    %344 = vector.load %arg4[%c0_103, %c0_104] : memref<1x256xf32, #tpu.memory_space<vmem>>, vector<1x256xf32>
    tpu.vector_store %arg4[%c0_103, %c0_104], %343 {strides = array<i32>} : memref<1x256xf32, #tpu.memory_space<vmem>>, vector<1x256xf32>,
    return
  }
}

</mosaic_0001>

<llo_original>
// kernel: tpu_custom_call.1
$region0: #{tpu_custom_call.1}
  #allocation0 [shape = 'u32[]', space=smem, size = 0x4, offset = 0x4, fixed_abs, tag = 'smem constant byte address 0x4 - core index']
  #allocation1 [shape = 'u32[144,128]{1,0:T(1,128)}', space=vmem, size = 0x12000, scoped, tag = 'internal scratch']
  %s0 = inlined_call_operand.hbm [shape: bf16[10,150], index: 0, kind: input, shape index: {}]
  %s1 = inlined_call_operand.hbm [shape: bf16[150,1024], index: 1, kind: input, shape index: {}]
  %s2 = inlined_call_operand.hbm [shape: bf16[256,1024], index: 2, kind: input, shape index: {}]
  %s3 = inlined_call_operand.vmem [shape: f32[1,1024], index: 3, kind: input, shape index: {}]
  %s4 = inlined_call_operand.hbm [shape: f32[1,256], index: 4, kind: output, shape index: {}]
  %s5 = sld [smem:[#allocation0]]
  $region38: #{tpu_custom_call.1} parent=0
    _
  %s7 = ssub.s32 1, %s5
  %s8 = scalar_select 0, %s7, %s5
  $region1: #{tpu_custom_call.1} parent=0
    #allocation2 [shape = 'u8[8192]{0}', space=vmem, size = 0x2000, scoped, tag = 'input window, operand 0, single buffered']
    #allocation3 [shape = 's32[1]{0}', space=sflag, size = 0x4, scoped, tag = 'scoped memory for tpu_custom_call.1']
    #allocation4 [shape = 's32[1]{0}', space=sflag, size = 0x4, scoped, tag = 'scoped memory for tpu_custom_call.1']
    #allocation5 [shape = 'u8[311296]{0}', space=vmem, size = 0x4c000, scoped, tag = 'input window, operand 1, single buffered']
    #allocation6 [shape = 's32[1]{0}', space=sflag, size = 0x4, scoped, tag = 'scoped memory for tpu_custom_call.1']
    #allocation7 [shape = 'u8[524288]{0}', space=vmem, size = 0x80000, scoped, tag = 'input window, operand 2, single buffered']
    #allocation8 [shape = 'u8[1024]{0}', space=vmem, size = 0x400, scoped, tag = 'output window, operand 0, single buffered']
    %9 = vsyncpa [#allocation3], 0
    %10 = vsyncpa [#allocation6], 0
    %11 = vsyncpa [#allocation4], 0
    // Predicated region
    $region2: #{tpu_custom_call.1} parent=1 // pred_check
      _
    $region3: #{tpu_custom_call.1} parent=1 // pred_check_branch
      %13 = sbr.rel (0) target = $region5
    $region4: #{tpu_custom_call.1} parent=1 // pred_region
      %s15 = ssub.s32 256, 256
      %16 = vsyncadd [#allocation3], %s15
      %s17 = sshll.u32 [#allocation2], 4
      %s18 = int_to_ptr.vmem [resolvable:$true] %s17
      %23 = dma.hbm_to_vmem [thread:$0]  %s0, 256, %s18, [#allocation3], 128, 128, 8
    $region5: #{tpu_custom_call.1} parent=1 // pred_fallthru
      _
    // Predicated region
    $region6: #{tpu_custom_call.1} parent=1 // pred_check
      _
    $region7: #{tpu_custom_call.1} parent=1 // pred_check_branch
      %25 = sbr.rel (0) target = $region9
    $region8: #{tpu_custom_call.1} parent=1 // pred_region
      %s27 = ssub.s32 9728, 9728
      %28 = vsyncadd [#allocation6], %s27
      %s29 = sshll.u32 [#allocation5], 4
      %s30 = int_to_ptr.vmem [resolvable:$true] %s29
      %35 = dma.hbm_to_vmem [thread:$0]  %s1, 9728, %s30, [#allocation6], 512, 512, 32
    $region9: #{tpu_custom_call.1} parent=1 // pred_fallthru
      _
    // Predicated region
    $region10: #{tpu_custom_call.1} parent=1 // pred_check
      _
    $region11: #{tpu_custom_call.1} parent=1 // pred_check_branch
      %37 = sbr.rel (0) target = $region13
    $region12: #{tpu_custom_call.1} parent=1 // pred_region
      %s39 = ssub.s32 16384, 16384
      %40 = vsyncadd [#allocation6], %s39
      %s41 = sshll.u32 [#allocation7], 4
      %s42 = int_to_ptr.vmem [resolvable:$true] %s41
      %47 = dma.hbm_to_vmem [thread:$0]  %s2, 16384, %s42, [#allocation6], 512, 512, 32
    $region13: #{tpu_custom_call.1} parent=1 // pred_fallthru
      _
    // Predicated region
    $region14: #{tpu_custom_call.1} parent=1 // pred_check
      _
    $region15: #{tpu_custom_call.1} parent=1 // pred_check_branch
      %49 = sbr.rel (0) target = $region17
    $region16: #{tpu_custom_call.1} parent=1 // pred_region
      _
    $region17: #{tpu_custom_call.1} parent=1 // pred_fallthru
      _
    // Predicated region
    $region18: #{tpu_custom_call.1} parent=1 // pred_check
      _
    $region19: #{tpu_custom_call.1} parent=1 // pred_check_branch
      %51 = sbr.rel (0) target = $region21
    $region20: #{tpu_custom_call.1} parent=1 // pred_region
      %52 = dma.done [#allocation3], 256
    $region21: #{tpu_custom_call.1} parent=1 // pred_fallthru
      _
    // Predicated region
    $region22: #{tpu_custom_call.1} parent=1 // pred_check
      _
    $region23: #{tpu_custom_call.1} parent=1 // pred_check_branch
      %54 = sbr.rel (0) target = $region25
    $region24: #{tpu_custom_call.1} parent=1 // pred_region
      %55 = dma.done [#allocation6], 9728
    $region25: #{tpu_custom_call.1} parent=1 // pred_fallthru
      _
    // Predicated region
    $region26: #{tpu_custom_call.1} parent=1 // pred_check
      _
    $region27: #{tpu_custom_call.1} parent=1 // pred_check_branch
      %57 = sbr.rel (0) target = $region29
    $region28: #{tpu_custom_call.1} parent=1 // pred_region
      %58 = dma.done [#allocation6], 16384
    $region29: #{tpu_custom_call.1} parent=1 // pred_fallthru
      _
    %v60 = vld [vmem:[#allocation2] sm:$0xff]
    %v61 = vld [vmem:[#allocation2 + $0x8] sm:$0x11]
    %v62 = vld [vmem:[#allocation5] sm:$0xff]
    %v63 = vld [vmem:[#allocation5 + $0x8] sm:$0xff]
    %v64 = vld [vmem:[#allocation5 + $0x10] sm:$0xff]
    %v65 = vld [vmem:[#allocation5 + $0x18] sm:$0xff]
    %v66 = vld [vmem:[#allocation5 + $0x20] sm:$0xff]
    %v67 = vld [vmem:[#allocation5 + $0x28] sm:$0xff]
    %v68 = vld [vmem:[#allocation5 + $0x30] sm:$0xff]
    %v69 = vld [vmem:[#allocation5 + $0x38] sm:$0xff]
    %v70 = vld [vmem:[#allocation5 + $0x40] sm:$0xff]
    %v71 = vld [vmem:[#allocation5 + $0x48] sm:$0xff]
    %v72 = vld [vmem:[#allocation5 + $0x50] sm:$0xff]
    %v73 = vld [vmem:[#allocation5 + $0x58] sm:$0xff]
    %v74 = vld [vmem:[#allocation5 + $0x60] sm:$0xff]
    %v75 = vld [vmem:[#allocation5 + $0x68] sm:$0xff]
    %v76 = vld [vmem:[#allocation5 + $0x70] sm:$0xff]
    %v77 = vld [vmem:[#allocation5 + $0x78] sm:$0xff]
    %v78 = vld [vmem:[#allocation5 + $0x80] sm:$0xff]
    %v79 = vld [vmem:[#allocation5 + $0x88] sm:$0xff]
    %v80 = vld [vmem:[#allocation5 + $0x90] sm:$0xff]
    %v81 = vld [vmem:[#allocation5 + $0x98] sm:$0xff]
    %v82 = vld [vmem:[#allocation5 + $0xa0] sm:$0xff]
    %v83 = vld [vmem:[#allocation5 + $0xa8] sm:$0xff]
    %v84 = vld [vmem:[#allocation5 + $0xb0] sm:$0xff]
    %v85 = vld [vmem:[#allocation5 + $0xb8] sm:$0xff]
    %v86 = vld [vmem:[#allocation5 + $0xc0] sm:$0xff]
    %v87 = vld [vmem:[#allocation5 + $0xc8] sm:$0xff]
    %v88 = vld [vmem:[#allocation5 + $0xd0] sm:$0xff]
    %v89 = vld [vmem:[#allocation5 + $0xd8] sm:$0xff]
    %v90 = vld [vmem:[#allocation5 + $0xe0] sm:$0xff]
    %v91 = vld [vmem:[#allocation5 + $0xe8] sm:$0xff]
    %v92 = vld [vmem:[#allocation5 + $0xf0] sm:$0xff]
    %v93 = vld [vmem:[#allocation5 + $0xf8] sm:$0xff]
    %v94 = vld [vmem:[#allocation5 + $0x100] sm:$0xff]
    %v95 = vld [vmem:[#allocation5 + $0x108] sm:$0xff]
    %v96 = vld [vmem:[#allocation5 + $0x110] sm:$0xff]
    %v97 = vld [vmem:[#allocation5 + $0x118] sm:$0xff]
    %v98 = vld [vmem:[#allocation5 + $0x120] sm:$0xff]
    %v99 = vld [vmem:[#allocation5 + $0x128] sm:$0xff]
    %v100 = vld [vmem:[#allocation5 + $0x130] sm:$0xff]
    %v101 = vld [vmem:[#allocation5 + $0x138] sm:$0xff]
    %v102 = vld [vmem:[#allocation5 + $0x140] sm:$0xff]
    %v103 = vld [vmem:[#allocation5 + $0x148] sm:$0xff]
    %v104 = vld [vmem:[#allocation5 + $0x150] sm:$0xff]
    %v105 = vld [vmem:[#allocation5 + $0x158] sm:$0xff]
    %v106 = vld [vmem:[#allocation5 + $0x160] sm:$0xff]
    %v107 = vld [vmem:[#allocation5 + $0x168] sm:$0xff]
    %v108 = vld [vmem:[#allocation5 + $0x170] sm:$0xff]
    %v109 = vld [vmem:[#allocation5 + $0x178] sm:$0xff]
    %v110 = vld [vmem:[#allocation5 + $0x180] sm:$0xff]
    %v111 = vld [vmem:[#allocation5 + $0x188] sm:$0xff]
    %v112 = vld [vmem:[#allocation5 + $0x190] sm:$0xff]
    %v113 = vld [vmem:[#allocation5 + $0x198] sm:$0xff]
    %v114 = vld [vmem:[#allocation5 + $0x1a0] sm:$0xff]
    %v115 = vld [vmem:[#allocation5 + $0x1a8] sm:$0xff]
    %v116 = vld [vmem:[#allocation5 + $0x1b0] sm:$0xff]
    %v117 = vld [vmem:[#allocation5 + $0x1b8] sm:$0xff]
    %v118 = vld [vmem:[#allocation5 + $0x1c0] sm:$0xff]
    %v119 = vld [vmem:[#allocation5 + $0x1c8] sm:$0xff]
    %v120 = vld [vmem:[#allocation5 + $0x1d0] sm:$0xff]
    %v121 = vld [vmem:[#allocation5 + $0x1d8] sm:$0xff]
    %v122 = vld [vmem:[#allocation5 + $0x1e0] sm:$0xff]
    %v123 = vld [vmem:[#allocation5 + $0x1e8] sm:$0xff]
    %v124 = vld [vmem:[#allocation5 + $0x1f0] sm:$0xff]
    %v125 = vld [vmem:[#allocation5 + $0x1f8] sm:$0xff]
    %v126 = vld [vmem:[#allocation5 + $0x200] sm:$0xff]
    %v127 = vld [vmem:[#allocation5 + $0x208] sm:$0xff]
    %v128 = vld [vmem:[#allocation5 + $0x210] sm:$0xff]
    %v129 = vld [vmem:[#allocation5 + $0x218] sm:$0xff]
    %v130 = vld [vmem:[#allocation5 + $0x220] sm:$0xff]
    %v131 = vld [vmem:[#allocation5 + $0x228] sm:$0xff]
    %v132 = vld [vmem:[#allocation5 + $0x230] sm:$0xff]
    %v133 = vld [vmem:[#allocation5 + $0x238] sm:$0xff]
    %v134 = vld [vmem:[#allocation5 + $0x240] sm:$0x77]
    %v135 = vld [vmem:[#allocation5 + $0x248] sm:$0x77]
    %v136 = vld [vmem:[#allocation5 + $0x250] sm:$0x77]
    %v137 = vld [vmem:[#allocation5 + $0x258] sm:$0x77]
    %v138 = vld [vmem:[%s3] sm:$0xff]
    %v140 = vlaneseq
    %v141 = vshrl.u32 %v140, 7
    %v142 = vsub.s32 0, %v141
    %v143 = vrot.slane %v138, %v142
    %v144 = vlaneseq
    %v145 = vshrl.u32 %v144, 7
    %v146 = vsub.s32 1, %v145
    %v147 = vrot.slane %v138, %v146
    %v148 = vlaneseq
    %v149 = vshrl.u32 %v148, 7
    %v150 = vsub.s32 2, %v149
    %v151 = vrot.slane %v138, %v150
    %v152 = vlaneseq
    %v153 = vshrl.u32 %v152, 7
    %v154 = vsub.s32 3, %v153
    %v155 = vrot.slane %v138, %v154
    %v156 = vlaneseq
    %v157 = vshrl.u32 %v156, 7
    %v158 = vsub.s32 4, %v157
    %v159 = vrot.slane %v138, %v158
    %v160 = vlaneseq
    %v161 = vshrl.u32 %v160, 7
    %v162 = vsub.s32 5, %v161
    %v163 = vrot.slane %v138, %v162
    %v164 = vlaneseq
    %v165 = vshrl.u32 %v164, 7
    %v166 = vsub.s32 6, %v165
    %v167 = vrot.slane %v138, %v166
    %v168 = vlaneseq
    %v169 = vshrl.u32 %v168, 7
    %v170 = vsub.s32 7, %v169
    %v171 = vrot.slane %v138, %v170
    %v182 = vunpack.c.l.b16 %v60
    %v183 = vunpack.c.h.b16 %v60
    %v184 = vunpack.c.l.b16 %v61
    %v185 = vunpack.c.h.b16 %v61
    %v186 = vpack.c.b16 %v184, %v182
    %v187 = vpack.c.b16 %v185, %v183
    %v265 = vunpack.c.l.b16 %v62
    %v266 = vunpack.c.h.b16 %v62
    %v267 = vunpack.c.l.b16 %v63
    %v268 = vunpack.c.h.b16 %v63
    %v269 = vunpack.c.l.b16 %v64
    %v270 = vunpack.c.h.b16 %v64
    %v271 = vunpack.c.l.b16 %v65
    %v272 = vunpack.c.h.b16 %v65
    %v273 = vunpack.c.l.b16 %v66
    %v274 = vunpack.c.h.b16 %v66
    %v275 = vunpack.c.l.b16 %v67
    %v276 = vunpack.c.h.b16 %v67
    %v277 = vunpack.c.l.b16 %v68
    %v278 = vunpack.c.h.b16 %v68
    %v279 = vunpack.c.l.b16 %v69
    %v280 = vunpack.c.h.b16 %v69
    %v281 = vunpack.c.l.b16 %v70
    %v282 = vunpack.c.h.b16 %v70
    %v283 = vunpack.c.l.b16 %v71
    %v284 = vunpack.c.h.b16 %v71
    %v285 = vunpack.c.l.b16 %v72
    %v286 = vunpack.c.h.b16 %v72
    %v287 = vunpack.c.l.b16 %v73
    %v288 = vunpack.c.h.b16 %v73
    %v289 = vunpack.c.l.b16 %v74
    %v290 = vunpack.c.h.b16 %v74
    %v291 = vunpack.c.l.b16 %v75
    %v292 = vunpack.c.h.b16 %v75
    %v293 = vunpack.c.l.b16 %v76
    %v294 = vunpack.c.h.b16 %v76
    %v295 = vunpack.c.l.b16 %v77
    %v296 = vunpack.c.h.b16 %v77
    %v297 = vunpack.c.l.b16 %v78
    %v298 = vunpack.c.h.b16 %v78
    %v299 = vunpack.c.l.b16 %v79
    %v300 = vunpack.c.h.b16 %v79
    %v301 = vunpack.c.l.b16 %v80
    %v302 = vunpack.c.h.b16 %v80
    %v303 = vunpack.c.l.b16 %v81
    %v304 = vunpack.c.h.b16 %v81
    %v305 = vunpack.c.l.b16 %v82
    %v306 = vunpack.c.h.b16 %v82
    %v307 = vunpack.c.l.b16 %v83
    %v308 = vunpack.c.h.b16 %v83
    %v309 = vunpack.c.l.b16 %v84
    %v310 = vunpack.c.h.b16 %v84
    %v311 = vunpack.c.l.b16 %v85
    %v312 = vunpack.c.h.b16 %v85
    %v313 = vunpack.c.l.b16 %v86
    %v314 = vunpack.c.h.b16 %v86
    %v315 = vunpack.c.l.b16 %v87
    %v316 = vunpack.c.h.b16 %v87
    %v317 = vunpack.c.l.b16 %v88
    %v318 = vunpack.c.h.b16 %v88
    %v319 = vunpack.c.l.b16 %v89
    %v320 = vunpack.c.h.b16 %v89
    %v321 = vunpack.c.l.b16 %v90
    %v322 = vunpack.c.h.b16 %v90
    %v323 = vunpack.c.l.b16 %v91
    %v324 = vunpack.c.h.b16 %v91
    %v325 = vunpack.c.l.b16 %v92
    %v326 = vunpack.c.h.b16 %v92
    %v327 = vunpack.c.l.b16 %v93
    %v328 = vunpack.c.h.b16 %v93
    %v329 = vunpack.c.l.b16 %v94
    %v330 = vunpack.c.h.b16 %v94
    %v331 = vunpack.c.l.b16 %v95
    %v332 = vunpack.c.h.b16 %v95
    %v333 = vunpack.c.l.b16 %v96
    %v334 = vunpack.c.h.b16 %v96
    %v335 = vunpack.c.l.b16 %v97
    %v336 = vunpack.c.h.b16 %v97
    %v337 = vunpack.c.l.b16 %v98
    %v338 = vunpack.c.h.b16 %v98
    %v339 = vunpack.c.l.b16 %v99
    %v340 = vunpack.c.h.b16 %v99
    %v341 = vunpack.c.l.b16 %v100
    %v342 = vunpack.c.h.b16 %v100
    %v343 = vunpack.c.l.b16 %v101
    %v344 = vunpack.c.h.b16 %v101
    %v345 = vunpack.c.l.b16 %v102
    %v346 = vunpack.c.h.b16 %v102
    %v347 = vunpack.c.l.b16 %v103
    %v348 = vunpack.c.h.b16 %v103
    %v349 = vunpack.c.l.b16 %v104
    %v350 = vunpack.c.h.b16 %v104
    %v351 = vunpack.c.l.b16 %v105
    %v352 = vunpack.c.h.b16 %v105
    %v353 = vunpack.c.l.b16 %v106
    %v354 = vunpack.c.h.b16 %v106
    %v355 = vunpack.c.l.b16 %v107
    %v356 = vunpack.c.h.b16 %v107
    %v357 = vunpack.c.l.b16 %v108
    %v358 = vunpack.c.h.b16 %v108
    %v359 = vunpack.c.l.b16 %v109
    %v360 = vunpack.c.h.b16 %v109
    %v361 = vunpack.c.l.b16 %v110
    %v362 = vunpack.c.h.b16 %v110
    %v363 = vunpack.c.l.b16 %v111
    %v364 = vunpack.c.h.b16 %v111
    %v365 = vunpack.c.l.b16 %v112
    %v366 = vunpack.c.h.b16 %v112
    %v367 = vunpack.c.l.b16 %v113
    %v368 = vunpack.c.h.b16 %v113
    %v369 = vunpack.c.l.b16 %v114
    %v370 = vunpack.c.h.b16 %v114
    %v371 = vunpack.c.l.b16 %v115
    %v372 = vunpack.c.h.b16 %v115
    %v373 = vunpack.c.l.b16 %v116
    %v374 = vunpack.c.h.b16 %v116
    %v375 = vunpack.c.l.b16 %v117
    %v376 = vunpack.c.h.b16 %v117
    %v377 = vunpack.c.l.b16 %v118
    %v378 = vunpack.c.h.b16 %v118
    %v379 = vunpack.c.l.b16 %v119
    %v380 = vunpack.c.h.b16 %v119
    %v381 = vunpack.c.l.b16 %v120
    %v382 = vunpack.c.h.b16 %v120
    %v383 = vunpack.c.l.b16 %v121
    %v384 = vunpack.c.h.b16 %v121
    %v385 = vunpack.c.l.b16 %v122
    %v386 = vunpack.c.h.b16 %v122
    %v387 = vunpack.c.l.b16 %v123
    %v388 = vunpack.c.h.b16 %v123
    %v389 = vunpack.c.l.b16 %v124
    %v390 = vunpack.c.h.b16 %v124
    %v391 = vunpack.c.l.b16 %v125
    %v392 = vunpack.c.h.b16 %v125
    %v393 = vunpack.c.l.b16 %v126
    %v394 = vunpack.c.h.b16 %v126
    %v395 = vunpack.c.l.b16 %v127
    %v396 = vunpack.c.h.b16 %v127
    %v397 = vunpack.c.l.b16 %v128
    %v398 = vunpack.c.h.b16 %v128
    %v399 = vunpack.c.l.b16 %v129
    %v400 = vunpack.c.h.b16 %v129
    %v401 = vunpack.c.l.b16 %v130
    %v402 = vunpack.c.h.b16 %v130
    %v403 = vunpack.c.l.b16 %v131
    %v404 = vunpack.c.h.b16 %v131
    %v405 = vunpack.c.l.b16 %v132
    %v406 = vunpack.c.h.b16 %v132
    %v407 = vunpack.c.l.b16 %v133
    %v408 = vunpack.c.h.b16 %v133
    %v409 = vunpack.c.l.b16 %v134
    %v410 = vunpack.c.h.b16 %v134
    %v411 = vunpack.c.l.b16 %v135
    %v412 = vunpack.c.h.b16 %v135
    %v413 = vunpack.c.l.b16 %v136
    %v414 = vunpack.c.h.b16 %v136
    %v415 = vunpack.c.l.b16 %v137
    %v416 = vunpack.c.h.b16 %v137
    %v417 = vpack.c.b16 %v273, %v265
    %v418 = vpack.c.b16 %v274, %v266
    %v419 = vpack.c.b16 %v275, %v267
    %v420 = vpack.c.b16 %v276, %v268
    %v421 = vpack.c.b16 %v277, %v269
    %v422 = vpack.c.b16 %v278, %v270
    %v423 = vpack.c.b16 %v279, %v271
    %v424 = vpack.c.b16 %v280, %v272
    %v425 = vpack.c.b16 %v289, %v281
    %v426 = vpack.c.b16 %v290, %v282
    %v427 = vpack.c.b16 %v291, %v283
    %v428 = vpack.c.b16 %v292, %v284
    %v429 = vpack.c.b16 %v293, %v285
    %v430 = vpack.c.b16 %v294, %v286
    %v431 = vpack.c.b16 %v295, %v287
    %v432 = vpack.c.b16 %v296, %v288
    %v433 = vpack.c.b16 %v305, %v297
    %v434 = vpack.c.b16 %v306, %v298
    %v435 = vpack.c.b16 %v307, %v299
    %v436 = vpack.c.b16 %v308, %v300
    %v437 = vpack.c.b16 %v309, %v301
    %v438 = vpack.c.b16 %v310, %v302
    %v439 = vpack.c.b16 %v311, %v303
    %v440 = vpack.c.b16 %v312, %v304
    %v441 = vpack.c.b16 %v321, %v313
    %v442 = vpack.c.b16 %v322, %v314
    %v443 = vpack.c.b16 %v323, %v315
    %v444 = vpack.c.b16 %v324, %v316
    %v445 = vpack.c.b16 %v325, %v317
    %v446 = vpack.c.b16 %v326, %v318
    %v447 = vpack.c.b16 %v327, %v319
    %v448 = vpack.c.b16 %v328, %v320
    %v449 = vpack.c.b16 %v337, %v329
    %v450 = vpack.c.b16 %v338, %v330
    %v451 = vpack.c.b16 %v339, %v331
    %v452 = vpack.c.b16 %v340, %v332
    %v453 = vpack.c.b16 %v341, %v333
    %v454 = vpack.c.b16 %v342, %v334
    %v455 = vpack.c.b16 %v343, %v335
    %v456 = vpack.c.b16 %v344, %v336
    %v457 = vpack.c.b16 %v353, %v345
    %v458 = vpack.c.b16 %v354, %v346
    %v459 = vpack.c.b16 %v355, %v347
    %v460 = vpack.c.b16 %v356, %v348
    %v461 = vpack.c.b16 %v357, %v349
    %v462 = vpack.c.b16 %v358, %v350
    %v463 = vpack.c.b16 %v359, %v351
    %v464 = vpack.c.b16 %v360, %v352
    %v465 = vpack.c.b16 %v369, %v361
    %v466 = vpack.c.b16 %v370, %v362
    %v467 = vpack.c.b16 %v371, %v363
    %v468 = vpack.c.b16 %v372, %v364
    %v469 = vpack.c.b16 %v373, %v365
    %v470 = vpack.c.b16 %v374, %v366
    %v471 = vpack.c.b16 %v375, %v367
    %v472 = vpack.c.b16 %v376, %v368
    %v473 = vpack.c.b16 %v385, %v377
    %v474 = vpack.c.b16 %v386, %v378
    %v475 = vpack.c.b16 %v387, %v379
    %v476 = vpack.c.b16 %v388, %v380
    %v477 = vpack.c.b16 %v389, %v381
    %v478 = vpack.c.b16 %v390, %v382
    %v479 = vpack.c.b16 %v391, %v383
    %v480 = vpack.c.b16 %v392, %v384
    %v481 = vpack.c.b16 %v401, %v393
    %v482 = vpack.c.b16 %v402, %v394
    %v483 = vpack.c.b16 %v403, %v395
    %v484 = vpack.c.b16 %v404, %v396
    %v485 = vpack.c.b16 %v405, %v397
    %v486 = vpack.c.b16 %v406, %v398
    %v487 = vpack.c.b16 %v407, %v399
    %v488 = vpack.c.b16 %v408, %v400
    %v489 = vpack.c.b16 %v409, %v409
    %v490 = vpack.c.b16 %v410, %v410
    %v491 = vpack.c.b16 %v411, %v411
    %v492 = vpack.c.b16 %v412, %v412
    %v493 = vpack.c.b16 %v413, %v413
    %v494 = vpack.c.b16 %v414, %v414
    %v495 = vpack.c.b16 %v415, %v415
    %v496 = vpack.c.b16 %v416, %v416
    %vm569 = vcmask 179200
    %v571 = vsel %vm569, %v187, 0
    %vm573 = vcmask 1042432
    %v575 = vsel %vm573, %v489, 0
    %v578 = vsel %vm573, %v490, 0
    %v581 = vsel %vm573, %v491, 0
    %v584 = vsel %vm573, %v492, 0
    %v587 = vsel %vm573, %v493, 0
    %v590 = vsel %vm573, %v494, 0
    %v593 = vsel %vm573, %v495, 0
    %v596 = vsel %vm573, %v496, 0
    %598 = vmatprep.subr.bf16.mxu0 %v418
    %599 = vmatpush1.bf16.msra.mxu0 %v417
    %600 = vmatprep.subr.bf16.mxu0 %v426
    %601 = vmatpush1.bf16.msra.mxu0 %v425
    %602 = vmatprep.subr.bf16.mxu0 %v434
    %603 = vmatpush1.bf16.msra.mxu0 %v433
    %604 = vmatprep.subr.bf16.mxu0 %v442
    %605 = vmatpush1.bf16.msra.mxu0 %v441
    %606 = vmatprep.subr.bf16.mxu0 %v450
    %607 = vmatpush1.bf16.msra.mxu0 %v449
    %608 = vmatprep.subr.bf16.mxu0 %v458
    %609 = vmatpush1.bf16.msra.mxu0 %v457
    %610 = vmatprep.subr.bf16.mxu0 %v466
    %611 = vmatpush1.bf16.msra.mxu0 %v465
    %612 = vmatprep.subr.bf16.mxu0 %v474
    %613 = vmatpush1.bf16.msra.mxu0 %v473
    %614 = vmatprep.subr.bf16.mxu0 %v482
    %615 = vmatpush1.bf16.msra.mxu0 %v481
    %616 = vmatprep.subr.bf16.mxu0 %v578
    %617 = vmatpush1.bf16.msra.mxu0 %v575
    %618 = vmatprep.subr.bf16.mxu0 0
    %619 = vmatpush1.bf16.msra.mxu0 0
    %620 = vmatprep.subr.bf16.mxu0 0
    %621 = vmatpush1.bf16.msra.mxu0 0
    %622 = vmatprep.subr.bf16.mxu0 0
    %623 = vmatpush1.bf16.msra.mxu0 0
    %624 = vmatprep.subr.bf16.mxu0 0
    %625 = vmatpush1.bf16.msra.mxu0 0
    %626 = vmatprep.subr.bf16.mxu0 0
    %627 = vmatpush1.bf16.msra.mxu0 0
    %628 = vmatprep.subr.bf16.mxu0 0
    %629 = vmatpush1.bf16.msra.mxu0 0
    %630 = vmatprep.mubr.bf16.mxu0 %v571
    %631 = vmatmul.mubr.bf16.gmra.mrb[0].mxu0 %v186
    %v632 = vpop.f32.mrb[0].mxu0
    %v633 = vadd.f32 %v143, %v632
    %v634 = vpop.f32.mrb[0].mxu0
    %v635 = vadd.f32 %v147, %v634
    %v636 = vpop.f32.mrb[0].mxu0
    %v637 = vadd.f32 %v143, %v636
    %v638 = vpop.f32.mrb[0].mxu0
    %v639 = vadd.f32 %v147, %v638
    %640 = vdwg.mxu0
    %641 = vmatprep.subr.bf16.mxu0 %v420
    %642 = vmatpush1.bf16.msra.mxu0 %v419
    %643 = vmatprep.subr.bf16.mxu0 %v428
    %644 = vmatpush1.bf16.msra.mxu0 %v427
    %645 = vmatprep.subr.bf16.mxu0 %v436
    %646 = vmatpush1.bf16.msra.mxu0 %v435
    %647 = vmatprep.subr.bf16.mxu0 %v444
    %648 = vmatpush1.bf16.msra.mxu0 %v443
    %649 = vmatprep.subr.bf16.mxu0 %v452
    %650 = vmatpush1.bf16.msra.mxu0 %v451
    %651 = vmatprep.subr.bf16.mxu0 %v460
    %652 = vmatpush1.bf16.msra.mxu0 %v459
    %653 = vmatprep.subr.bf16.mxu0 %v468
    %654 = vmatpush1.bf16.msra.mxu0 %v467
    %655 = vmatprep.subr.bf16.mxu0 %v476
    %656 = vmatpush1.bf16.msra.mxu0 %v475
    %657 = vmatprep.subr.bf16.mxu0 %v484
    %658 = vmatpush1.bf16.msra.mxu0 %v483
    %659 = vmatprep.subr.bf16.mxu0 %v584
    %660 = vmatpush1.bf16.msra.mxu0 %v581
    %661 = vmatprep.subr.bf16.mxu0 0
    %662 = vmatpush1.bf16.msra.mxu0 0
    %663 = vmatprep.subr.bf16.mxu0 0
    %664 = vmatpush1.bf16.msra.mxu0 0
    %665 = vmatprep.subr.bf16.mxu0 0
    %666 = vmatpush1.bf16.msra.mxu0 0
    %667 = vmatprep.subr.bf16.mxu0 0
    %668 = vmatpush1.bf16.msra.mxu0 0
    %669 = vmatprep.subr.bf16.mxu0 0
    %670 = vmatpush1.bf16.msra.mxu0 0
    %671 = vmatprep.subr.bf16.mxu0 0
    %672 = vmatpush1.bf16.msra.mxu0 0
    %673 = vmatprep.mubr.bf16.mxu0 %v571
    %674 = vmatmul.mubr.bf16.gmra.mrb[0].mxu0 %v186
    %v675 = vpop.f32.mrb[0].mxu0
    %v676 = vadd.f32 %v151, %v675
    %v677 = vpop.f32.mrb[0].mxu0
    %v678 = vadd.f32 %v155, %v677
    %v679 = vpop.f32.mrb[0].mxu0
    %v680 = vadd.f32 %v151, %v679
    %v681 = vpop.f32.mrb[0].mxu0
    %v682 = vadd.f32 %v155, %v681
    %683 = vdwg.mxu0
    %684 = vmatprep.subr.bf16.mxu0 %v422
    %685 = vmatpush1.bf16.msra.mxu0 %v421
    %686 = vmatprep.subr.bf16.mxu0 %v430
    %687 = vmatpush1.bf16.msra.mxu0 %v429
    %688 = vmatprep.subr.bf16.mxu0 %v438
    %689 = vmatpush1.bf16.msra.mxu0 %v437
    %690 = vmatprep.subr.bf16.mxu0 %v446
    %691 = vmatpush1.bf16.msra.mxu0 %v445
    %692 = vmatprep.subr.bf16.mxu0 %v454
    %693 = vmatpush1.bf16.msra.mxu0 %v453
    %694 = vmatprep.subr.bf16.mxu0 %v462
    %695 = vmatpush1.bf16.msra.mxu0 %v461
    %696 = vmatprep.subr.bf16.mxu0 %v470
    %697 = vmatpush1.bf16.msra.mxu0 %v469
    %698 = vmatprep.subr.bf16.mxu0 %v478
    %699 = vmatpush1.bf16.msra.mxu0 %v477
    %700 = vmatprep.subr.bf16.mxu0 %v486
    %701 = vmatpush1.bf16.msra.mxu0 %v485
    %702 = vmatprep.subr.bf16.mxu0 %v590
    %703 = vmatpush1.bf16.msra.mxu0 %v587
    %704 = vmatprep.subr.bf16.mxu0 0
    %705 = vmatpush1.bf16.msra.mxu0 0
    %706 = vmatprep.subr.bf16.mxu0 0
    %707 = vmatpush1.bf16.msra.mxu0 0
    %708 = vmatprep.subr.bf16.mxu0 0
    %709 = vmatpush1.bf16.msra.mxu0 0
    %710 = vmatprep.subr.bf16.mxu0 0
    %711 = vmatpush1.bf16.msra.mxu0 0
    %712 = vmatprep.subr.bf16.mxu0 0
    %713 = vmatpush1.bf16.msra.mxu0 0
    %714 = vmatprep.subr.bf16.mxu0 0
    %715 = vmatpush1.bf16.msra.mxu0 0
    %716 = vmatprep.mubr.bf16.mxu0 %v571
    %717 = vmatmul.mubr.bf16.gmra.mrb[0].mxu0 %v186
    %v718 = vpop.f32.mrb[0].mxu0
    %v719 = vadd.f32 %v159, %v718
    %v720 = vpop.f32.mrb[0].mxu0
    %v721 = vadd.f32 %v163, %v720
    %v722 = vpop.f32.mrb[0].mxu0
    %v723 = vadd.f32 %v159, %v722
    %v724 = vpop.f32.mrb[0].mxu0
    %v725 = vadd.f32 %v163, %v724
    %726 = vdwg.mxu0
    %727 = vmatprep.subr.bf16.mxu0 %v424
    %728 = vmatpush1.bf16.msra.mxu0 %v423
    %729 = vmatprep.subr.bf16.mxu0 %v432
    %730 = vmatpush1.bf16.msra.mxu0 %v431
    %731 = vmatprep.subr.bf16.mxu0 %v440
    %732 = vmatpush1.bf16.msra.mxu0 %v439
    %733 = vmatprep.subr.bf16.mxu0 %v448
    %734 = vmatpush1.bf16.msra.mxu0 %v447
    %735 = vmatprep.subr.bf16.mxu0 %v456
    %736 = vmatpush1.bf16.msra.mxu0 %v455
    %737 = vmatprep.subr.bf16.mxu0 %v464
    %738 = vmatpush1.bf16.msra.mxu0 %v463
    %739 = vmatprep.subr.bf16.mxu0 %v472
    %740 = vmatpush1.bf16.msra.mxu0 %v471
    %741 = vmatprep.subr.bf16.mxu0 %v480
    %742 = vmatpush1.bf16.msra.mxu0 %v479
    %743 = vmatprep.subr.bf16.mxu0 %v488
    %744 = vmatpush1.bf16.msra.mxu0 %v487
    %745 = vmatprep.subr.bf16.mxu0 %v596
    %746 = vmatpush1.bf16.msra.mxu0 %v593
    %747 = vmatprep.subr.bf16.mxu0 0
    %748 = vmatpush1.bf16.msra.mxu0 0
    %749 = vmatprep.subr.bf16.mxu0 0
    %750 = vmatpush1.bf16.msra.mxu0 0
    %751 = vmatprep.subr.bf16.mxu0 0
    %752 = vmatpush1.bf16.msra.mxu0 0
    %753 = vmatprep.subr.bf16.mxu0 0
    %754 = vmatpush1.bf16.msra.mxu0 0
    %755 = vmatprep.subr.bf16.mxu0 0
    %756 = vmatpush1.bf16.msra.mxu0 0
    %757 = vmatprep.subr.bf16.mxu0 0
    %758 = vmatpush1.bf16.msra.mxu0 0
    %759 = vmatprep.mubr.bf16.mxu0 %v571
    %760 = vmatmul.mubr.bf16.gmra.mrb[0].mxu0 %v186
    %v761 = vpop.f32.mrb[0].mxu0
    %v762 = vadd.f32 %v167, %v761
    %v763 = vpop.f32.mrb[0].mxu0
    %v764 = vadd.f32 %v171, %v763
    %v765 = vpop.f32.mrb[0].mxu0
    %v766 = vadd.f32 %v167, %v765
    %v767 = vpop.f32.mrb[0].mxu0
    %v768 = vadd.f32 %v171, %v767
    %769 = vdwg.mxu0
    %v770 = vld [vmem:[#allocation7] sm:$0xff]
    %v771 = vld [vmem:[#allocation7 + $0x8] sm:$0xff]
    %v772 = vld [vmem:[#allocation7 + $0x10] sm:$0xff]
    %v773 = vld [vmem:[#allocation7 + $0x18] sm:$0xff]
    %v774 = vld [vmem:[#allocation7 + $0x20] sm:$0xff]
    %v775 = vld [vmem:[#allocation7 + $0x28] sm:$0xff]
    %v776 = vld [vmem:[#allocation7 + $0x30] sm:$0xff]
    %v777 = vld [vmem:[#allocation7 + $0x38] sm:$0xff]
    %v778 = vld [vmem:[#allocation7 + $0x40] sm:$0xff]
    %v779 = vld [vmem:[#allocation7 + $0x48] sm:$0xff]
    %v780 = vld [vmem:[#allocation7 + $0x50] sm:$0xff]
    %v781 = vld [vmem:[#allocation7 + $0x58] sm:$0xff]
    %v782 = vld [vmem:[#allocation7 + $0x60] sm:$0xff]
    %v783 = vld [vmem:[#allocation7 + $0x68] sm:$0xff]
    %v784 = vld [vmem:[#allocation7 + $0x70] sm:$0xff]
    %v785 = vld [vmem:[#allocation7 + $0x78] sm:$0xff]
    %v786 = vld [vmem:[#allocation7 + $0x80] sm:$0xff]
    %v787 = vld [vmem:[#allocation7 + $0x88] sm:$0xff]
    %v788 = vld [vmem:[#allocation7 + $0x90] sm:$0xff]
    %v789 = vld [vmem:[#allocation7 + $0x98] sm:$0xff]
    %v790 = vld [vmem:[#allocation7 + $0xa0] sm:$0xff]
    %v791 = vld [vmem:[#allocation7 + $0xa8] sm:$0xff]
    %v792 = vld [vmem:[#allocation7 + $0xb0] sm:$0xff]
    %v793 = vld [vmem:[#allocation7 + $0xb8] sm:$0xff]
    %v794 = vld [vmem:[#allocation7 + $0xc0] sm:$0xff]
    %v795 = vld [vmem:[#allocation7 + $0xc8] sm:$0xff]
    %v796 = vld [vmem:[#allocation7 + $0xd0] sm:$0xff]
    %v797 = vld [vmem:[#allocation7 + $0xd8] sm:$0xff]
    %v798 = vld [vmem:[#allocation7 + $0xe0] sm:$0xff]
    %v799 = vld [vmem:[#allocation7 + $0xe8] sm:$0xff]
    %v800 = vld [vmem:[#allocation7 + $0xf0] sm:$0xff]
    %v801 = vld [vmem:[#allocation7 + $0xf8] sm:$0xff]
    %v802 = vld [vmem:[#allocation7 + $0x100] sm:$0xff]
    %v803 = vld [vmem:[#allocation7 + $0x108] sm:$0xff]
    %v804 = vld [vmem:[#allocation7 + $0x110] sm:$0xff]
    %v805 = vld [vmem:[#allocation7 + $0x118] sm:$0xff]
    %v806 = vld [vmem:[#allocation7 + $0x120] sm:$0xff]
    %v807 = vld [vmem:[#allocation7 + $0x128] sm:$0xff]
    %v808 = vld [vmem:[#allocation7 + $0x130] sm:$0xff]
    %v809 = vld [vmem:[#allocation7 + $0x138] sm:$0xff]
    %v810 = vld [vmem:[#allocation7 + $0x140] sm:$0xff]
    %v811 = vld [vmem:[#allocation7 + $0x148] sm:$0xff]
    %v812 = vld [vmem:[#allocation7 + $0x150] sm:$0xff]
    %v813 = vld [vmem:[#allocation7 + $0x158] sm:$0xff]
    %v814 = vld [vmem:[#allocation7 + $0x160] sm:$0xff]
    %v815 = vld [vmem:[#allocation7 + $0x168] sm:$0xff]
    %v816 = vld [vmem:[#allocation7 + $0x170] sm:$0xff]
    %v817 = vld [vmem:[#allocation7 + $0x178] sm:$0xff]
    %v818 = vld [vmem:[#allocation7 + $0x180] sm:$0xff]
    %v819 = vld [vmem:[#allocation7 + $0x188] sm:$0xff]
    %v820 = vld [vmem:[#allocation7 + $0x190] sm:$0xff]
    %v821 = vld [vmem:[#allocation7 + $0x198] sm:$0xff]
    %v822 = vld [vmem:[#allocation7 + $0x1a0] sm:$0xff]
    %v823 = vld [vmem:[#allocation7 + $0x1a8] sm:$0xff]
    %v824 = vld [vmem:[#allocation7 + $0x1b0] sm:$0xff]
    %v825 = vld [vmem:[#allocation7 + $0x1b8] sm:$0xff]
    %v826 = vld [vmem:[#allocation7 + $0x1c0] sm:$0xff]
    %v827 = vld [vmem:[#allocation7 + $0x1c8] sm:$0xff]
    %v828 = vld [vmem:[#allocation7 + $0x1d0] sm:$0xff]
    %v829 = vld [vmem:[#allocation7 + $0x1d8] sm:$0xff]
    %v830 = vld [vmem:[#allocation7 + $0x1e0] sm:$0xff]
    %v831 = vld [vmem:[#allocation7 + $0x1e8] sm:$0xff]
    %v832 = vld [vmem:[#allocation7 + $0x1f0] sm:$0xff]
    %v833 = vld [vmem:[#allocation7 + $0x1f8] sm:$0xff]
    %v834 = vld [vmem:[#allocation7 + $0x200] sm:$0xff]
    %v835 = vld [vmem:[#allocation7 + $0x208] sm:$0xff]
    %v836 = vld [vmem:[#allocation7 + $0x210] sm:$0xff]
    %v837 = vld [vmem:[#allocation7 + $0x218] sm:$0xff]
    %v838 = vld [vmem:[#allocation7 + $0x220] sm:$0xff]
    %v839 = vld [vmem:[#allocation7 + $0x228] sm:$0xff]
    %v840 = vld [vmem:[#allocation7 + $0x230] sm:$0xff]
    %v841 = vld [vmem:[#allocation7 + $0x238] sm:$0xff]
    %v842 = vld [vmem:[#allocation7 + $0x240] sm:$0xff]
    %v843 = vld [vmem:[#allocation7 + $0x248] sm:$0xff]
    %v844 = vld [vmem:[#allocation7 + $0x250] sm:$0xff]
    %v845 = vld [vmem:[#allocation7 + $0x258] sm:$0xff]
    %v846 = vld [vmem:[#allocation7 + $0x260] sm:$0xff]
    %v847 = vld [vmem:[#allocation7 + $0x268] sm:$0xff]
    %v848 = vld [vmem:[#allocation7 + $0x270] sm:$0xff]
    %v849 = vld [vmem:[#allocation7 + $0x278] sm:$0xff]
    %v850 = vld [vmem:[#allocation7 + $0x280] sm:$0xff]
    %v851 = vld [vmem:[#allocation7 + $0x288] sm:$0xff]
    %v852 = vld [vmem:[#allocation7 + $0x290] sm:$0xff]
    %v853 = vld [vmem:[#allocation7 + $0x298] sm:$0xff]
    %v854 = vld [vmem:[#allocation7 + $0x2a0] sm:$0xff]
    %v855 = vld [vmem:[#allocation7 + $0x2a8] sm:$0xff]
    %v856 = vld [vmem:[#allocation7 + $0x2b0] sm:$0xff]
    %v857 = vld [vmem:[#allocation7 + $0x2b8] sm:$0xff]
    %v858 = vld [vmem:[#allocation7 + $0x2c0] sm:$0xff]
    %v859 = vld [vmem:[#allocation7 + $0x2c8] sm:$0xff]
    %v860 = vld [vmem:[#allocation7 + $0x2d0] sm:$0xff]
    %v861 = vld [vmem:[#allocation7 + $0x2d8] sm:$0xff]
    %v862 = vld [vmem:[#allocation7 + $0x2e0] sm:$0xff]
    %v863 = vld [vmem:[#allocation7 + $0x2e8] sm:$0xff]
    %v864 = vld [vmem:[#allocation7 + $0x2f0] sm:$0xff]
    %v865 = vld [vmem:[#allocation7 + $0x2f8] sm:$0xff]
    %v866 = vld [vmem:[#allocation7 + $0x300] sm:$0xff]
    %v867 = vld [vmem:[#allocation7 + $0x308] sm:$0xff]
    %v868 = vld [vmem:[#allocation7 + $0x310] sm:$0xff]
    %v869 = vld [vmem:[#allocation7 + $0x318] sm:$0xff]
    %v870 = vld [vmem:[#allocation7 + $0x320] sm:$0xff]
    %v871 = vld [vmem:[#allocation7 + $0x328] sm:$0xff]
    %v872 = vld [vmem:[#allocation7 + $0x330] sm:$0xff]
    %v873 = vld [vmem:[#allocation7 + $0x338] sm:$0xff]
    %v874 = vld [vmem:[#allocation7 + $0x340] sm:$0xff]
    %v875 = vld [vmem:[#allocation7 + $0x348] sm:$0xff]
    %v876 = vld [vmem:[#allocation7 + $0x350] sm:$0xff]
    %v877 = vld [vmem:[#allocation7 + $0x358] sm:$0xff]
    %v878 = vld [vmem:[#allocation7 + $0x360] sm:$0xff]
    %v879 = vld [vmem:[#allocation7 + $0x368] sm:$0xff]
    %v880 = vld [vmem:[#allocation7 + $0x370] sm:$0xff]
    %v881 = vld [vmem:[#allocation7 + $0x378] sm:$0xff]
    %v882 = vld [vmem:[#allocation7 + $0x380] sm:$0xff]
    %v883 = vld [vmem:[#allocation7 + $0x388] sm:$0xff]
    %v884 = vld [vmem:[#allocation7 + $0x390] sm:$0xff]
    %v885 = vld [vmem:[#allocation7 + $0x398] sm:$0xff]
    %v886 = vld [vmem:[#allocation7 + $0x3a0] sm:$0xff]
    %v887 = vld [vmem:[#allocation7 + $0x3a8] sm:$0xff]
    %v888 = vld [vmem:[#allocation7 + $0x3b0] sm:$0xff]
    %v889 = vld [vmem:[#allocation7 + $0x3b8] sm:$0xff]
    %v890 = vld [vmem:[#allocation7 + $0x3c0] sm:$0xff]
    %v891 = vld [vmem:[#allocation7 + $0x3c8] sm:$0xff]
    %v892 = vld [vmem:[#allocation7 + $0x3d0] sm:$0xff]
    %v893 = vld [vmem:[#allocation7 + $0x3d8] sm:$0xff]
    %v894 = vld [vmem:[#allocation7 + $0x3e0] sm:$0xff]
    %v895 = vld [vmem:[#allocation7 + $0x3e8] sm:$0xff]
    %v896 = vld [vmem:[#allocation7 + $0x3f0] sm:$0xff]
    %v897 = vld [vmem:[#allocation7 + $0x3f8] sm:$0xff]
    %v898 = vmul.f32 %v633, 0.5
    %v899 = vmul.f32 %v635, 0.5
    %v900 = vtanh.pop %v898
    %v901 = vtanh.pop %v899
    %v902 = vmul.f32 %v900, 0.5
    %v903 = vmul.f32 %v901, 0.5
    %v904 = vadd.f32 %v902, 0.5
    %v905 = vadd.f32 %v903, 0.5
    %v906 = vtanh.pop %v719
    %v907 = vtanh.pop %v721
    %v908 = vmul.f32 %v762, 0.5
    %v909 = vmul.f32 %v764, 0.5
    %v910 = vtanh.pop %v908
    %v911 = vtanh.pop %v909
    %v912 = vmul.f32 %v910, 0.5
    %v913 = vmul.f32 %v911, 0.5
    %v914 = vadd.f32 %v912, 0.5
    %v915 = vadd.f32 %v913, 0.5
    %v916 = vmul.f32 %v904, %v906
    %v917 = vmul.f32 %v905, %v907
    %v918 = vtanh.pop %v916
    %v919 = vtanh.pop %v917
    %v920 = vmul.f32 %v914, %v918
    %v921 = vmul.f32 %v915, %v919
    %v922 = vpack.c.bf16 %v920, %v920
    %v923 = vpack.c.bf16 %v921, %v921
    %v1052 = vunpack.c.l.b16 %v770
    %v1053 = vunpack.c.h.b16 %v770
    %v1054 = vunpack.c.l.b16 %v771
    %v1055 = vunpack.c.h.b16 %v771
    %v1056 = vunpack.c.l.b16 %v772
    %v1057 = vunpack.c.h.b16 %v772
    %v1058 = vunpack.c.l.b16 %v773
    %v1059 = vunpack.c.h.b16 %v773
    %v1060 = vunpack.c.l.b16 %v774
    %v1061 = vunpack.c.h.b16 %v774
    %v1062 = vunpack.c.l.b16 %v775
    %v1063 = vunpack.c.h.b16 %v775
    %v1064 = vunpack.c.l.b16 %v776
    %v1065 = vunpack.c.h.b16 %v776
    %v1066 = vunpack.c.l.b16 %v777
    %v1067 = vunpack.c.h.b16 %v777
    %v1068 = vunpack.c.l.b16 %v778
    %v1069 = vunpack.c.h.b16 %v778
    %v1070 = vunpack.c.l.b16 %v779
    %v1071 = vunpack.c.h.b16 %v779
    %v1072 = vunpack.c.l.b16 %v780
    %v1073 = vunpack.c.h.b16 %v780
    %v1074 = vunpack.c.l.b16 %v781
    %v1075 = vunpack.c.h.b16 %v781
    %v1076 = vunpack.c.l.b16 %v782
    %v1077 = vunpack.c.h.b16 %v782
    %v1078 = vunpack.c.l.b16 %v783
    %v1079 = vunpack.c.h.b16 %v783
    %v1080 = vunpack.c.l.b16 %v784
    %v1081 = vunpack.c.h.b16 %v784
    %v1082 = vunpack.c.l.b16 %v785
    %v1083 = vunpack.c.h.b16 %v785
    %v1084 = vunpack.c.l.b16 %v786
    %v1085 = vunpack.c.h.b16 %v786
    %v1086 = vunpack.c.l.b16 %v787
    %v1087 = vunpack.c.h.b16 %v787
    %v1088 = vunpack.c.l.b16 %v788
    %v1089 = vunpack.c.h.b16 %v788
    %v1090 = vunpack.c.l.b16 %v789
    %v1091 = vunpack.c.h.b16 %v789
    %v1092 = vunpack.c.l.b16 %v790
    %v1093 = vunpack.c.h.b16 %v790
    %v1094 = vunpack.c.l.b16 %v791
    %v1095 = vunpack.c.h.b16 %v791
    %v1096 = vunpack.c.l.b16 %v792
    %v1097 = vunpack.c.h.b16 %v792
    %v1098 = vunpack.c.l.b16 %v793
    %v1099 = vunpack.c.h.b16 %v793
    %v1100 = vunpack.c.l.b16 %v794
    %v1101 = vunpack.c.h.b16 %v794
    %v1102 = vunpack.c.l.b16 %v795
    %v1103 = vunpack.c.h.b16 %v795
    %v1104 = vunpack.c.l.b16 %v796
    %v1105 = vunpack.c.h.b16 %v796
    %v1106 = vunpack.c.l.b16 %v797
    %v1107 = vunpack.c.h.b16 %v797
    %v1108 = vunpack.c.l.b16 %v798
    %v1109 = vunpack.c.h.b16 %v798
    %v1110 = vunpack.c.l.b16 %v799
    %v1111 = vunpack.c.h.b16 %v799
    %v1112 = vunpack.c.l.b16 %v800
    %v1113 = vunpack.c.h.b16 %v800
    %v1114 = vunpack.c.l.b16 %v801
    %v1115 = vunpack.c.h.b16 %v801
    %v1116 = vunpack.c.l.b16 %v802
    %v1117 = vunpack.c.h.b16 %v802
    %v1118 = vunpack.c.l.b16 %v803
    %v1119 = vunpack.c.h.b16 %v803
    %v1120 = vunpack.c.l.b16 %v804
    %v1121 = vunpack.c.h.b16 %v804
    %v1122 = vunpack.c.l.b16 %v805
    %v1123 = vunpack.c.h.b16 %v805
    %v1124 = vunpack.c.l.b16 %v806
    %v1125 = vunpack.c.h.b16 %v806
    %v1126 = vunpack.c.l.b16 %v807
    %v1127 = vunpack.c.h.b16 %v807
    %v1128 = vunpack.c.l.b16 %v808
    %v1129 = vunpack.c.h.b16 %v808
    %v1130 = vunpack.c.l.b16 %v809
    %v1131 = vunpack.c.h.b16 %v809
    %v1132 = vunpack.c.l.b16 %v810
    %v1133 = vunpack.c.h.b16 %v810
    %v1134 = vunpack.c.l.b16 %v811
    %v1135 = vunpack.c.h.b16 %v811
    %v1136 = vunpack.c.l.b16 %v812
    %v1137 = vunpack.c.h.b16 %v812
    %v1138 = vunpack.c.l.b16 %v813
    %v1139 = vunpack.c.h.b16 %v813
    %v1140 = vunpack.c.l.b16 %v814
    %v1141 = vunpack.c.h.b16 %v814
    %v1142 = vunpack.c.l.b16 %v815
    %v1143 = vunpack.c.h.b16 %v815
    %v1144 = vunpack.c.l.b16 %v816
    %v1145 = vunpack.c.h.b16 %v816
    %v1146 = vunpack.c.l.b16 %v817
    %v1147 = vunpack.c.h.b16 %v817
    %v1148 = vunpack.c.l.b16 %v818
    %v1149 = vunpack.c.h.b16 %v818
    %v1150 = vunpack.c.l.b16 %v819
    %v1151 = vunpack.c.h.b16 %v819
    %v1152 = vunpack.c.l.b16 %v820
    %v1153 = vunpack.c.h.b16 %v820
    %v1154 = vunpack.c.l.b16 %v821
    %v1155 = vunpack.c.h.b16 %v821
    %v1156 = vunpack.c.l.b16 %v822
    %v1157 = vunpack.c.h.b16 %v822
    %v1158 = vunpack.c.l.b16 %v823
    %v1159 = vunpack.c.h.b16 %v823
    %v1160 = vunpack.c.l.b16 %v824
    %v1161 = vunpack.c.h.b16 %v824
    %v1162 = vunpack.c.l.b16 %v825
    %v1163 = vunpack.c.h.b16 %v825
    %v1164 = vunpack.c.l.b16 %v826
    %v1165 = vunpack.c.h.b16 %v826
    %v1166 = vunpack.c.l.b16 %v827
    %v1167 = vunpack.c.h.b16 %v827
    %v1168 = vunpack.c.l.b16 %v828
    %v1169 = vunpack.c.h.b16 %v828
    %v1170 = vunpack.c.l.b16 %v829
    %v1171 = vunpack.c.h.b16 %v829
    %v1172 = vunpack.c.l.b16 %v830
    %v1173 = vunpack.c.h.b16 %v830
    %v1174 = vunpack.c.l.b16 %v831
    %v1175 = vunpack.c.h.b16 %v831
    %v1176 = vunpack.c.l.b16 %v832
    %v1177 = vunpack.c.h.b16 %v832
    %v1178 = vunpack.c.l.b16 %v833
    %v1179 = vunpack.c.h.b16 %v833
    %v1180 = vunpack.c.l.b16 %v834
    %v1181 = vunpack.c.h.b16 %v834
    %v1182 = vunpack.c.l.b16 %v835
    %v1183 = vunpack.c.h.b16 %v835
    %v1184 = vunpack.c.l.b16 %v836
    %v1185 = vunpack.c.h.b16 %v836
    %v1186 = vunpack.c.l.b16 %v837
    %v1187 = vunpack.c.h.b16 %v837
    %v1188 = vunpack.c.l.b16 %v838
    %v1189 = vunpack.c.h.b16 %v838
    %v1190 = vunpack.c.l.b16 %v839
    %v1191 = vunpack.c.h.b16 %v839
    %v1192 = vunpack.c.l.b16 %v840
    %v1193 = vunpack.c.h.b16 %v840
    %v1194 = vunpack.c.l.b16 %v841
    %v1195 = vunpack.c.h.b16 %v841
    %v1196 = vunpack.c.l.b16 %v842
    %v1197 = vunpack.c.h.b16 %v842
    %v1198 = vunpack.c.l.b16 %v843
    %v1199 = vunpack.c.h.b16 %v843
    %v1200 = vunpack.c.l.b16 %v844
    %v1201 = vunpack.c.h.b16 %v844
    %v1202 = vunpack.c.l.b16 %v845
    %v1203 = vunpack.c.h.b16 %v845
    %v1204 = vunpack.c.l.b16 %v846
    %v1205 = vunpack.c.h.b16 %v846
    %v1206 = vunpack.c.l.b16 %v847
    %v1207 = vunpack.c.h.b16 %v847
    %v1208 = vunpack.c.l.b16 %v848
    %v1209 = vunpack.c.h.b16 %v848
    %v1210 = vunpack.c.l.b16 %v849
    %v1211 = vunpack.c.h.b16 %v849
    %v1212 = vunpack.c.l.b16 %v850
    %v1213 = vunpack.c.h.b16 %v850
    %v1214 = vunpack.c.l.b16 %v851
    %v1215 = vunpack.c.h.b16 %v851
    %v1216 = vunpack.c.l.b16 %v852
    %v1217 = vunpack.c.h.b16 %v852
    %v1218 = vunpack.c.l.b16 %v853
    %v1219 = vunpack.c.h.b16 %v853
    %v1220 = vunpack.c.l.b16 %v854
    %v1221 = vunpack.c.h.b16 %v854
    %v1222 = vunpack.c.l.b16 %v855
    %v1223 = vunpack.c.h.b16 %v855
    %v1224 = vunpack.c.l.b16 %v856
    %v1225 = vunpack.c.h.b16 %v856
    %v1226 = vunpack.c.l.b16 %v857
    %v1227 = vunpack.c.h.b16 %v857
    %v1228 = vunpack.c.l.b16 %v858
    %v1229 = vunpack.c.h.b16 %v858
    %v1230 = vunpack.c.l.b16 %v859
    %v1231 = vunpack.c.h.b16 %v859
    %v1232 = vunpack.c.l.b16 %v860
    %v1233 = vunpack.c.h.b16 %v860
    %v1234 = vunpack.c.l.b16 %v861
    %v1235 = vunpack.c.h.b16 %v861
    %v1236 = vunpack.c.l.b16 %v862
    %v1237 = vunpack.c.h.b16 %v862
    %v1238 = vunpack.c.l.b16 %v863
    %v1239 = vunpack.c.h.b16 %v863
    %v1240 = vunpack.c.l.b16 %v864
    %v1241 = vunpack.c.h.b16 %v864
    %v1242 = vunpack.c.l.b16 %v865
    %v1243 = vunpack.c.h.b16 %v865
    %v1244 = vunpack.c.l.b16 %v866
    %v1245 = vunpack.c.h.b16 %v866
    %v1246 = vunpack.c.l.b16 %v867
    %v1247 = vunpack.c.h.b16 %v867
    %v1248 = vunpack.c.l.b16 %v868
    %v1249 = vunpack.c.h.b16 %v868
    %v1250 = vunpack.c.l.b16 %v869
    %v1251 = vunpack.c.h.b16 %v869
    %v1252 = vunpack.c.l.b16 %v870
    %v1253 = vunpack.c.h.b16 %v870
    %v1254 = vunpack.c.l.b16 %v871
    %v1255 = vunpack.c.h.b16 %v871
    %v1256 = vunpack.c.l.b16 %v872
    %v1257 = vunpack.c.h.b16 %v872
    %v1258 = vunpack.c.l.b16 %v873
    %v1259 = vunpack.c.h.b16 %v873
    %v1260 = vunpack.c.l.b16 %v874
    %v1261 = vunpack.c.h.b16 %v874
    %v1262 = vunpack.c.l.b16 %v875
    %v1263 = vunpack.c.h.b16 %v875
    %v1264 = vunpack.c.l.b16 %v876
    %v1265 = vunpack.c.h.b16 %v876
    %v1266 = vunpack.c.l.b16 %v877
    %v1267 = vunpack.c.h.b16 %v877
    %v1268 = vunpack.c.l.b16 %v878
    %v1269 = vunpack.c.h.b16 %v878
    %v1270 = vunpack.c.l.b16 %v879
    %v1271 = vunpack.c.h.b16 %v879
    %v1272 = vunpack.c.l.b16 %v880
    %v1273 = vunpack.c.h.b16 %v880
    %v1274 = vunpack.c.l.b16 %v881
    %v1275 = vunpack.c.h.b16 %v881
    %v1276 = vunpack.c.l.b16 %v882
    %v1277 = vunpack.c.h.b16 %v882
    %v1278 = vunpack.c.l.b16 %v883
    %v1279 = vunpack.c.h.b16 %v883
    %v1280 = vunpack.c.l.b16 %v884
    %v1281 = vunpack.c.h.b16 %v884
    %v1282 = vunpack.c.l.b16 %v885
    %v1283 = vunpack.c.h.b16 %v885
    %v1284 = vunpack.c.l.b16 %v886
    %v1285 = vunpack.c.h.b16 %v886
    %v1286 = vunpack.c.l.b16 %v887
    %v1287 = vunpack.c.h.b16 %v887
    %v1288 = vunpack.c.l.b16 %v888
    %v1289 = vunpack.c.h.b16 %v888
    %v1290 = vunpack.c.l.b16 %v889
    %v1291 = vunpack.c.h.b16 %v889
    %v1292 = vunpack.c.l.b16 %v890
    %v1293 = vunpack.c.h.b16 %v890
    %v1294 = vunpack.c.l.b16 %v891
    %v1295 = vunpack.c.h.b16 %v891
    %v1296 = vunpack.c.l.b16 %v892
    %v1297 = vunpack.c.h.b16 %v892
    %v1298 = vunpack.c.l.b16 %v893
    %v1299 = vunpack.c.h.b16 %v893
    %v1300 = vunpack.c.l.b16 %v894
    %v1301 = vunpack.c.h.b16 %v894
    %v1302 = vunpack.c.l.b16 %v895
    %v1303 = vunpack.c.h.b16 %v895
    %v1304 = vunpack.c.l.b16 %v896
    %v1305 = vunpack.c.h.b16 %v896
    %v1306 = vunpack.c.l.b16 %v897
    %v1307 = vunpack.c.h.b16 %v897
    %v1308 = vpack.c.b16 %v1060, %v1052
    %v1309 = vpack.c.b16 %v1061, %v1053
    %v1310 = vpack.c.b16 %v1062, %v1054
    %v1311 = vpack.c.b16 %v1063, %v1055
    %v1312 = vpack.c.b16 %v1064, %v1056
    %v1313 = vpack.c.b16 %v1065, %v1057
    %v1314 = vpack.c.b16 %v1066, %v1058
    %v1315 = vpack.c.b16 %v1067, %v1059
    %v1316 = vpack.c.b16 %v1076, %v1068
    %v1317 = vpack.c.b16 %v1077, %v1069
    %v1318 = vpack.c.b16 %v1078, %v1070
    %v1319 = vpack.c.b16 %v1079, %v1071
    %v1320 = vpack.c.b16 %v1080, %v1072
    %v1321 = vpack.c.b16 %v1081, %v1073
    %v1322 = vpack.c.b16 %v1082, %v1074
    %v1323 = vpack.c.b16 %v1083, %v1075
    %v1324 = vpack.c.b16 %v1092, %v1084
    %v1325 = vpack.c.b16 %v1093, %v1085
    %v1326 = vpack.c.b16 %v1094, %v1086
    %v1327 = vpack.c.b16 %v1095, %v1087
    %v1328 = vpack.c.b16 %v1096, %v1088
    %v1329 = vpack.c.b16 %v1097, %v1089
    %v1330 = vpack.c.b16 %v1098, %v1090
    %v1331 = vpack.c.b16 %v1099, %v1091
    %v1332 = vpack.c.b16 %v1108, %v1100
    %v1333 = vpack.c.b16 %v1109, %v1101
    %v1334 = vpack.c.b16 %v1110, %v1102
    %v1335 = vpack.c.b16 %v1111, %v1103
    %v1336 = vpack.c.b16 %v1112, %v1104
    %v1337 = vpack.c.b16 %v1113, %v1105
    %v1338 = vpack.c.b16 %v1114, %v1106
    %v1339 = vpack.c.b16 %v1115, %v1107
    %v1340 = vpack.c.b16 %v1124, %v1116
    %v1341 = vpack.c.b16 %v1125, %v1117
    %v1342 = vpack.c.b16 %v1126, %v1118
    %v1343 = vpack.c.b16 %v1127, %v1119
    %v1344 = vpack.c.b16 %v1128, %v1120
    %v1345 = vpack.c.b16 %v1129, %v1121
    %v1346 = vpack.c.b16 %v1130, %v1122
    %v1347 = vpack.c.b16 %v1131, %v1123
    %v1348 = vpack.c.b16 %v1140, %v1132
    %v1349 = vpack.c.b16 %v1141, %v1133
    %v1350 = vpack.c.b16 %v1142, %v1134
    %v1351 = vpack.c.b16 %v1143, %v1135
    %v1352 = vpack.c.b16 %v1144, %v1136
    %v1353 = vpack.c.b16 %v1145, %v1137
    %v1354 = vpack.c.b16 %v1146, %v1138
    %v1355 = vpack.c.b16 %v1147, %v1139
    %v1356 = vpack.c.b16 %v1156, %v1148
    %v1357 = vpack.c.b16 %v1157, %v1149
    %v1358 = vpack.c.b16 %v1158, %v1150
    %v1359 = vpack.c.b16 %v1159, %v1151
    %v1360 = vpack.c.b16 %v1160, %v1152
    %v1361 = vpack.c.b16 %v1161, %v1153
    %v1362 = vpack.c.b16 %v1162, %v1154
    %v1363 = vpack.c.b16 %v1163, %v1155
    %v1364 = vpack.c.b16 %v1172, %v1164
    %v1365 = vpack.c.b16 %v1173, %v1165
    %v1366 = vpack.c.b16 %v1174, %v1166
    %v1367 = vpack.c.b16 %v1175, %v1167
    %v1368 = vpack.c.b16 %v1176, %v1168
    %v1369 = vpack.c.b16 %v1177, %v1169
    %v1370 = vpack.c.b16 %v1178, %v1170
    %v1371 = vpack.c.b16 %v1179, %v1171
    %v1372 = vpack.c.b16 %v1188, %v1180
    %v1373 = vpack.c.b16 %v1189, %v1181
    %v1374 = vpack.c.b16 %v1190, %v1182
    %v1375 = vpack.c.b16 %v1191, %v1183
    %v1376 = vpack.c.b16 %v1192, %v1184
    %v1377 = vpack.c.b16 %v1193, %v1185
    %v1378 = vpack.c.b16 %v1194, %v1186
    %v1379 = vpack.c.b16 %v1195, %v1187
    %v1380 = vpack.c.b16 %v1204, %v1196
    %v1381 = vpack.c.b16 %v1205, %v1197
    %v1382 = vpack.c.b16 %v1206, %v1198
    %v1383 = vpack.c.b16 %v1207, %v1199
    %v1384 = vpack.c.b16 %v1208, %v1200
    %v1385 = vpack.c.b16 %v1209, %v1201
    %v1386 = vpack.c.b16 %v1210, %v1202
    %v1387 = vpack.c.b16 %v1211, %v1203
    %v1388 = vpack.c.b16 %v1220, %v1212
    %v1389 = vpack.c.b16 %v1221, %v1213
    %v1390 = vpack.c.b16 %v1222, %v1214
    %v1391 = vpack.c.b16 %v1223, %v1215
    %v1392 = vpack.c.b16 %v1224, %v1216
    %v1393 = vpack.c.b16 %v1225, %v1217
    %v1394 = vpack.c.b16 %v1226, %v1218
    %v1395 = vpack.c.b16 %v1227, %v1219
    %v1396 = vpack.c.b16 %v1236, %v1228
    %v1397 = vpack.c.b16 %v1237, %v1229
    %v1398 = vpack.c.b16 %v1238, %v1230
    %v1399 = vpack.c.b16 %v1239, %v1231
    %v1400 = vpack.c.b16 %v1240, %v1232
    %v1401 = vpack.c.b16 %v1241, %v1233
    %v1402 = vpack.c.b16 %v1242, %v1234
    %v1403 = vpack.c.b16 %v1243, %v1235
    %v1404 = vpack.c.b16 %v1252, %v1244
    %v1405 = vpack.c.b16 %v1253, %v1245
    %v1406 = vpack.c.b16 %v1254, %v1246
    %v1407 = vpack.c.b16 %v1255, %v1247
    %v1408 = vpack.c.b16 %v1256, %v1248
    %v1409 = vpack.c.b16 %v1257, %v1249
    %v1410 = vpack.c.b16 %v1258, %v1250
    %v1411 = vpack.c.b16 %v1259, %v1251
    %v1412 = vpack.c.b16 %v1268, %v1260
    %v1413 = vpack.c.b16 %v1269, %v1261
    %v1414 = vpack.c.b16 %v1270, %v1262
    %v1415 = vpack.c.b16 %v1271, %v1263
    %v1416 = vpack.c.b16 %v1272, %v1264
    %v1417 = vpack.c.b16 %v1273, %v1265
    %v1418 = vpack.c.b16 %v1274, %v1266
    %v1419 = vpack.c.b16 %v1275, %v1267
    %v1420 = vpack.c.b16 %v1284, %v1276
    %v1421 = vpack.c.b16 %v1285, %v1277
    %v1422 = vpack.c.b16 %v1286, %v1278
    %v1423 = vpack.c.b16 %v1287, %v1279
    %v1424 = vpack.c.b16 %v1288, %v1280
    %v1425 = vpack.c.b16 %v1289, %v1281
    %v1426 = vpack.c.b16 %v1290, %v1282
    %v1427 = vpack.c.b16 %v1291, %v1283
    %v1428 = vpack.c.b16 %v1300, %v1292
    %v1429 = vpack.c.b16 %v1301, %v1293
    %v1430 = vpack.c.b16 %v1302, %v1294
    %v1431 = vpack.c.b16 %v1303, %v1295
    %v1432 = vpack.c.b16 %v1304, %v1296
    %v1433 = vpack.c.b16 %v1305, %v1297
    %v1434 = vpack.c.b16 %v1306, %v1298
    %v1435 = vpack.c.b16 %v1307, %v1299
    %1564 = vmatprep.subr.bf16.mxu0 %v1309
    %1565 = vmatpush1.bf16.msra.mxu0 %v1308
    %1566 = vmatprep.subr.bf16.mxu0 %v1317
    %1567 = vmatpush1.bf16.msra.mxu0 %v1316
    %1568 = vmatprep.subr.bf16.mxu0 %v1325
    %1569 = vmatpush1.bf16.msra.mxu0 %v1324
    %1570 = vmatprep.subr.bf16.mxu0 %v1333
    %1571 = vmatpush1.bf16.msra.mxu0 %v1332
    %1572 = vmatprep.subr.bf16.mxu0 %v1341
    %1573 = vmatpush1.bf16.msra.mxu0 %v1340
    %1574 = vmatprep.subr.bf16.mxu0 %v1349
    %1575 = vmatpush1.bf16.msra.mxu0 %v1348
    %1576 = vmatprep.subr.bf16.mxu0 %v1357
    %1577 = vmatpush1.bf16.msra.mxu0 %v1356
    %1578 = vmatprep.subr.bf16.mxu0 %v1365
    %1579 = vmatpush1.bf16.msra.mxu0 %v1364
    %1580 = vmatprep.subr.bf16.mxu0 %v1373
    %1581 = vmatpush1.bf16.msra.mxu0 %v1372
    %1582 = vmatprep.subr.bf16.mxu0 %v1381
    %1583 = vmatpush1.bf16.msra.mxu0 %v1380
    %1584 = vmatprep.subr.bf16.mxu0 %v1389
    %1585 = vmatpush1.bf16.msra.mxu0 %v1388
    %1586 = vmatprep.subr.bf16.mxu0 %v1397
    %1587 = vmatpush1.bf16.msra.mxu0 %v1396
    %1588 = vmatprep.subr.bf16.mxu0 %v1405
    %1589 = vmatpush1.bf16.msra.mxu0 %v1404
    %1590 = vmatprep.subr.bf16.mxu0 %v1413
    %1591 = vmatpush1.bf16.msra.mxu0 %v1412
    %1592 = vmatprep.subr.bf16.mxu0 %v1421
    %1593 = vmatpush1.bf16.msra.mxu0 %v1420
    %1594 = vmatprep.subr.bf16.mxu0 %v1429
    %1595 = vmatpush1.bf16.msra.mxu0 %v1428
    %1596 = vmatprep.mubr.bf16.mxu0 %v923
    %1597 = vmatmul.mubr.bf16.gmra.mrb[0].mxu0 %v922
    %v1598 = vpop.f32.mrb[0].mxu0
    %v1599 = vadd.f32 0.0, %v1598
    %v1600 = vpop.f32.mrb[0].mxu0
    %v1601 = vadd.f32 0.0, %v1600
    %v1602 = vpop.f32.mrb[0].mxu0
    %v1603 = vpop.f32.mrb[0].mxu0
    %1604 = vdwg.mxu0
    %1605 = vmatprep.subr.bf16.mxu0 %v1311
    %1606 = vmatpush1.bf16.msra.mxu0 %v1310
    %1607 = vmatprep.subr.bf16.mxu0 %v1319
    %1608 = vmatpush1.bf16.msra.mxu0 %v1318
    %1609 = vmatprep.subr.bf16.mxu0 %v1327
    %1610 = vmatpush1.bf16.msra.mxu0 %v1326
    %1611 = vmatprep.subr.bf16.mxu0 %v1335
    %1612 = vmatpush1.bf16.msra.mxu0 %v1334
    %1613 = vmatprep.subr.bf16.mxu0 %v1343
    %1614 = vmatpush1.bf16.msra.mxu0 %v1342
    %1615 = vmatprep.subr.bf16.mxu0 %v1351
    %1616 = vmatpush1.bf16.msra.mxu0 %v1350
    %1617 = vmatprep.subr.bf16.mxu0 %v1359
    %1618 = vmatpush1.bf16.msra.mxu0 %v1358
    %1619 = vmatprep.subr.bf16.mxu0 %v1367
    %1620 = vmatpush1.bf16.msra.mxu0 %v1366
    %1621 = vmatprep.subr.bf16.mxu0 %v1375
    %1622 = vmatpush1.bf16.msra.mxu0 %v1374
    %1623 = vmatprep.subr.bf16.mxu0 %v1383
    %1624 = vmatpush1.bf16.msra.mxu0 %v1382
    %1625 = vmatprep.subr.bf16.mxu0 %v1391
    %1626 = vmatpush1.bf16.msra.mxu0 %v1390
    %1627 = vmatprep.subr.bf16.mxu0 %v1399
    %1628 = vmatpush1.bf16.msra.mxu0 %v1398
    %1629 = vmatprep.subr.bf16.mxu0 %v1407
    %1630 = vmatpush1.bf16.msra.mxu0 %v1406
    %1631 = vmatprep.subr.bf16.mxu0 %v1415
    %1632 = vmatpush1.bf16.msra.mxu0 %v1414
    %1633 = vmatprep.subr.bf16.mxu0 %v1423
    %1634 = vmatpush1.bf16.msra.mxu0 %v1422
    %1635 = vmatprep.subr.bf16.mxu0 %v1431
    %1636 = vmatpush1.bf16.msra.mxu0 %v1430
    %1637 = vmatprep.mubr.bf16.mxu0 %v923
    %1638 = vmatmul.mubr.bf16.gmra.mrb[0].mxu0 %v922
    %v1639 = vpop.f32.mrb[0].mxu0
    %v1640 = vadd.f32 0.0, %v1639
    %v1641 = vpop.f32.mrb[0].mxu0
    %v1642 = vadd.f32 0.0, %v1641
    %v1643 = vpop.f32.mrb[0].mxu0
    %v1644 = vpop.f32.mrb[0].mxu0
    %1645 = vdwg.mxu0
    %1646 = vmatprep.subr.bf16.mxu0 %v1313
    %1647 = vmatpush1.bf16.msra.mxu0 %v1312
    %1648 = vmatprep.subr.bf16.mxu0 %v1321
    %1649 = vmatpush1.bf16.msra.mxu0 %v1320
    %1650 = vmatprep.subr.bf16.mxu0 %v1329
    %1651 = vmatpush1.bf16.msra.mxu0 %v1328
    %1652 = vmatprep.subr.bf16.mxu0 %v1337
    %1653 = vmatpush1.bf16.msra.mxu0 %v1336
    %1654 = vmatprep.subr.bf16.mxu0 %v1345
    %1655 = vmatpush1.bf16.msra.mxu0 %v1344
    %1656 = vmatprep.subr.bf16.mxu0 %v1353
    %1657 = vmatpush1.bf16.msra.mxu0 %v1352
    %1658 = vmatprep.subr.bf16.mxu0 %v1361
    %1659 = vmatpush1.bf16.msra.mxu0 %v1360
    %1660 = vmatprep.subr.bf16.mxu0 %v1369
    %1661 = vmatpush1.bf16.msra.mxu0 %v1368
    %1662 = vmatprep.subr.bf16.mxu0 %v1377
    %1663 = vmatpush1.bf16.msra.mxu0 %v1376
    %1664 = vmatprep.subr.bf16.mxu0 %v1385
    %1665 = vmatpush1.bf16.msra.mxu0 %v1384
    %1666 = vmatprep.subr.bf16.mxu0 %v1393
    %1667 = vmatpush1.bf16.msra.mxu0 %v1392
    %1668 = vmatprep.subr.bf16.mxu0 %v1401
    %1669 = vmatpush1.bf16.msra.mxu0 %v1400
    %1670 = vmatprep.subr.bf16.mxu0 %v1409
    %1671 = vmatpush1.bf16.msra.mxu0 %v1408
    %1672 = vmatprep.subr.bf16.mxu0 %v1417
    %1673 = vmatpush1.bf16.msra.mxu0 %v1416
    %1674 = vmatprep.subr.bf16.mxu0 %v1425
    %1675 = vmatpush1.bf16.msra.mxu0 %v1424
    %1676 = vmatprep.subr.bf16.mxu0 %v1433
    %1677 = vmatpush1.bf16.msra.mxu0 %v1432
    %1678 = vmatprep.mubr.bf16.mxu0 %v923
    %1679 = vmatmul.mubr.bf16.gmra.mrb[0].mxu0 %v922
    %v1680 = vpop.f32.mrb[0].mxu0
    %v1681 = vadd.f32 0.0, %v1680
    %v1682 = vpop.f32.mrb[0].mxu0
    %v1683 = vadd.f32 0.0, %v1682
    %v1684 = vpop.f32.mrb[0].mxu0
    %v1685 = vpop.f32.mrb[0].mxu0
    %1686 = vdwg.mxu0
    %1687 = vmatprep.subr.bf16.mxu0 %v1315
    %1688 = vmatpush1.bf16.msra.mxu0 %v1314
    %1689 = vmatprep.subr.bf16.mxu0 %v1323
    %1690 = vmatpush1.bf16.msra.mxu0 %v1322
    %1691 = vmatprep.subr.bf16.mxu0 %v1331
    %1692 = vmatpush1.bf16.msra.mxu0 %v1330
    %1693 = vmatprep.subr.bf16.mxu0 %v1339
    %1694 = vmatpush1.bf16.msra.mxu0 %v1338
    %1695 = vmatprep.subr.bf16.mxu0 %v1347
    %1696 = vmatpush1.bf16.msra.mxu0 %v1346
    %1697 = vmatprep.subr.bf16.mxu0 %v1355
    %1698 = vmatpush1.bf16.msra.mxu0 %v1354
    %1699 = vmatprep.subr.bf16.mxu0 %v1363
    %1700 = vmatpush1.bf16.msra.mxu0 %v1362
    %1701 = vmatprep.subr.bf16.mxu0 %v1371
    %1702 = vmatpush1.bf16.msra.mxu0 %v1370
    %1703 = vmatprep.subr.bf16.mxu0 %v1379
    %1704 = vmatpush1.bf16.msra.mxu0 %v1378
    %1705 = vmatprep.subr.bf16.mxu0 %v1387
    %1706 = vmatpush1.bf16.msra.mxu0 %v1386
    %1707 = vmatprep.subr.bf16.mxu0 %v1395
    %1708 = vmatpush1.bf16.msra.mxu0 %v1394
    %1709 = vmatprep.subr.bf16.mxu0 %v1403
    %1710 = vmatpush1.bf16.msra.mxu0 %v1402
    %1711 = vmatprep.subr.bf16.mxu0 %v1411
    %1712 = vmatpush1.bf16.msra.mxu0 %v1410
    %1713 = vmatprep.subr.bf16.mxu0 %v1419
    %1714 = vmatpush1.bf16.msra.mxu0 %v1418
    %1715 = vmatprep.subr.bf16.mxu0 %v1427
    %1716 = vmatpush1.bf16.msra.mxu0 %v1426
    %1717 = vmatprep.subr.bf16.mxu0 %v1435
    %1718 = vmatpush1.bf16.msra.mxu0 %v1434
    %1719 = vmatprep.mubr.bf16.mxu0 %v923
    %1720 = vmatmul.mubr.bf16.gmra.mrb[0].mxu0 %v922
    %v1721 = vpop.f32.mrb[0].mxu0
    %v1722 = vadd.f32 0.0, %v1721
    %v1723 = vpop.f32.mrb[0].mxu0
    %v1724 = vadd.f32 0.0, %v1723
    %v1725 = vpop.f32.mrb[0].mxu0
    %v1726 = vpop.f32.mrb[0].mxu0
    %1727 = vdwg.mxu0
    %v1736 = vrot.slane %v1599, 7
    %v1737 = vrot.slane %v1601, 7
    %v1738 = vrot.slane %v1640, 7
    %v1739 = vrot.slane %v1642, 7
    %v1740 = vrot.slane %v1681, 7
    %v1741 = vrot.slane %v1683, 7
    %v1742 = vrot.slane %v1722, 7
    %v1743 = vrot.slane %v1724, 7
    %v1752 = vadd.f32 %v633, %v1736
    %v1753 = vadd.f32 %v635, %v1737
    %v1754 = vadd.f32 %v676, %v1738
    %v1755 = vadd.f32 %v678, %v1739
    %v1756 = vadd.f32 %v719, %v1740
    %v1757 = vadd.f32 %v721, %v1741
    %v1758 = vadd.f32 %v762, %v1742
    %v1759 = vadd.f32 %v764, %v1743
    %v1760 = vmul.f32 %v1752, 0.5
    %v1761 = vmul.f32 %v1753, 0.5
    %v1762 = vtanh.pop %v1760
    %v1763 = vtanh.pop %v1761
    %v1764 = vmul.f32 %v1762, 0.5
    %v1765 = vmul.f32 %v1763, 0.5
    %v1766 = vadd.f32 %v1764, 0.5
    %v1767 = vadd.f32 %v1765, 0.5
    %v1768 = vtanh.pop %v1756
    %v1769 = vtanh.pop %v1757
    %v1770 = vmul.f32 %v1758, 0.5
    %v1771 = vmul.f32 %v1759, 0.5
    %v1772 = vtanh.pop %v1770
    %v1773 = vtanh.pop %v1771
    %v1774 = vmul.f32 %v1772, 0.5
    %v1775 = vmul.f32 %v1773, 0.5
    %v1776 = vadd.f32 %v1774, 0.5
    %v1777 = vadd.f32 %v1775, 0.5
    %v1778 = vmul.f32 %v1754, 0.5
    %v1779 = vmul.f32 %v1755, 0.5
    %v1780 = vtanh.pop %v1778
    %v1781 = vtanh.pop %v1779
    %v1782 = vmul.f32 %v1780, 0.5
    %v1783 = vmul.f32 %v1781, 0.5
    %v1784 = vadd.f32 %v1782, 0.5
    %v1785 = vadd.f32 %v1783, 0.5
    %v1788 = vrot.slane %v916, 7
    %v1789 = vrot.slane %v917, 7
    %v1792 = vmul.f32 %v1784, %v1788
    %v1793 = vmul.f32 %v1785, %v1789
    %v1794 = vmul.f32 %v1766, %v1768
    %v1795 = vmul.f32 %v1767, %v1769
    %v1796 = vadd.f32 %v1792, %v1794
    %v1797 = vadd.f32 %v1793, %v1795
    %v1798 = vtanh.pop %v1796
    %v1799 = vtanh.pop %v1797
    %v1800 = vmul.f32 %v1776, %v1798
    %v1801 = vmul.f32 %v1777, %v1799
    %v1802 = vpack.c.bf16 %v1800, %v1800
    %v1803 = vpack.c.bf16 %v1801, %v1801
    %v1805 = vshrl.u32 %v1802, 16
    %v1808 = vshrl.u32 %v1803, 16
    %1812 = vmatprep.subr.bf16.mxu0 %v1309
    %1813 = vmatpush1.bf16.msra.mxu0 %v1308
    %1814 = vmatprep.subr.bf16.mxu0 %v1317
    %1815 = vmatpush1.bf16.msra.mxu0 %v1316
    %1816 = vmatprep.subr.bf16.mxu0 %v1325
    %1817 = vmatpush1.bf16.msra.mxu0 %v1324
    %1818 = vmatprep.subr.bf16.mxu0 %v1333
    %1819 = vmatpush1.bf16.msra.mxu0 %v1332
    %1820 = vmatprep.subr.bf16.mxu0 %v1341
    %1821 = vmatpush1.bf16.msra.mxu0 %v1340
    %1822 = vmatprep.subr.bf16.mxu0 %v1349
    %1823 = vmatpush1.bf16.msra.mxu0 %v1348
    %1824 = vmatprep.subr.bf16.mxu0 %v1357
    %1825 = vmatpush1.bf16.msra.mxu0 %v1356
    %1826 = vmatprep.subr.bf16.mxu0 %v1365
    %1827 = vmatpush1.bf16.msra.mxu0 %v1364
    %1828 = vmatprep.subr.bf16.mxu0 %v1373
    %1829 = vmatpush1.bf16.msra.mxu0 %v1372
    %1830 = vmatprep.subr.bf16.mxu0 %v1381
    %1831 = vmatpush1.bf16.msra.mxu0 %v1380
    %1832 = vmatprep.subr.bf16.mxu0 %v1389
    %1833 = vmatpush1.bf16.msra.mxu0 %v1388
    %1834 = vmatprep.subr.bf16.mxu0 %v1397
    %1835 = vmatpush1.bf16.msra.mxu0 %v1396
    %1836 = vmatprep.subr.bf16.mxu0 %v1405
    %1837 = vmatpush1.bf16.msra.mxu0 %v1404
    %1838 = vmatprep.subr.bf16.mxu0 %v1413
    %1839 = vmatpush1.bf16.msra.mxu0 %v1412
    %1840 = vmatprep.subr.bf16.mxu0 %v1421
    %1841 = vmatpush1.bf16.msra.mxu0 %v1420
    %1842 = vmatprep.subr.bf16.mxu0 %v1429
    %1843 = vmatpush1.bf16.msra.mxu0 %v1428
    %1844 = vmatprep.mubr.bf16.mxu0 %v1808
    %1845 = vmatmul.mubr.bf16.gmra.mrb[0].mxu0 %v1805
    %v1846 = vpop.f32.mrb[0].mxu0
    %v1847 = vadd.f32 0.0, %v1846
    %v1848 = vpop.f32.mrb[0].mxu0
    %v1849 = vadd.f32 0.0, %v1848
    %v1850 = vpop.f32.mrb[0].mxu0
    %v1851 = vpop.f32.mrb[0].mxu0
    %1852 = vdwg.mxu0
    %1853 = vmatprep.subr.bf16.mxu0 %v1311
    %1854 = vmatpush1.bf16.msra.mxu0 %v1310
    %1855 = vmatprep.subr.bf16.mxu0 %v1319
    %1856 = vmatpush1.bf16.msra.mxu0 %v1318
    %1857 = vmatprep.subr.bf16.mxu0 %v1327
    %1858 = vmatpush1.bf16.msra.mxu0 %v1326
    %1859 = vmatprep.subr.bf16.mxu0 %v1335
    %1860 = vmatpush1.bf16.msra.mxu0 %v1334
    %1861 = vmatprep.subr.bf16.mxu0 %v1343
    %1862 = vmatpush1.bf16.msra.mxu0 %v1342
    %1863 = vmatprep.subr.bf16.mxu0 %v1351
    %1864 = vmatpush1.bf16.msra.mxu0 %v1350
    %1865 = vmatprep.subr.bf16.mxu0 %v1359
    %1866 = vmatpush1.bf16.msra.mxu0 %v1358
    %1867 = vmatprep.subr.bf16.mxu0 %v1367
    %1868 = vmatpush1.bf16.msra.mxu0 %v1366
    %1869 = vmatprep.subr.bf16.mxu0 %v1375
    %1870 = vmatpush1.bf16.msra.mxu0 %v1374
    %1871 = vmatprep.subr.bf16.mxu0 %v1383
    %1872 = vmatpush1.bf16.msra.mxu0 %v1382
    %1873 = vmatprep.subr.bf16.mxu0 %v1391
    %1874 = vmatpush1.bf16.msra.mxu0 %v1390
    %1875 = vmatprep.subr.bf16.mxu0 %v1399
    %1876 = vmatpush1.bf16.msra.mxu0 %v1398
    %1877 = vmatprep.subr.bf16.mxu0 %v1407
    %1878 = vmatpush1.bf16.msra.mxu0 %v1406
    %1879 = vmatprep.subr.bf16.mxu0 %v1415
    %1880 = vmatpush1.bf16.msra.mxu0 %v1414
    %1881 = vmatprep.subr.bf16.mxu0 %v1423
    %1882 = vmatpush1.bf16.msra.mxu0 %v1422
    %1883 = vmatprep.subr.bf16.mxu0 %v1431
    %1884 = vmatpush1.bf16.msra.mxu0 %v1430
    %1885 = vmatprep.mubr.bf16.mxu0 %v1808
    %1886 = vmatmul.mubr.bf16.gmra.mrb[0].mxu0 %v1805
    %v1887 = vpop.f32.mrb[0].mxu0
    %v1888 = vadd.f32 0.0, %v1887
    %v1889 = vpop.f32.mrb[0].mxu0
    %v1890 = vadd.f32 0.0, %v1889
    %v1891 = vpop.f32.mrb[0].mxu0
    %v1892 = vpop.f32.mrb[0].mxu0
    %1893 = vdwg.mxu0
    %1894 = vmatprep.subr.bf16.mxu0 %v1313
    %1895 = vmatpush1.bf16.msra.mxu0 %v1312
    %1896 = vmatprep.subr.bf16.mxu0 %v1321
    %1897 = vmatpush1.bf16.msra.mxu0 %v1320
    %1898 = vmatprep.subr.bf16.mxu0 %v1329
    %1899 = vmatpush1.bf16.msra.mxu0 %v1328
    %1900 = vmatprep.subr.bf16.mxu0 %v1337
    %1901 = vmatpush1.bf16.msra.mxu0 %v1336
    %1902 = vmatprep.subr.bf16.mxu0 %v1345
    %1903 = vmatpush1.bf16.msra.mxu0 %v1344
    %1904 = vmatprep.subr.bf16.mxu0 %v1353
    %1905 = vmatpush1.bf16.msra.mxu0 %v1352
    %1906 = vmatprep.subr.bf16.mxu0 %v1361
    %1907 = vmatpush1.bf16.msra.mxu0 %v1360
    %1908 = vmatprep.subr.bf16.mxu0 %v1369
    %1909 = vmatpush1.bf16.msra.mxu0 %v1368
    %1910 = vmatprep.subr.bf16.mxu0 %v1377
    %1911 = vmatpush1.bf16.msra.mxu0 %v1376
    %1912 = vmatprep.subr.bf16.mxu0 %v1385
    %1913 = vmatpush1.bf16.msra.mxu0 %v1384
    %1914 = vmatprep.subr.bf16.mxu0 %v1393
    %1915 = vmatpush1.bf16.msra.mxu0 %v1392
    %1916 = vmatprep.subr.bf16.mxu0 %v1401
    %1917 = vmatpush1.bf16.msra.mxu0 %v1400
    %1918 = vmatprep.subr.bf16.mxu0 %v1409
    %1919 = vmatpush1.bf16.msra.mxu0 %v1408
    %1920 = vmatprep.subr.bf16.mxu0 %v1417
    %1921 = vmatpush1.bf16.msra.mxu0 %v1416
    %1922 = vmatprep.subr.bf16.mxu0 %v1425
    %1923 = vmatpush1.bf16.msra.mxu0 %v1424
    %1924 = vmatprep.subr.bf16.mxu0 %v1433
    %1925 = vmatpush1.bf16.msra.mxu0 %v1432
    %1926 = vmatprep.mubr.bf16.mxu0 %v1808
    %1927 = vmatmul.mubr.bf16.gmra.mrb[0].mxu0 %v1805
    %v1928 = vpop.f32.mrb[0].mxu0
    %v1929 = vadd.f32 0.0, %v1928
    %v1930 = vpop.f32.mrb[0].mxu0
    %v1931 = vadd.f32 0.0, %v1930
    %v1932 = vpop.f32.mrb[0].mxu0
    %v1933 = vpop.f32.mrb[0].mxu0
    %1934 = vdwg.mxu0
    %1935 = vmatprep.subr.bf16.mxu0 %v1315
    %1936 = vmatpush1.bf16.msra.mxu0 %v1314
    %1937 = vmatprep.subr.bf16.mxu0 %v1323
    %1938 = vmatpush1.bf16.msra.mxu0 %v1322
    %1939 = vmatprep.subr.bf16.mxu0 %v1331
    %1940 = vmatpush1.bf16.msra.mxu0 %v1330
    %1941 = vmatprep.subr.bf16.mxu0 %v1339
    %1942 = vmatpush1.bf16.msra.mxu0 %v1338
    %1943 = vmatprep.subr.bf16.mxu0 %v1347
    %1944 = vmatpush1.bf16.msra.mxu0 %v1346
    %1945 = vmatprep.subr.bf16.mxu0 %v1355
    %1946 = vmatpush1.bf16.msra.mxu0 %v1354
    %1947 = vmatprep.subr.bf16.mxu0 %v1363
    %1948 = vmatpush1.bf16.msra.mxu0 %v1362
    %1949 = vmatprep.subr.bf16.mxu0 %v1371
    %1950 = vmatpush1.bf16.msra.mxu0 %v1370
    %1951 = vmatprep.subr.bf16.mxu0 %v1379
    %1952 = vmatpush1.bf16.msra.mxu0 %v1378
    %1953 = vmatprep.subr.bf16.mxu0 %v1387
    %1954 = vmatpush1.bf16.msra.mxu0 %v1386
    %1955 = vmatprep.subr.bf16.mxu0 %v1395
    %1956 = vmatpush1.bf16.msra.mxu0 %v1394
    %1957 = vmatprep.subr.bf16.mxu0 %v1403
    %1958 = vmatpush1.bf16.msra.mxu0 %v1402
    %1959 = vmatprep.subr.bf16.mxu0 %v1411
    %1960 = vmatpush1.bf16.msra.mxu0 %v1410
    %1961 = vmatprep.subr.bf16.mxu0 %v1419
    %1962 = vmatpush1.bf16.msra.mxu0 %v1418
    %1963 = vmatprep.subr.bf16.mxu0 %v1427
    %1964 = vmatpush1.bf16.msra.mxu0 %v1426
    %1965 = vmatprep.subr.bf16.mxu0 %v1435
    %1966 = vmatpush1.bf16.msra.mxu0 %v1434
    %1967 = vmatprep.mubr.bf16.mxu0 %v1808
    %1968 = vmatmul.mubr.bf16.gmra.mrb[0].mxu0 %v1805
    %v1969 = vpop.f32.mrb[0].mxu0
    %v1970 = vadd.f32 0.0, %v1969
    %v1971 = vpop.f32.mrb[0].mxu0
    %v1972 = vadd.f32 0.0, %v1971
    %v1973 = vpop.f32.mrb[0].mxu0
    %v1974 = vpop.f32.mrb[0].mxu0
    %1975 = vdwg.mxu0
    %v1984 = vrot.slane %v1847, 6
    %v1985 = vrot.slane %v1849, 6
    %v1986 = vrot.slane %v1888, 6
    %v1987 = vrot.slane %v1890, 6
    %v1988 = vrot.slane %v1929, 6
    %v1989 = vrot.slane %v1931, 6
    %v1990 = vrot.slane %v1970, 6
    %v1991 = vrot.slane %v1972, 6
    %v2000 = vadd.f32 %v633, %v1984
    %v2001 = vadd.f32 %v635, %v1985
    %v2002 = vadd.f32 %v676, %v1986
    %v2003 = vadd.f32 %v678, %v1987
    %v2004 = vadd.f32 %v719, %v1988
    %v2005 = vadd.f32 %v721, %v1989
    %v2006 = vadd.f32 %v762, %v1990
    %v2007 = vadd.f32 %v764, %v1991
    %v2008 = vmul.f32 %v2000, 0.5
    %v2009 = vmul.f32 %v2001, 0.5
    %v2010 = vtanh.pop %v2008
    %v2011 = vtanh.pop %v2009
    %v2012 = vmul.f32 %v2010, 0.5
    %v2013 = vmul.f32 %v2011, 0.5
    %v2014 = vadd.f32 %v2012, 0.5
    %v2015 = vadd.f32 %v2013, 0.5
    %v2016 = vtanh.pop %v2004
    %v2017 = vtanh.pop %v2005
    %v2018 = vmul.f32 %v2006, 0.5
    %v2019 = vmul.f32 %v2007, 0.5
    %v2020 = vtanh.pop %v2018
    %v2021 = vtanh.pop %v2019
    %v2022 = vmul.f32 %v2020, 0.5
    %v2023 = vmul.f32 %v2021, 0.5
    %v2024 = vadd.f32 %v2022, 0.5
    %v2025 = vadd.f32 %v2023, 0.5
    %v2026 = vmul.f32 %v2002, 0.5
    %v2027 = vmul.f32 %v2003, 0.5
    %v2028 = vtanh.pop %v2026
    %v2029 = vtanh.pop %v2027
    %v2030 = vmul.f32 %v2028, 0.5
    %v2031 = vmul.f32 %v2029, 0.5
    %v2032 = vadd.f32 %v2030, 0.5
    %v2033 = vadd.f32 %v2031, 0.5
    %v2036 = vrot.slane %v1796, 7
    %v2037 = vrot.slane %v1797, 7
    %v2040 = vmul.f32 %v2032, %v2036
    %v2041 = vmul.f32 %v2033, %v2037
    %v2042 = vmul.f32 %v2014, %v2016
    %v2043 = vmul.f32 %v2015, %v2017
    %v2044 = vadd.f32 %v2040, %v2042
    %v2045 = vadd.f32 %v2041, %v2043
    %v2046 = vtanh.pop %v2044
    %v2047 = vtanh.pop %v2045
    %v2048 = vmul.f32 %v2024, %v2046
    %v2049 = vmul.f32 %v2025, %v2047
    %v2050 = vpack.c.bf16 %v2048, %v2048
    %v2051 = vpack.c.bf16 %v2049, %v2049
    %v2054 = vrot.slane %v2050, 1
    %v2055 = vrot.slane %v2051, 1
    %2058 = vmatprep.subr.bf16.mxu0 %v1309
    %2059 = vmatpush1.bf16.msra.mxu0 %v1308
    %2060 = vmatprep.subr.bf16.mxu0 %v1317
    %2061 = vmatpush1.bf16.msra.mxu0 %v1316
    %2062 = vmatprep.subr.bf16.mxu0 %v1325
    %2063 = vmatpush1.bf16.msra.mxu0 %v1324
    %2064 = vmatprep.subr.bf16.mxu0 %v1333
    %2065 = vmatpush1.bf16.msra.mxu0 %v1332
    %2066 = vmatprep.subr.bf16.mxu0 %v1341
    %2067 = vmatpush1.bf16.msra.mxu0 %v1340
    %2068 = vmatprep.subr.bf16.mxu0 %v1349
    %2069 = vmatpush1.bf16.msra.mxu0 %v1348
    %2070 = vmatprep.subr.bf16.mxu0 %v1357
    %2071 = vmatpush1.bf16.msra.mxu0 %v1356
    %2072 = vmatprep.subr.bf16.mxu0 %v1365
    %2073 = vmatpush1.bf16.msra.mxu0 %v1364
    %2074 = vmatprep.subr.bf16.mxu0 %v1373
    %2075 = vmatpush1.bf16.msra.mxu0 %v1372
    %2076 = vmatprep.subr.bf16.mxu0 %v1381
    %2077 = vmatpush1.bf16.msra.mxu0 %v1380
    %2078 = vmatprep.subr.bf16.mxu0 %v1389
    %2079 = vmatpush1.bf16.msra.mxu0 %v1388
    %2080 = vmatprep.subr.bf16.mxu0 %v1397
    %2081 = vmatpush1.bf16.msra.mxu0 %v1396
    %2082 = vmatprep.subr.bf16.mxu0 %v1405
    %2083 = vmatpush1.bf16.msra.mxu0 %v1404
    %2084 = vmatprep.subr.bf16.mxu0 %v1413
    %2085 = vmatpush1.bf16.msra.mxu0 %v1412
    %2086 = vmatprep.subr.bf16.mxu0 %v1421
    %2087 = vmatpush1.bf16.msra.mxu0 %v1420
    %2088 = vmatprep.subr.bf16.mxu0 %v1429
    %2089 = vmatpush1.bf16.msra.mxu0 %v1428
    %2090 = vmatprep.mubr.bf16.mxu0 %v2055
    %2091 = vmatmul.mubr.bf16.gmra.mrb[0].mxu0 %v2054
    %v2092 = vpop.f32.mrb[0].mxu0
    %v2093 = vadd.f32 0.0, %v2092
    %v2094 = vpop.f32.mrb[0].mxu0
    %v2095 = vadd.f32 0.0, %v2094
    %v2096 = vpop.f32.mrb[0].mxu0
    %v2097 = vpop.f32.mrb[0].mxu0
    %2098 = vdwg.mxu0
    %2099 = vmatprep.subr.bf16.mxu0 %v1311
    %2100 = vmatpush1.bf16.msra.mxu0 %v1310
    %2101 = vmatprep.subr.bf16.mxu0 %v1319
    %2102 = vmatpush1.bf16.msra.mxu0 %v1318
    %2103 = vmatprep.subr.bf16.mxu0 %v1327
    %2104 = vmatpush1.bf16.msra.mxu0 %v1326
    %2105 = vmatprep.subr.bf16.mxu0 %v1335
    %2106 = vmatpush1.bf16.msra.mxu0 %v1334
    %2107 = vmatprep.subr.bf16.mxu0 %v1343
    %2108 = vmatpush1.bf16.msra.mxu0 %v1342
    %2109 = vmatprep.subr.bf16.mxu0 %v1351
    %2110 = vmatpush1.bf16.msra.mxu0 %v1350
    %2111 = vmatprep.subr.bf16.mxu0 %v1359
    %2112 = vmatpush1.bf16.msra.mxu0 %v1358
    %2113 = vmatprep.subr.bf16.mxu0 %v1367
    %2114 = vmatpush1.bf16.msra.mxu0 %v1366
    %2115 = vmatprep.subr.bf16.mxu0 %v1375
    %2116 = vmatpush1.bf16.msra.mxu0 %v1374
    %2117 = vmatprep.subr.bf16.mxu0 %v1383
    %2118 = vmatpush1.bf16.msra.mxu0 %v1382
    %2119 = vmatprep.subr.bf16.mxu0 %v1391
    %2120 = vmatpush1.bf16.msra.mxu0 %v1390
    %2121 = vmatprep.subr.bf16.mxu0 %v1399
    %2122 = vmatpush1.bf16.msra.mxu0 %v1398
    %2123 = vmatprep.subr.bf16.mxu0 %v1407
    %2124 = vmatpush1.bf16.msra.mxu0 %v1406
    %2125 = vmatprep.subr.bf16.mxu0 %v1415
    %2126 = vmatpush1.bf16.msra.mxu0 %v1414
    %2127 = vmatprep.subr.bf16.mxu0 %v1423
    %2128 = vmatpush1.bf16.msra.mxu0 %v1422
    %2129 = vmatprep.subr.bf16.mxu0 %v1431
    %2130 = vmatpush1.bf16.msra.mxu0 %v1430
    %2131 = vmatprep.mubr.bf16.mxu0 %v2055
    %2132 = vmatmul.mubr.bf16.gmra.mrb[0].mxu0 %v2054
    %v2133 = vpop.f32.mrb[0].mxu0
    %v2134 = vadd.f32 0.0, %v2133
    %v2135 = vpop.f32.mrb[0].mxu0
    %v2136 = vadd.f32 0.0, %v2135
    %v2137 = vpop.f32.mrb[0].mxu0
    %v2138 = vpop.f32.mrb[0].mxu0
    %2139 = vdwg.mxu0
    %2140 = vmatprep.subr.bf16.mxu0 %v1313
    %2141 = vmatpush1.bf16.msra.mxu0 %v1312
    %2142 = vmatprep.subr.bf16.mxu0 %v1321
    %2143 = vmatpush1.bf16.msra.mxu0 %v1320
    %2144 = vmatprep.subr.bf16.mxu0 %v1329
    %2145 = vmatpush1.bf16.msra.mxu0 %v1328
    %2146 = vmatprep.subr.bf16.mxu0 %v1337
    %2147 = vmatpush1.bf16.msra.mxu0 %v1336
    %2148 = vmatprep.subr.bf16.mxu0 %v1345
    %2149 = vmatpush1.bf16.msra.mxu0 %v1344
    %2150 = vmatprep.subr.bf16.mxu0 %v1353
    %2151 = vmatpush1.bf16.msra.mxu0 %v1352
    %2152 = vmatprep.subr.bf16.mxu0 %v1361
    %2153 = vmatpush1.bf16.msra.mxu0 %v1360
    %2154 = vmatprep.subr.bf16.mxu0 %v1369
    %2155 = vmatpush1.bf16.msra.mxu0 %v1368
    %2156 = vmatprep.subr.bf16.mxu0 %v1377
    %2157 = vmatpush1.bf16.msra.mxu0 %v1376
    %2158 = vmatprep.subr.bf16.mxu0 %v1385
    %2159 = vmatpush1.bf16.msra.mxu0 %v1384
    %2160 = vmatprep.subr.bf16.mxu0 %v1393
    %2161 = vmatpush1.bf16.msra.mxu0 %v1392
    %2162 = vmatprep.subr.bf16.mxu0 %v1401
    %2163 = vmatpush1.bf16.msra.mxu0 %v1400
    %2164 = vmatprep.subr.bf16.mxu0 %v1409
    %2165 = vmatpush1.bf16.msra.mxu0 %v1408
    %2166 = vmatprep.subr.bf16.mxu0 %v1417
    %2167 = vmatpush1.bf16.msra.mxu0 %v1416
    %2168 = vmatprep.subr.bf16.mxu0 %v1425
    %2169 = vmatpush1.bf16.msra.mxu0 %v1424
    %2170 = vmatprep.subr.bf16.mxu0 %v1433
    %2171 = vmatpush1.bf16.msra.mxu0 %v1432
    %2172 = vmatprep.mubr.bf16.mxu0 %v2055
    %2173 = vmatmul.mubr.bf16.gmra.mrb[0].mxu0 %v2054
    %v2174 = vpop.f32.mrb[0].mxu0
    %v2175 = vadd.f32 0.0, %v2174
    %v2176 = vpop.f32.mrb[0].mxu0
    %v2177 = vadd.f32 0.0, %v2176
    %v2178 = vpop.f32.mrb[0].mxu0
    %v2179 = vpop.f32.mrb[0].mxu0
    %2180 = vdwg.mxu0
    %2181 = vmatprep.subr.bf16.mxu0 %v1315
    %2182 = vmatpush1.bf16.msra.mxu0 %v1314
    %2183 = vmatprep.subr.bf16.mxu0 %v1323
    %2184 = vmatpush1.bf16.msra.mxu0 %v1322
    %2185 = vmatprep.subr.bf16.mxu0 %v1331
    %2186 = vmatpush1.bf16.msra.mxu0 %v1330
    %2187 = vmatprep.subr.bf16.mxu0 %v1339
    %2188 = vmatpush1.bf16.msra.mxu0 %v1338
    %2189 = vmatprep.subr.bf16.mxu0 %v1347
    %2190 = vmatpush1.bf16.msra.mxu0 %v1346
    %2191 = vmatprep.subr.bf16.mxu0 %v1355
    %2192 = vmatpush1.bf16.msra.mxu0 %v1354
    %2193 = vmatprep.subr.bf16.mxu0 %v1363
    %2194 = vmatpush1.bf16.msra.mxu0 %v1362
    %2195 = vmatprep.subr.bf16.mxu0 %v1371
    %2196 = vmatpush1.bf16.msra.mxu0 %v1370
    %2197 = vmatprep.subr.bf16.mxu0 %v1379
    %2198 = vmatpush1.bf16.msra.mxu0 %v1378
    %2199 = vmatprep.subr.bf16.mxu0 %v1387
    %2200 = vmatpush1.bf16.msra.mxu0 %v1386
    %2201 = vmatprep.subr.bf16.mxu0 %v1395
    %2202 = vmatpush1.bf16.msra.mxu0 %v1394
    %2203 = vmatprep.subr.bf16.mxu0 %v1403
    %2204 = vmatpush1.bf16.msra.mxu0 %v1402
    %2205 = vmatprep.subr.bf16.mxu0 %v1411
    %2206 = vmatpush1.bf16.msra.mxu0 %v1410
    %2207 = vmatprep.subr.bf16.mxu0 %v1419
    %2208 = vmatpush1.bf16.msra.mxu0 %v1418
    %2209 = vmatprep.subr.bf16.mxu0 %v1427
    %2210 = vmatpush1.bf16.msra.mxu0 %v1426
    %2211 = vmatprep.subr.bf16.mxu0 %v1435
    %2212 = vmatpush1.bf16.msra.mxu0 %v1434
    %2213 = vmatprep.mubr.bf16.mxu0 %v2055
    %2214 = vmatmul.mubr.bf16.gmra.mrb[0].mxu0 %v2054
    %v2215 = vpop.f32.mrb[0].mxu0
    %v2216 = vadd.f32 0.0, %v2215
    %v2217 = vpop.f32.mrb[0].mxu0
    %v2218 = vadd.f32 0.0, %v2217
    %v2219 = vpop.f32.mrb[0].mxu0
    %v2220 = vpop.f32.mrb[0].mxu0
    %2221 = vdwg.mxu0
    %v2230 = vrot.slane %v2093, 5
    %v2231 = vrot.slane %v2095, 5
    %v2232 = vrot.slane %v2134, 5
    %v2233 = vrot.slane %v2136, 5
    %v2234 = vrot.slane %v2175, 5
    %v2235 = vrot.slane %v2177, 5
    %v2236 = vrot.slane %v2216, 5
    %v2237 = vrot.slane %v2218, 5
    %v2246 = vadd.f32 %v633, %v2230
    %v2247 = vadd.f32 %v635, %v2231
    %v2248 = vadd.f32 %v676, %v2232
    %v2249 = vadd.f32 %v678, %v2233
    %v2250 = vadd.f32 %v719, %v2234
    %v2251 = vadd.f32 %v721, %v2235
    %v2252 = vadd.f32 %v762, %v2236
    %v2253 = vadd.f32 %v764, %v2237
    %v2254 = vmul.f32 %v2246, 0.5
    %v2255 = vmul.f32 %v2247, 0.5
    %v2256 = vtanh.pop %v2254
    %v2257 = vtanh.pop %v2255
    %v2258 = vmul.f32 %v2256, 0.5
    %v2259 = vmul.f32 %v2257, 0.5
    %v2260 = vadd.f32 %v2258, 0.5
    %v2261 = vadd.f32 %v2259, 0.5
    %v2262 = vtanh.pop %v2250
    %v2263 = vtanh.pop %v2251
    %v2264 = vmul.f32 %v2252, 0.5
    %v2265 = vmul.f32 %v2253, 0.5
    %v2266 = vtanh.pop %v2264
    %v2267 = vtanh.pop %v2265
    %v2268 = vmul.f32 %v2266, 0.5
    %v2269 = vmul.f32 %v2267, 0.5
    %v2270 = vadd.f32 %v2268, 0.5
    %v2271 = vadd.f32 %v2269, 0.5
    %v2272 = vmul.f32 %v2248, 0.5
    %v2273 = vmul.f32 %v2249, 0.5
    %v2274 = vtanh.pop %v2272
    %v2275 = vtanh.pop %v2273
    %v2276 = vmul.f32 %v2274, 0.5
    %v2277 = vmul.f32 %v2275, 0.5
    %v2278 = vadd.f32 %v2276, 0.5
    %v2279 = vadd.f32 %v2277, 0.5
    %v2282 = vrot.slane %v2044, 7
    %v2283 = vrot.slane %v2045, 7
    %v2286 = vmul.f32 %v2278, %v2282
    %v2287 = vmul.f32 %v2279, %v2283
    %v2288 = vmul.f32 %v2260, %v2262
    %v2289 = vmul.f32 %v2261, %v2263
    %v2290 = vadd.f32 %v2286, %v2288
    %v2291 = vadd.f32 %v2287, %v2289
    %v2292 = vtanh.pop %v2290
    %v2293 = vtanh.pop %v2291
    %v2294 = vmul.f32 %v2270, %v2292
    %v2295 = vmul.f32 %v2271, %v2293
    %v2296 = vpack.c.bf16 %v2294, %v2294
    %v2297 = vpack.c.bf16 %v2295, %v2295
    %v2299 = vshrl.u32 %v2296, 16
    %v2301 = vrot.slane %v2299, 1
    %v2303 = vshrl.u32 %v2297, 16
    %v2305 = vrot.slane %v2303, 1
    %2308 = vmatprep.subr.bf16.mxu0 %v1309
    %2309 = vmatpush1.bf16.msra.mxu0 %v1308
    %2310 = vmatprep.subr.bf16.mxu0 %v1317
    %2311 = vmatpush1.bf16.msra.mxu0 %v1316
    %2312 = vmatprep.subr.bf16.mxu0 %v1325
    %2313 = vmatpush1.bf16.msra.mxu0 %v1324
    %2314 = vmatprep.subr.bf16.mxu0 %v1333
    %2315 = vmatpush1.bf16.msra.mxu0 %v1332
    %2316 = vmatprep.subr.bf16.mxu0 %v1341
    %2317 = vmatpush1.bf16.msra.mxu0 %v1340
    %2318 = vmatprep.subr.bf16.mxu0 %v1349
    %2319 = vmatpush1.bf16.msra.mxu0 %v1348
    %2320 = vmatprep.subr.bf16.mxu0 %v1357
    %2321 = vmatpush1.bf16.msra.mxu0 %v1356
    %2322 = vmatprep.subr.bf16.mxu0 %v1365
    %2323 = vmatpush1.bf16.msra.mxu0 %v1364
    %2324 = vmatprep.subr.bf16.mxu0 %v1373
    %2325 = vmatpush1.bf16.msra.mxu0 %v1372
    %2326 = vmatprep.subr.bf16.mxu0 %v1381
    %2327 = vmatpush1.bf16.msra.mxu0 %v1380
    %2328 = vmatprep.subr.bf16.mxu0 %v1389
    %2329 = vmatpush1.bf16.msra.mxu0 %v1388
    %2330 = vmatprep.subr.bf16.mxu0 %v1397
    %2331 = vmatpush1.bf16.msra.mxu0 %v1396
    %2332 = vmatprep.subr.bf16.mxu0 %v1405
    %2333 = vmatpush1.bf16.msra.mxu0 %v1404
    %2334 = vmatprep.subr.bf16.mxu0 %v1413
    %2335 = vmatpush1.bf16.msra.mxu0 %v1412
    %2336 = vmatprep.subr.bf16.mxu0 %v1421
    %2337 = vmatpush1.bf16.msra.mxu0 %v1420
    %2338 = vmatprep.subr.bf16.mxu0 %v1429
    %2339 = vmatpush1.bf16.msra.mxu0 %v1428
    %2340 = vmatprep.mubr.bf16.mxu0 %v2305
    %2341 = vmatmul.mubr.bf16.gmra.mrb[0].mxu0 %v2301
    %v2342 = vpop.f32.mrb[0].mxu0
    %v2343 = vadd.f32 0.0, %v2342
    %v2344 = vpop.f32.mrb[0].mxu0
    %v2345 = vadd.f32 0.0, %v2344
    %v2346 = vpop.f32.mrb[0].mxu0
    %v2347 = vpop.f32.mrb[0].mxu0
    %2348 = vdwg.mxu0
    %2349 = vmatprep.subr.bf16.mxu0 %v1311
    %2350 = vmatpush1.bf16.msra.mxu0 %v1310
    %2351 = vmatprep.subr.bf16.mxu0 %v1319
    %2352 = vmatpush1.bf16.msra.mxu0 %v1318
    %2353 = vmatprep.subr.bf16.mxu0 %v1327
    %2354 = vmatpush1.bf16.msra.mxu0 %v1326
    %2355 = vmatprep.subr.bf16.mxu0 %v1335
    %2356 = vmatpush1.bf16.msra.mxu0 %v1334
    %2357 = vmatprep.subr.bf16.mxu0 %v1343
    %2358 = vmatpush1.bf16.msra.mxu0 %v1342
    %2359 = vmatprep.subr.bf16.mxu0 %v1351
    %2360 = vmatpush1.bf16.msra.mxu0 %v1350
    %2361 = vmatprep.subr.bf16.mxu0 %v1359
    %2362 = vmatpush1.bf16.msra.mxu0 %v1358
    %2363 = vmatprep.subr.bf16.mxu0 %v1367
    %2364 = vmatpush1.bf16.msra.mxu0 %v1366
    %2365 = vmatprep.subr.bf16.mxu0 %v1375
    %2366 = vmatpush1.bf16.msra.mxu0 %v1374
    %2367 = vmatprep.subr.bf16.mxu0 %v1383
    %2368 = vmatpush1.bf16.msra.mxu0 %v1382
    %2369 = vmatprep.subr.bf16.mxu0 %v1391
    %2370 = vmatpush1.bf16.msra.mxu0 %v1390
    %2371 = vmatprep.subr.bf16.mxu0 %v1399
    %2372 = vmatpush1.bf16.msra.mxu0 %v1398
    %2373 = vmatprep.subr.bf16.mxu0 %v1407
    %2374 = vmatpush1.bf16.msra.mxu0 %v1406
    %2375 = vmatprep.subr.bf16.mxu0 %v1415
    %2376 = vmatpush1.bf16.msra.mxu0 %v1414
    %2377 = vmatprep.subr.bf16.mxu0 %v1423
    %2378 = vmatpush1.bf16.msra.mxu0 %v1422
    %2379 = vmatprep.subr.bf16.mxu0 %v1431
    %2380 = vmatpush1.bf16.msra.mxu0 %v1430
    %2381 = vmatprep.mubr.bf16.mxu0 %v2305
    %2382 = vmatmul.mubr.bf16.gmra.mrb[0].mxu0 %v2301
    %v2383 = vpop.f32.mrb[0].mxu0
    %v2384 = vadd.f32 0.0, %v2383
    %v2385 = vpop.f32.mrb[0].mxu0
    %v2386 = vadd.f32 0.0, %v2385
    %v2387 = vpop.f32.mrb[0].mxu0
    %v2388 = vpop.f32.mrb[0].mxu0
    %2389 = vdwg.mxu0
    %2390 = vmatprep.subr.bf16.mxu0 %v1313
    %2391 = vmatpush1.bf16.msra.mxu0 %v1312
    %2392 = vmatprep.subr.bf16.mxu0 %v1321
    %2393 = vmatpush1.bf16.msra.mxu0 %v1320
    %2394 = vmatprep.subr.bf16.mxu0 %v1329
    %2395 = vmatpush1.bf16.msra.mxu0 %v1328
    %2396 = vmatprep.subr.bf16.mxu0 %v1337
    %2397 = vmatpush1.bf16.msra.mxu0 %v1336
    %2398 = vmatprep.subr.bf16.mxu0 %v1345
    %2399 = vmatpush1.bf16.msra.mxu0 %v1344
    %2400 = vmatprep.subr.bf16.mxu0 %v1353
    %2401 = vmatpush1.bf16.msra.mxu0 %v1352
    %2402 = vmatprep.subr.bf16.mxu0 %v1361
    %2403 = vmatpush1.bf16.msra.mxu0 %v1360
    %2404 = vmatprep.subr.bf16.mxu0 %v1369
    %2405 = vmatpush1.bf16.msra.mxu0 %v1368
    %2406 = vmatprep.subr.bf16.mxu0 %v1377
    %2407 = vmatpush1.bf16.msra.mxu0 %v1376
    %2408 = vmatprep.subr.bf16.mxu0 %v1385
    %2409 = vmatpush1.bf16.msra.mxu0 %v1384
    %2410 = vmatprep.subr.bf16.mxu0 %v1393
    %2411 = vmatpush1.bf16.msra.mxu0 %v1392
    %2412 = vmatprep.subr.bf16.mxu0 %v1401
    %2413 = vmatpush1.bf16.msra.mxu0 %v1400
    %2414 = vmatprep.subr.bf16.mxu0 %v1409
    %2415 = vmatpush1.bf16.msra.mxu0 %v1408
    %2416 = vmatprep.subr.bf16.mxu0 %v1417
    %2417 = vmatpush1.bf16.msra.mxu0 %v1416
    %2418 = vmatprep.subr.bf16.mxu0 %v1425
    %2419 = vmatpush1.bf16.msra.mxu0 %v1424
    %2420 = vmatprep.subr.bf16.mxu0 %v1433
    %2421 = vmatpush1.bf16.msra.mxu0 %v1432
    %2422 = vmatprep.mubr.bf16.mxu0 %v2305
    %2423 = vmatmul.mubr.bf16.gmra.mrb[0].mxu0 %v2301
    %v2424 = vpop.f32.mrb[0].mxu0
    %v2425 = vadd.f32 0.0, %v2424
    %v2426 = vpop.f32.mrb[0].mxu0
    %v2427 = vadd.f32 0.0, %v2426
    %v2428 = vpop.f32.mrb[0].mxu0
    %v2429 = vpop.f32.mrb[0].mxu0
    %2430 = vdwg.mxu0
    %2431 = vmatprep.subr.bf16.mxu0 %v1315
    %2432 = vmatpush1.bf16.msra.mxu0 %v1314
    %2433 = vmatprep.subr.bf16.mxu0 %v1323
    %2434 = vmatpush1.bf16.msra.mxu0 %v1322
    %2435 = vmatprep.subr.bf16.mxu0 %v1331
    %2436 = vmatpush1.bf16.msra.mxu0 %v1330
    %2437 = vmatprep.subr.bf16.mxu0 %v1339
    %2438 = vmatpush1.bf16.msra.mxu0 %v1338
    %2439 = vmatprep.subr.bf16.mxu0 %v1347
    %2440 = vmatpush1.bf16.msra.mxu0 %v1346
    %2441 = vmatprep.subr.bf16.mxu0 %v1355
    %2442 = vmatpush1.bf16.msra.mxu0 %v1354
    %2443 = vmatprep.subr.bf16.mxu0 %v1363
    %2444 = vmatpush1.bf16.msra.mxu0 %v1362
    %2445 = vmatprep.subr.bf16.mxu0 %v1371
    %2446 = vmatpush1.bf16.msra.mxu0 %v1370
    %2447 = vmatprep.subr.bf16.mxu0 %v1379
    %2448 = vmatpush1.bf16.msra.mxu0 %v1378
    %2449 = vmatprep.subr.bf16.mxu0 %v1387
    %2450 = vmatpush1.bf16.msra.mxu0 %v1386
    %2451 = vmatprep.subr.bf16.mxu0 %v1395
    %2452 = vmatpush1.bf16.msra.mxu0 %v1394
    %2453 = vmatprep.subr.bf16.mxu0 %v1403
    %2454 = vmatpush1.bf16.msra.mxu0 %v1402
    %2455 = vmatprep.subr.bf16.mxu0 %v1411
    %2456 = vmatpush1.bf16.msra.mxu0 %v1410
    %2457 = vmatprep.subr.bf16.mxu0 %v1419
    %2458 = vmatpush1.bf16.msra.mxu0 %v1418
    %2459 = vmatprep.subr.bf16.mxu0 %v1427
    %2460 = vmatpush1.bf16.msra.mxu0 %v1426
    %2461 = vmatprep.subr.bf16.mxu0 %v1435
    %2462 = vmatpush1.bf16.msra.mxu0 %v1434
    %2463 = vmatprep.mubr.bf16.mxu0 %v2305
    %2464 = vmatmul.mubr.bf16.gmra.mrb[0].mxu0 %v2301
    %v2465 = vpop.f32.mrb[0].mxu0
    %v2466 = vadd.f32 0.0, %v2465
    %v2467 = vpop.f32.mrb[0].mxu0
    %v2468 = vadd.f32 0.0, %v2467
    %v2469 = vpop.f32.mrb[0].mxu0
    %v2470 = vpop.f32.mrb[0].mxu0
    %2471 = vdwg.mxu0
    %v2480 = vrot.slane %v2343, 4
    %v2481 = vrot.slane %v2345, 4
    %v2482 = vrot.slane %v2384, 4
    %v2483 = vrot.slane %v2386, 4
    %v2484 = vrot.slane %v2425, 4
    %v2485 = vrot.slane %v2427, 4
    %v2486 = vrot.slane %v2466, 4
    %v2487 = vrot.slane %v2468, 4
    %v2496 = vadd.f32 %v633, %v2480
    %v2497 = vadd.f32 %v635, %v2481
    %v2498 = vadd.f32 %v676, %v2482
    %v2499 = vadd.f32 %v678, %v2483
    %v2500 = vadd.f32 %v719, %v2484
    %v2501 = vadd.f32 %v721, %v2485
    %v2502 = vadd.f32 %v762, %v2486
    %v2503 = vadd.f32 %v764, %v2487
    %v2504 = vmul.f32 %v2496, 0.5
    %v2505 = vmul.f32 %v2497, 0.5
    %v2506 = vtanh.pop %v2504
    %v2507 = vtanh.pop %v2505
    %v2508 = vmul.f32 %v2506, 0.5
    %v2509 = vmul.f32 %v2507, 0.5
    %v2510 = vadd.f32 %v2508, 0.5
    %v2511 = vadd.f32 %v2509, 0.5
    %v2512 = vtanh.pop %v2500
    %v2513 = vtanh.pop %v2501
    %v2514 = vmul.f32 %v2502, 0.5
    %v2515 = vmul.f32 %v2503, 0.5
    %v2516 = vtanh.pop %v2514
    %v2517 = vtanh.pop %v2515
    %v2518 = vmul.f32 %v2516, 0.5
    %v2519 = vmul.f32 %v2517, 0.5
    %v2520 = vadd.f32 %v2518, 0.5
    %v2521 = vadd.f32 %v2519, 0.5
    %v2522 = vmul.f32 %v2498, 0.5
    %v2523 = vmul.f32 %v2499, 0.5
    %v2524 = vtanh.pop %v2522
    %v2525 = vtanh.pop %v2523
    %v2526 = vmul.f32 %v2524, 0.5
    %v2527 = vmul.f32 %v2525, 0.5
    %v2528 = vadd.f32 %v2526, 0.5
    %v2529 = vadd.f32 %v2527, 0.5
    %v2532 = vrot.slane %v2290, 7
    %v2533 = vrot.slane %v2291, 7
    %v2536 = vmul.f32 %v2528, %v2532
    %v2537 = vmul.f32 %v2529, %v2533
    %v2538 = vmul.f32 %v2510, %v2512
    %v2539 = vmul.f32 %v2511, %v2513
    %v2540 = vadd.f32 %v2536, %v2538
    %v2541 = vadd.f32 %v2537, %v2539
    %v2542 = vtanh.pop %v2540
    %v2543 = vtanh.pop %v2541
    %v2544 = vmul.f32 %v2520, %v2542
    %v2545 = vmul.f32 %v2521, %v2543
    %v2546 = vpack.c.bf16 %v2544, %v2544
    %v2547 = vpack.c.bf16 %v2545, %v2545
    %v2550 = vrot.slane %v2546, 2
    %v2551 = vrot.slane %v2547, 2
    %2554 = vmatprep.subr.bf16.mxu0 %v1309
    %2555 = vmatpush1.bf16.msra.mxu0 %v1308
    %2556 = vmatprep.subr.bf16.mxu0 %v1317
    %2557 = vmatpush1.bf16.msra.mxu0 %v1316
    %2558 = vmatprep.subr.bf16.mxu0 %v1325
    %2559 = vmatpush1.bf16.msra.mxu0 %v1324
    %2560 = vmatprep.subr.bf16.mxu0 %v1333
    %2561 = vmatpush1.bf16.msra.mxu0 %v1332
    %2562 = vmatprep.subr.bf16.mxu0 %v1341
    %2563 = vmatpush1.bf16.msra.mxu0 %v1340
    %2564 = vmatprep.subr.bf16.mxu0 %v1349
    %2565 = vmatpush1.bf16.msra.mxu0 %v1348
    %2566 = vmatprep.subr.bf16.mxu0 %v1357
    %2567 = vmatpush1.bf16.msra.mxu0 %v1356
    %2568 = vmatprep.subr.bf16.mxu0 %v1365
    %2569 = vmatpush1.bf16.msra.mxu0 %v1364
    %2570 = vmatprep.subr.bf16.mxu0 %v1373
    %2571 = vmatpush1.bf16.msra.mxu0 %v1372
    %2572 = vmatprep.subr.bf16.mxu0 %v1381
    %2573 = vmatpush1.bf16.msra.mxu0 %v1380
    %2574 = vmatprep.subr.bf16.mxu0 %v1389
    %2575 = vmatpush1.bf16.msra.mxu0 %v1388
    %2576 = vmatprep.subr.bf16.mxu0 %v1397
    %2577 = vmatpush1.bf16.msra.mxu0 %v1396
    %2578 = vmatprep.subr.bf16.mxu0 %v1405
    %2579 = vmatpush1.bf16.msra.mxu0 %v1404
    %2580 = vmatprep.subr.bf16.mxu0 %v1413
    %2581 = vmatpush1.bf16.msra.mxu0 %v1412
    %2582 = vmatprep.subr.bf16.mxu0 %v1421
    %2583 = vmatpush1.bf16.msra.mxu0 %v1420
    %2584 = vmatprep.subr.bf16.mxu0 %v1429
    %2585 = vmatpush1.bf16.msra.mxu0 %v1428
    %2586 = vmatprep.mubr.bf16.mxu0 %v2551
    %2587 = vmatmul.mubr.bf16.gmra.mrb[0].mxu0 %v2550
    %v2588 = vpop.f32.mrb[0].mxu0
    %v2589 = vadd.f32 0.0, %v2588
    %v2590 = vpop.f32.mrb[0].mxu0
    %v2591 = vadd.f32 0.0, %v2590
    %v2592 = vpop.f32.mrb[0].mxu0
    %v2593 = vpop.f32.mrb[0].mxu0
    %2594 = vdwg.mxu0
    %2595 = vmatprep.subr.bf16.mxu0 %v1311
    %2596 = vmatpush1.bf16.msra.mxu0 %v1310
    %2597 = vmatprep.subr.bf16.mxu0 %v1319
    %2598 = vmatpush1.bf16.msra.mxu0 %v1318
    %2599 = vmatprep.subr.bf16.mxu0 %v1327
    %2600 = vmatpush1.bf16.msra.mxu0 %v1326
    %2601 = vmatprep.subr.bf16.mxu0 %v1335
    %2602 = vmatpush1.bf16.msra.mxu0 %v1334
    %2603 = vmatprep.subr.bf16.mxu0 %v1343
    %2604 = vmatpush1.bf16.msra.mxu0 %v1342
    %2605 = vmatprep.subr.bf16.mxu0 %v1351
    %2606 = vmatpush1.bf16.msra.mxu0 %v1350
    %2607 = vmatprep.subr.bf16.mxu0 %v1359
    %2608 = vmatpush1.bf16.msra.mxu0 %v1358
    %2609 = vmatprep.subr.bf16.mxu0 %v1367
    %2610 = vmatpush1.bf16.msra.mxu0 %v1366
    %2611 = vmatprep.subr.bf16.mxu0 %v1375
    %2612 = vmatpush1.bf16.msra.mxu0 %v1374
    %2613 = vmatprep.subr.bf16.mxu0 %v1383
    %2614 = vmatpush1.bf16.msra.mxu0 %v1382
    %2615 = vmatprep.subr.bf16.mxu0 %v1391
    %2616 = vmatpush1.bf16.msra.mxu0 %v1390
    %2617 = vmatprep.subr.bf16.mxu0 %v1399
    %2618 = vmatpush1.bf16.msra.mxu0 %v1398
    %2619 = vmatprep.subr.bf16.mxu0 %v1407
    %2620 = vmatpush1.bf16.msra.mxu0 %v1406
    %2621 = vmatprep.subr.bf16.mxu0 %v1415
    %2622 = vmatpush1.bf16.msra.mxu0 %v1414
    %2623 = vmatprep.subr.bf16.mxu0 %v1423
    %2624 = vmatpush1.bf16.msra.mxu0 %v1422
    %2625 = vmatprep.subr.bf16.mxu0 %v1431
    %2626 = vmatpush1.bf16.msra.mxu0 %v1430
    %2627 = vmatprep.mubr.bf16.mxu0 %v2551
    %2628 = vmatmul.mubr.bf16.gmra.mrb[0].mxu0 %v2550
    %v2629 = vpop.f32.mrb[0].mxu0
    %v2630 = vadd.f32 0.0, %v2629
    %v2631 = vpop.f32.mrb[0].mxu0
    %v2632 = vadd.f32 0.0, %v2631
    %v2633 = vpop.f32.mrb[0].mxu0
    %v2634 = vpop.f32.mrb[0].mxu0
    %2635 = vdwg.mxu0
    %2636 = vmatprep.subr.bf16.mxu0 %v1313
    %2637 = vmatpush1.bf16.msra.mxu0 %v1312
    %2638 = vmatprep.subr.bf16.mxu0 %v1321
    %2639 = vmatpush1.bf16.msra.mxu0 %v1320
    %2640 = vmatprep.subr.bf16.mxu0 %v1329
    %2641 = vmatpush1.bf16.msra.mxu0 %v1328
    %2642 = vmatprep.subr.bf16.mxu0 %v1337
    %2643 = vmatpush1.bf16.msra.mxu0 %v1336
    %2644 = vmatprep.subr.bf16.mxu0 %v1345
    %2645 = vmatpush1.bf16.msra.mxu0 %v1344
    %2646 = vmatprep.subr.bf16.mxu0 %v1353
    %2647 = vmatpush1.bf16.msra.mxu0 %v1352
    %2648 = vmatprep.subr.bf16.mxu0 %v1361
    %2649 = vmatpush1.bf16.msra.mxu0 %v1360
    %2650 = vmatprep.subr.bf16.mxu0 %v1369
    %2651 = vmatpush1.bf16.msra.mxu0 %v1368
    %2652 = vmatprep.subr.bf16.mxu0 %v1377
    %2653 = vmatpush1.bf16.msra.mxu0 %v1376
    %2654 = vmatprep.subr.bf16.mxu0 %v1385
    %2655 = vmatpush1.bf16.msra.mxu0 %v1384
    %2656 = vmatprep.subr.bf16.mxu0 %v1393
    %2657 = vmatpush1.bf16.msra.mxu0 %v1392
    %2658 = vmatprep.subr.bf16.mxu0 %v1401
    %2659 = vmatpush1.bf16.msra.mxu0 %v1400
    %2660 = vmatprep.subr.bf16.mxu0 %v1409
    %2661 = vmatpush1.bf16.msra.mxu0 %v1408
    %2662 = vmatprep.subr.bf16.mxu0 %v1417
    %2663 = vmatpush1.bf16.msra.mxu0 %v1416
    %2664 = vmatprep.subr.bf16.mxu0 %v1425
    %2665 = vmatpush1.bf16.msra.mxu0 %v1424
    %2666 = vmatprep.subr.bf16.mxu0 %v1433
    %2667 = vmatpush1.bf16.msra.mxu0 %v1432
    %2668 = vmatprep.mubr.bf16.mxu0 %v2551
    %2669 = vmatmul.mubr.bf16.gmra.mrb[0].mxu0 %v2550
    %v2670 = vpop.f32.mrb[0].mxu0
    %v2671 = vadd.f32 0.0, %v2670
    %v2672 = vpop.f32.mrb[0].mxu0
    %v2673 = vadd.f32 0.0, %v2672
    %v2674 = vpop.f32.mrb[0].mxu0
    %v2675 = vpop.f32.mrb[0].mxu0
    %2676 = vdwg.mxu0
    %2677 = vmatprep.subr.bf16.mxu0 %v1315
    %2678 = vmatpush1.bf16.msra.mxu0 %v1314
    %2679 = vmatprep.subr.bf16.mxu0 %v1323
    %2680 = vmatpush1.bf16.msra.mxu0 %v1322
    %2681 = vmatprep.subr.bf16.mxu0 %v1331
    %2682 = vmatpush1.bf16.msra.mxu0 %v1330
    %2683 = vmatprep.subr.bf16.mxu0 %v1339
    %2684 = vmatpush1.bf16.msra.mxu0 %v1338
    %2685 = vmatprep.subr.bf16.mxu0 %v1347
    %2686 = vmatpush1.bf16.msra.mxu0 %v1346
    %2687 = vmatprep.subr.bf16.mxu0 %v1355
    %2688 = vmatpush1.bf16.msra.mxu0 %v1354
    %2689 = vmatprep.subr.bf16.mxu0 %v1363
    %2690 = vmatpush1.bf16.msra.mxu0 %v1362
    %2691 = vmatprep.subr.bf16.mxu0 %v1371
    %2692 = vmatpush1.bf16.msra.mxu0 %v1370
    %2693 = vmatprep.subr.bf16.mxu0 %v1379
    %2694 = vmatpush1.bf16.msra.mxu0 %v1378
    %2695 = vmatprep.subr.bf16.mxu0 %v1387
    %2696 = vmatpush1.bf16.msra.mxu0 %v1386
    %2697 = vmatprep.subr.bf16.mxu0 %v1395
    %2698 = vmatpush1.bf16.msra.mxu0 %v1394
    %2699 = vmatprep.subr.bf16.mxu0 %v1403
    %2700 = vmatpush1.bf16.msra.mxu0 %v1402
    %2701 = vmatprep.subr.bf16.mxu0 %v1411
    %2702 = vmatpush1.bf16.msra.mxu0 %v1410
    %2703 = vmatprep.subr.bf16.mxu0 %v1419
    %2704 = vmatpush1.bf16.msra.mxu0 %v1418
    %2705 = vmatprep.subr.bf16.mxu0 %v1427
    %2706 = vmatpush1.bf16.msra.mxu0 %v1426
    %2707 = vmatprep.subr.bf16.mxu0 %v1435
    %2708 = vmatpush1.bf16.msra.mxu0 %v1434
    %2709 = vmatprep.mubr.bf16.mxu0 %v2551
    %2710 = vmatmul.mubr.bf16.gmra.mrb[0].mxu0 %v2550
    %v2711 = vpop.f32.mrb[0].mxu0
    %v2712 = vadd.f32 0.0, %v2711
    %v2713 = vpop.f32.mrb[0].mxu0
    %v2714 = vadd.f32 0.0, %v2713
    %v2715 = vpop.f32.mrb[0].mxu0
    %v2716 = vpop.f32.mrb[0].mxu0
    %2717 = vdwg.mxu0
    %v2726 = vrot.slane %v2589, 3
    %v2727 = vrot.slane %v2591, 3
    %v2728 = vrot.slane %v2630, 3
    %v2729 = vrot.slane %v2632, 3
    %v2730 = vrot.slane %v2671, 3
    %v2731 = vrot.slane %v2673, 3
    %v2732 = vrot.slane %v2712, 3
    %v2733 = vrot.slane %v2714, 3
    %v2742 = vadd.f32 %v633, %v2726
    %v2743 = vadd.f32 %v635, %v2727
    %v2744 = vadd.f32 %v676, %v2728
    %v2745 = vadd.f32 %v678, %v2729
    %v2746 = vadd.f32 %v719, %v2730
    %v2747 = vadd.f32 %v721, %v2731
    %v2748 = vadd.f32 %v762, %v2732
    %v2749 = vadd.f32 %v764, %v2733
    %v2750 = vmul.f32 %v2742, 0.5
    %v2751 = vmul.f32 %v2743, 0.5
    %v2752 = vtanh.pop %v2750
    %v2753 = vtanh.pop %v2751
    %v2754 = vmul.f32 %v2752, 0.5
    %v2755 = vmul.f32 %v2753, 0.5
    %v2756 = vadd.f32 %v2754, 0.5
    %v2757 = vadd.f32 %v2755, 0.5
    %v2758 = vtanh.pop %v2746
    %v2759 = vtanh.pop %v2747
    %v2760 = vmul.f32 %v2748, 0.5
    %v2761 = vmul.f32 %v2749, 0.5
    %v2762 = vtanh.pop %v2760
    %v2763 = vtanh.pop %v2761
    %v2764 = vmul.f32 %v2762, 0.5
    %v2765 = vmul.f32 %v2763, 0.5
    %v2766 = vadd.f32 %v2764, 0.5
    %v2767 = vadd.f32 %v2765, 0.5
    %v2768 = vmul.f32 %v2744, 0.5
    %v2769 = vmul.f32 %v2745, 0.5
    %v2770 = vtanh.pop %v2768
    %v2771 = vtanh.pop %v2769
    %v2772 = vmul.f32 %v2770, 0.5
    %v2773 = vmul.f32 %v2771, 0.5
    %v2774 = vadd.f32 %v2772, 0.5
    %v2775 = vadd.f32 %v2773, 0.5
    %v2778 = vrot.slane %v2540, 7
    %v2779 = vrot.slane %v2541, 7
    %v2782 = vmul.f32 %v2774, %v2778
    %v2783 = vmul.f32 %v2775, %v2779
    %v2784 = vmul.f32 %v2756, %v2758
    %v2785 = vmul.f32 %v2757, %v2759
    %v2786 = vadd.f32 %v2782, %v2784
    %v2787 = vadd.f32 %v2783, %v2785
    %v2788 = vtanh.pop %v2786
    %v2789 = vtanh.pop %v2787
    %v2790 = vmul.f32 %v2766, %v2788
    %v2791 = vmul.f32 %v2767, %v2789
    %v2792 = vpack.c.bf16 %v2790, %v2790
    %v2793 = vpack.c.bf16 %v2791, %v2791
    %v2795 = vshrl.u32 %v2792, 16
    %v2797 = vrot.slane %v2795, 2
    %v2799 = vshrl.u32 %v2793, 16
    %v2801 = vrot.slane %v2799, 2
    %2804 = vmatprep.subr.bf16.mxu0 %v1309
    %2805 = vmatpush1.bf16.msra.mxu0 %v1308
    %2806 = vmatprep.subr.bf16.mxu0 %v1317
    %2807 = vmatpush1.bf16.msra.mxu0 %v1316
    %2808 = vmatprep.subr.bf16.mxu0 %v1325
    %2809 = vmatpush1.bf16.msra.mxu0 %v1324
    %2810 = vmatprep.subr.bf16.mxu0 %v1333
    %2811 = vmatpush1.bf16.msra.mxu0 %v1332
    %2812 = vmatprep.subr.bf16.mxu0 %v1341
    %2813 = vmatpush1.bf16.msra.mxu0 %v1340
    %2814 = vmatprep.subr.bf16.mxu0 %v1349
    %2815 = vmatpush1.bf16.msra.mxu0 %v1348
    %2816 = vmatprep.subr.bf16.mxu0 %v1357
    %2817 = vmatpush1.bf16.msra.mxu0 %v1356
    %2818 = vmatprep.subr.bf16.mxu0 %v1365
    %2819 = vmatpush1.bf16.msra.mxu0 %v1364
    %2820 = vmatprep.subr.bf16.mxu0 %v1373
    %2821 = vmatpush1.bf16.msra.mxu0 %v1372
    %2822 = vmatprep.subr.bf16.mxu0 %v1381
    %2823 = vmatpush1.bf16.msra.mxu0 %v1380
    %2824 = vmatprep.subr.bf16.mxu0 %v1389
    %2825 = vmatpush1.bf16.msra.mxu0 %v1388
    %2826 = vmatprep.subr.bf16.mxu0 %v1397
    %2827 = vmatpush1.bf16.msra.mxu0 %v1396
    %2828 = vmatprep.subr.bf16.mxu0 %v1405
    %2829 = vmatpush1.bf16.msra.mxu0 %v1404
    %2830 = vmatprep.subr.bf16.mxu0 %v1413
    %2831 = vmatpush1.bf16.msra.mxu0 %v1412
    %2832 = vmatprep.subr.bf16.mxu0 %v1421
    %2833 = vmatpush1.bf16.msra.mxu0 %v1420
    %2834 = vmatprep.subr.bf16.mxu0 %v1429
    %2835 = vmatpush1.bf16.msra.mxu0 %v1428
    %2836 = vmatprep.mubr.bf16.mxu0 %v2801
    %2837 = vmatmul.mubr.bf16.gmra.mrb[0].mxu0 %v2797
    %v2838 = vpop.f32.mrb[0].mxu0
    %v2839 = vadd.f32 0.0, %v2838
    %v2840 = vpop.f32.mrb[0].mxu0
    %v2841 = vadd.f32 0.0, %v2840
    %v2842 = vpop.f32.mrb[0].mxu0
    %v2843 = vpop.f32.mrb[0].mxu0
    %2844 = vdwg.mxu0
    %2845 = vmatprep.subr.bf16.mxu0 %v1311
    %2846 = vmatpush1.bf16.msra.mxu0 %v1310
    %2847 = vmatprep.subr.bf16.mxu0 %v1319
    %2848 = vmatpush1.bf16.msra.mxu0 %v1318
    %2849 = vmatprep.subr.bf16.mxu0 %v1327
    %2850 = vmatpush1.bf16.msra.mxu0 %v1326
    %2851 = vmatprep.subr.bf16.mxu0 %v1335
    %2852 = vmatpush1.bf16.msra.mxu0 %v1334
    %2853 = vmatprep.subr.bf16.mxu0 %v1343
    %2854 = vmatpush1.bf16.msra.mxu0 %v1342
    %2855 = vmatprep.subr.bf16.mxu0 %v1351
    %2856 = vmatpush1.bf16.msra.mxu0 %v1350
    %2857 = vmatprep.subr.bf16.mxu0 %v1359
    %2858 = vmatpush1.bf16.msra.mxu0 %v1358
    %2859 = vmatprep.subr.bf16.mxu0 %v1367
    %2860 = vmatpush1.bf16.msra.mxu0 %v1366
    %2861 = vmatprep.subr.bf16.mxu0 %v1375
    %2862 = vmatpush1.bf16.msra.mxu0 %v1374
    %2863 = vmatprep.subr.bf16.mxu0 %v1383
    %2864 = vmatpush1.bf16.msra.mxu0 %v1382
    %2865 = vmatprep.subr.bf16.mxu0 %v1391
    %2866 = vmatpush1.bf16.msra.mxu0 %v1390
    %2867 = vmatprep.subr.bf16.mxu0 %v1399
    %2868 = vmatpush1.bf16.msra.mxu0 %v1398
    %2869 = vmatprep.subr.bf16.mxu0 %v1407
    %2870 = vmatpush1.bf16.msra.mxu0 %v1406
    %2871 = vmatprep.subr.bf16.mxu0 %v1415
    %2872 = vmatpush1.bf16.msra.mxu0 %v1414
    %2873 = vmatprep.subr.bf16.mxu0 %v1423
    %2874 = vmatpush1.bf16.msra.mxu0 %v1422
    %2875 = vmatprep.subr.bf16.mxu0 %v1431
    %2876 = vmatpush1.bf16.msra.mxu0 %v1430
    %2877 = vmatprep.mubr.bf16.mxu0 %v2801
    %2878 = vmatmul.mubr.bf16.gmra.mrb[0].mxu0 %v2797
    %v2879 = vpop.f32.mrb[0].mxu0
    %v2880 = vadd.f32 0.0, %v2879
    %v2881 = vpop.f32.mrb[0].mxu0
    %v2882 = vadd.f32 0.0, %v2881
    %v2883 = vpop.f32.mrb[0].mxu0
    %v2884 = vpop.f32.mrb[0].mxu0
    %2885 = vdwg.mxu0
    %2886 = vmatprep.subr.bf16.mxu0 %v1313
    %2887 = vmatpush1.bf16.msra.mxu0 %v1312
    %2888 = vmatprep.subr.bf16.mxu0 %v1321
    %2889 = vmatpush1.bf16.msra.mxu0 %v1320
    %2890 = vmatprep.subr.bf16.mxu0 %v1329
    %2891 = vmatpush1.bf16.msra.mxu0 %v1328
    %2892 = vmatprep.subr.bf16.mxu0 %v1337
    %2893 = vmatpush1.bf16.msra.mxu0 %v1336
    %2894 = vmatprep.subr.bf16.mxu0 %v1345
    %2895 = vmatpush1.bf16.msra.mxu0 %v1344
    %2896 = vmatprep.subr.bf16.mxu0 %v1353
    %2897 = vmatpush1.bf16.msra.mxu0 %v1352
    %2898 = vmatprep.subr.bf16.mxu0 %v1361
    %2899 = vmatpush1.bf16.msra.mxu0 %v1360
    %2900 = vmatprep.subr.bf16.mxu0 %v1369
    %2901 = vmatpush1.bf16.msra.mxu0 %v1368
    %2902 = vmatprep.subr.bf16.mxu0 %v1377
    %2903 = vmatpush1.bf16.msra.mxu0 %v1376
    %2904 = vmatprep.subr.bf16.mxu0 %v1385
    %2905 = vmatpush1.bf16.msra.mxu0 %v1384
    %2906 = vmatprep.subr.bf16.mxu0 %v1393
    %2907 = vmatpush1.bf16.msra.mxu0 %v1392
    %2908 = vmatprep.subr.bf16.mxu0 %v1401
    %2909 = vmatpush1.bf16.msra.mxu0 %v1400
    %2910 = vmatprep.subr.bf16.mxu0 %v1409
    %2911 = vmatpush1.bf16.msra.mxu0 %v1408
    %2912 = vmatprep.subr.bf16.mxu0 %v1417
    %2913 = vmatpush1.bf16.msra.mxu0 %v1416
    %2914 = vmatprep.subr.bf16.mxu0 %v1425
    %2915 = vmatpush1.bf16.msra.mxu0 %v1424
    %2916 = vmatprep.subr.bf16.mxu0 %v1433
    %2917 = vmatpush1.bf16.msra.mxu0 %v1432
    %2918 = vmatprep.mubr.bf16.mxu0 %v2801
    %2919 = vmatmul.mubr.bf16.gmra.mrb[0].mxu0 %v2797
    %v2920 = vpop.f32.mrb[0].mxu0
    %v2921 = vadd.f32 0.0, %v2920
    %v2922 = vpop.f32.mrb[0].mxu0
    %v2923 = vadd.f32 0.0, %v2922
    %v2924 = vpop.f32.mrb[0].mxu0
    %v2925 = vpop.f32.mrb[0].mxu0
    %2926 = vdwg.mxu0
    %2927 = vmatprep.subr.bf16.mxu0 %v1315
    %2928 = vmatpush1.bf16.msra.mxu0 %v1314
    %2929 = vmatprep.subr.bf16.mxu0 %v1323
    %2930 = vmatpush1.bf16.msra.mxu0 %v1322
    %2931 = vmatprep.subr.bf16.mxu0 %v1331
    %2932 = vmatpush1.bf16.msra.mxu0 %v1330
    %2933 = vmatprep.subr.bf16.mxu0 %v1339
    %2934 = vmatpush1.bf16.msra.mxu0 %v1338
    %2935 = vmatprep.subr.bf16.mxu0 %v1347
    %2936 = vmatpush1.bf16.msra.mxu0 %v1346
    %2937 = vmatprep.subr.bf16.mxu0 %v1355
    %2938 = vmatpush1.bf16.msra.mxu0 %v1354
    %2939 = vmatprep.subr.bf16.mxu0 %v1363
    %2940 = vmatpush1.bf16.msra.mxu0 %v1362
    %2941 = vmatprep.subr.bf16.mxu0 %v1371
    %2942 = vmatpush1.bf16.msra.mxu0 %v1370
    %2943 = vmatprep.subr.bf16.mxu0 %v1379
    %2944 = vmatpush1.bf16.msra.mxu0 %v1378
    %2945 = vmatprep.subr.bf16.mxu0 %v1387
    %2946 = vmatpush1.bf16.msra.mxu0 %v1386
    %2947 = vmatprep.subr.bf16.mxu0 %v1395
    %2948 = vmatpush1.bf16.msra.mxu0 %v1394
    %2949 = vmatprep.subr.bf16.mxu0 %v1403
    %2950 = vmatpush1.bf16.msra.mxu0 %v1402
    %2951 = vmatprep.subr.bf16.mxu0 %v1411
    %2952 = vmatpush1.bf16.msra.mxu0 %v1410
    %2953 = vmatprep.subr.bf16.mxu0 %v1419
    %2954 = vmatpush1.bf16.msra.mxu0 %v1418
    %2955 = vmatprep.subr.bf16.mxu0 %v1427
    %2956 = vmatpush1.bf16.msra.mxu0 %v1426
    %2957 = vmatprep.subr.bf16.mxu0 %v1435
    %2958 = vmatpush1.bf16.msra.mxu0 %v1434
    %2959 = vmatprep.mubr.bf16.mxu0 %v2801
    %2960 = vmatmul.mubr.bf16.gmra.mrb[0].mxu0 %v2797
    %v2961 = vpop.f32.mrb[0].mxu0
    %v2962 = vadd.f32 0.0, %v2961
    %v2963 = vpop.f32.mrb[0].mxu0
    %v2964 = vadd.f32 0.0, %v2963
    %v2965 = vpop.f32.mrb[0].mxu0
    %v2966 = vpop.f32.mrb[0].mxu0
    %2967 = vdwg.mxu0
    %v2976 = vrot.slane %v2839, 2
    %v2977 = vrot.slane %v2841, 2
    %v2978 = vrot.slane %v2880, 2
    %v2979 = vrot.slane %v2882, 2
    %v2980 = vrot.slane %v2921, 2
    %v2981 = vrot.slane %v2923, 2
    %v2982 = vrot.slane %v2962, 2
    %v2983 = vrot.slane %v2964, 2
    %v2992 = vadd.f32 %v633, %v2976
    %v2993 = vadd.f32 %v635, %v2977
    %v2994 = vadd.f32 %v676, %v2978
    %v2995 = vadd.f32 %v678, %v2979
    %v2996 = vadd.f32 %v719, %v2980
    %v2997 = vadd.f32 %v721, %v2981
    %v2998 = vadd.f32 %v762, %v2982
    %v2999 = vadd.f32 %v764, %v2983
    %v3000 = vmul.f32 %v2992, 0.5
    %v3001 = vmul.f32 %v2993, 0.5
    %v3002 = vtanh.pop %v3000
    %v3003 = vtanh.pop %v3001
    %v3004 = vmul.f32 %v3002, 0.5
    %v3005 = vmul.f32 %v3003, 0.5
    %v3006 = vadd.f32 %v3004, 0.5
    %v3007 = vadd.f32 %v3005, 0.5
    %v3008 = vtanh.pop %v2996
    %v3009 = vtanh.pop %v2997
    %v3010 = vmul.f32 %v2998, 0.5
    %v3011 = vmul.f32 %v2999, 0.5
    %v3012 = vtanh.pop %v3010
    %v3013 = vtanh.pop %v3011
    %v3014 = vmul.f32 %v3012, 0.5
    %v3015 = vmul.f32 %v3013, 0.5
    %v3016 = vadd.f32 %v3014, 0.5
    %v3017 = vadd.f32 %v3015, 0.5
    %v3018 = vmul.f32 %v2994, 0.5
    %v3019 = vmul.f32 %v2995, 0.5
    %v3020 = vtanh.pop %v3018
    %v3021 = vtanh.pop %v3019
    %v3022 = vmul.f32 %v3020, 0.5
    %v3023 = vmul.f32 %v3021, 0.5
    %v3024 = vadd.f32 %v3022, 0.5
    %v3025 = vadd.f32 %v3023, 0.5
    %v3028 = vrot.slane %v2786, 7
    %v3029 = vrot.slane %v2787, 7
    %v3032 = vmul.f32 %v3024, %v3028
    %v3033 = vmul.f32 %v3025, %v3029
    %v3034 = vmul.f32 %v3006, %v3008
    %v3035 = vmul.f32 %v3007, %v3009
    %v3036 = vadd.f32 %v3032, %v3034
    %v3037 = vadd.f32 %v3033, %v3035
    %v3038 = vtanh.pop %v3036
    %v3039 = vtanh.pop %v3037
    %v3040 = vmul.f32 %v3016, %v3038
    %v3041 = vmul.f32 %v3017, %v3039
    %v3042 = vpack.c.bf16 %v3040, %v3040
    %v3043 = vpack.c.bf16 %v3041, %v3041
    %v3046 = vrot.slane %v3042, 3
    %v3047 = vrot.slane %v3043, 3
    %3050 = vmatprep.subr.bf16.mxu0 %v1309
    %3051 = vmatpush1.bf16.msra.mxu0 %v1308
    %3052 = vmatprep.subr.bf16.mxu0 %v1317
    %3053 = vmatpush1.bf16.msra.mxu0 %v1316
    %3054 = vmatprep.subr.bf16.mxu0 %v1325
    %3055 = vmatpush1.bf16.msra.mxu0 %v1324
    %3056 = vmatprep.subr.bf16.mxu0 %v1333
    %3057 = vmatpush1.bf16.msra.mxu0 %v1332
    %3058 = vmatprep.subr.bf16.mxu0 %v1341
    %3059 = vmatpush1.bf16.msra.mxu0 %v1340
    %3060 = vmatprep.subr.bf16.mxu0 %v1349
    %3061 = vmatpush1.bf16.msra.mxu0 %v1348
    %3062 = vmatprep.subr.bf16.mxu0 %v1357
    %3063 = vmatpush1.bf16.msra.mxu0 %v1356
    %3064 = vmatprep.subr.bf16.mxu0 %v1365
    %3065 = vmatpush1.bf16.msra.mxu0 %v1364
    %3066 = vmatprep.subr.bf16.mxu0 %v1373
    %3067 = vmatpush1.bf16.msra.mxu0 %v1372
    %3068 = vmatprep.subr.bf16.mxu0 %v1381
    %3069 = vmatpush1.bf16.msra.mxu0 %v1380
    %3070 = vmatprep.subr.bf16.mxu0 %v1389
    %3071 = vmatpush1.bf16.msra.mxu0 %v1388
    %3072 = vmatprep.subr.bf16.mxu0 %v1397
    %3073 = vmatpush1.bf16.msra.mxu0 %v1396
    %3074 = vmatprep.subr.bf16.mxu0 %v1405
    %3075 = vmatpush1.bf16.msra.mxu0 %v1404
    %3076 = vmatprep.subr.bf16.mxu0 %v1413
    %3077 = vmatpush1.bf16.msra.mxu0 %v1412
    %3078 = vmatprep.subr.bf16.mxu0 %v1421
    %3079 = vmatpush1.bf16.msra.mxu0 %v1420
    %3080 = vmatprep.subr.bf16.mxu0 %v1429
    %3081 = vmatpush1.bf16.msra.mxu0 %v1428
    %3082 = vmatprep.mubr.bf16.mxu0 %v3047
    %3083 = vmatmul.mubr.bf16.gmra.mrb[0].mxu0 %v3046
    %v3084 = vpop.f32.mrb[0].mxu0
    %v3085 = vadd.f32 0.0, %v3084
    %v3086 = vpop.f32.mrb[0].mxu0
    %v3087 = vadd.f32 0.0, %v3086
    %v3088 = vpop.f32.mrb[0].mxu0
    %v3089 = vpop.f32.mrb[0].mxu0
    %3090 = vdwg.mxu0
    %3091 = vmatprep.subr.bf16.mxu0 %v1311
    %3092 = vmatpush1.bf16.msra.mxu0 %v1310
    %3093 = vmatprep.subr.bf16.mxu0 %v1319
    %3094 = vmatpush1.bf16.msra.mxu0 %v1318
    %3095 = vmatprep.subr.bf16.mxu0 %v1327
    %3096 = vmatpush1.bf16.msra.mxu0 %v1326
    %3097 = vmatprep.subr.bf16.mxu0 %v1335
    %3098 = vmatpush1.bf16.msra.mxu0 %v1334
    %3099 = vmatprep.subr.bf16.mxu0 %v1343
    %3100 = vmatpush1.bf16.msra.mxu0 %v1342
    %3101 = vmatprep.subr.bf16.mxu0 %v1351
    %3102 = vmatpush1.bf16.msra.mxu0 %v1350
    %3103 = vmatprep.subr.bf16.mxu0 %v1359
    %3104 = vmatpush1.bf16.msra.mxu0 %v1358
    %3105 = vmatprep.subr.bf16.mxu0 %v1367
    %3106 = vmatpush1.bf16.msra.mxu0 %v1366
    %3107 = vmatprep.subr.bf16.mxu0 %v1375
    %3108 = vmatpush1.bf16.msra.mxu0 %v1374
    %3109 = vmatprep.subr.bf16.mxu0 %v1383
    %3110 = vmatpush1.bf16.msra.mxu0 %v1382
    %3111 = vmatprep.subr.bf16.mxu0 %v1391
    %3112 = vmatpush1.bf16.msra.mxu0 %v1390
    %3113 = vmatprep.subr.bf16.mxu0 %v1399
    %3114 = vmatpush1.bf16.msra.mxu0 %v1398
    %3115 = vmatprep.subr.bf16.mxu0 %v1407
    %3116 = vmatpush1.bf16.msra.mxu0 %v1406
    %3117 = vmatprep.subr.bf16.mxu0 %v1415
    %3118 = vmatpush1.bf16.msra.mxu0 %v1414
    %3119 = vmatprep.subr.bf16.mxu0 %v1423
    %3120 = vmatpush1.bf16.msra.mxu0 %v1422
    %3121 = vmatprep.subr.bf16.mxu0 %v1431
    %3122 = vmatpush1.bf16.msra.mxu0 %v1430
    %3123 = vmatprep.mubr.bf16.mxu0 %v3047
    %3124 = vmatmul.mubr.bf16.gmra.mrb[0].mxu0 %v3046
    %v3125 = vpop.f32.mrb[0].mxu0
    %v3126 = vadd.f32 0.0, %v3125
    %v3127 = vpop.f32.mrb[0].mxu0
    %v3128 = vadd.f32 0.0, %v3127
    %v3129 = vpop.f32.mrb[0].mxu0
    %v3130 = vpop.f32.mrb[0].mxu0
    %3131 = vdwg.mxu0
    %3132 = vmatprep.subr.bf16.mxu0 %v1313
    %3133 = vmatpush1.bf16.msra.mxu0 %v1312
    %3134 = vmatprep.subr.bf16.mxu0 %v1321
    %3135 = vmatpush1.bf16.msra.mxu0 %v1320
    %3136 = vmatprep.subr.bf16.mxu0 %v1329
    %3137 = vmatpush1.bf16.msra.mxu0 %v1328
    %3138 = vmatprep.subr.bf16.mxu0 %v1337
    %3139 = vmatpush1.bf16.msra.mxu0 %v1336
    %3140 = vmatprep.subr.bf16.mxu0 %v1345
    %3141 = vmatpush1.bf16.msra.mxu0 %v1344
    %3142 = vmatprep.subr.bf16.mxu0 %v1353
    %3143 = vmatpush1.bf16.msra.mxu0 %v1352
    %3144 = vmatprep.subr.bf16.mxu0 %v1361
    %3145 = vmatpush1.bf16.msra.mxu0 %v1360
    %3146 = vmatprep.subr.bf16.mxu0 %v1369
    %3147 = vmatpush1.bf16.msra.mxu0 %v1368
    %3148 = vmatprep.subr.bf16.mxu0 %v1377
    %3149 = vmatpush1.bf16.msra.mxu0 %v1376
    %3150 = vmatprep.subr.bf16.mxu0 %v1385
    %3151 = vmatpush1.bf16.msra.mxu0 %v1384
    %3152 = vmatprep.subr.bf16.mxu0 %v1393
    %3153 = vmatpush1.bf16.msra.mxu0 %v1392
    %3154 = vmatprep.subr.bf16.mxu0 %v1401
    %3155 = vmatpush1.bf16.msra.mxu0 %v1400
    %3156 = vmatprep.subr.bf16.mxu0 %v1409
    %3157 = vmatpush1.bf16.msra.mxu0 %v1408
    %3158 = vmatprep.subr.bf16.mxu0 %v1417
    %3159 = vmatpush1.bf16.msra.mxu0 %v1416
    %3160 = vmatprep.subr.bf16.mxu0 %v1425
    %3161 = vmatpush1.bf16.msra.mxu0 %v1424
    %3162 = vmatprep.subr.bf16.mxu0 %v1433
    %3163 = vmatpush1.bf16.msra.mxu0 %v1432
    %3164 = vmatprep.mubr.bf16.mxu0 %v3047
    %3165 = vmatmul.mubr.bf16.gmra.mrb[0].mxu0 %v3046
    %v3166 = vpop.f32.mrb[0].mxu0
    %v3167 = vadd.f32 0.0, %v3166
    %v3168 = vpop.f32.mrb[0].mxu0
    %v3169 = vadd.f32 0.0, %v3168
    %v3170 = vpop.f32.mrb[0].mxu0
    %v3171 = vpop.f32.mrb[0].mxu0
    %3172 = vdwg.mxu0
    %3173 = vmatprep.subr.bf16.mxu0 %v1315
    %3174 = vmatpush1.bf16.msra.mxu0 %v1314
    %3175 = vmatprep.subr.bf16.mxu0 %v1323
    %3176 = vmatpush1.bf16.msra.mxu0 %v1322
    %3177 = vmatprep.subr.bf16.mxu0 %v1331
    %3178 = vmatpush1.bf16.msra.mxu0 %v1330
    %3179 = vmatprep.subr.bf16.mxu0 %v1339
    %3180 = vmatpush1.bf16.msra.mxu0 %v1338
    %3181 = vmatprep.subr.bf16.mxu0 %v1347
    %3182 = vmatpush1.bf16.msra.mxu0 %v1346
    %3183 = vmatprep.subr.bf16.mxu0 %v1355
    %3184 = vmatpush1.bf16.msra.mxu0 %v1354
    %3185 = vmatprep.subr.bf16.mxu0 %v1363
    %3186 = vmatpush1.bf16.msra.mxu0 %v1362
    %3187 = vmatprep.subr.bf16.mxu0 %v1371
    %3188 = vmatpush1.bf16.msra.mxu0 %v1370
    %3189 = vmatprep.subr.bf16.mxu0 %v1379
    %3190 = vmatpush1.bf16.msra.mxu0 %v1378
    %3191 = vmatprep.subr.bf16.mxu0 %v1387
    %3192 = vmatpush1.bf16.msra.mxu0 %v1386
    %3193 = vmatprep.subr.bf16.mxu0 %v1395
    %3194 = vmatpush1.bf16.msra.mxu0 %v1394
    %3195 = vmatprep.subr.bf16.mxu0 %v1403
    %3196 = vmatpush1.bf16.msra.mxu0 %v1402
    %3197 = vmatprep.subr.bf16.mxu0 %v1411
    %3198 = vmatpush1.bf16.msra.mxu0 %v1410
    %3199 = vmatprep.subr.bf16.mxu0 %v1419
    %3200 = vmatpush1.bf16.msra.mxu0 %v1418
    %3201 = vmatprep.subr.bf16.mxu0 %v1427
    %3202 = vmatpush1.bf16.msra.mxu0 %v1426
    %3203 = vmatprep.subr.bf16.mxu0 %v1435
    %3204 = vmatpush1.bf16.msra.mxu0 %v1434
    %3205 = vmatprep.mubr.bf16.mxu0 %v3047
    %3206 = vmatmul.mubr.bf16.gmra.mrb[0].mxu0 %v3046
    %v3207 = vpop.f32.mrb[0].mxu0
    %v3208 = vadd.f32 0.0, %v3207
    %v3209 = vpop.f32.mrb[0].mxu0
    %v3210 = vadd.f32 0.0, %v3209
    %v3211 = vpop.f32.mrb[0].mxu0
    %v3212 = vpop.f32.mrb[0].mxu0
    %3213 = vdwg.mxu0
    %v3222 = vrot.slane %v3085, 1
    %v3223 = vrot.slane %v3087, 1
    %v3224 = vrot.slane %v3126, 1
    %v3225 = vrot.slane %v3128, 1
    %v3226 = vrot.slane %v3167, 1
    %v3227 = vrot.slane %v3169, 1
    %v3228 = vrot.slane %v3208, 1
    %v3229 = vrot.slane %v3210, 1
    %v3238 = vadd.f32 %v633, %v3222
    %v3239 = vadd.f32 %v635, %v3223
    %v3240 = vadd.f32 %v676, %v3224
    %v3241 = vadd.f32 %v678, %v3225
    %v3242 = vadd.f32 %v719, %v3226
    %v3243 = vadd.f32 %v721, %v3227
    %v3244 = vadd.f32 %v762, %v3228
    %v3245 = vadd.f32 %v764, %v3229
    %v3246 = vmul.f32 %v3238, 0.5
    %v3247 = vmul.f32 %v3239, 0.5
    %v3248 = vtanh.pop %v3246
    %v3249 = vtanh.pop %v3247
    %v3250 = vmul.f32 %v3248, 0.5
    %v3251 = vmul.f32 %v3249, 0.5
    %v3252 = vadd.f32 %v3250, 0.5
    %v3253 = vadd.f32 %v3251, 0.5
    %v3254 = vtanh.pop %v3242
    %v3255 = vtanh.pop %v3243
    %v3256 = vmul.f32 %v3244, 0.5
    %v3257 = vmul.f32 %v3245, 0.5
    %v3258 = vtanh.pop %v3256
    %v3259 = vtanh.pop %v3257
    %v3260 = vmul.f32 %v3258, 0.5
    %v3261 = vmul.f32 %v3259, 0.5
    %v3262 = vadd.f32 %v3260, 0.5
    %v3263 = vadd.f32 %v3261, 0.5
    %v3264 = vmul.f32 %v3240, 0.5
    %v3265 = vmul.f32 %v3241, 0.5
    %v3266 = vtanh.pop %v3264
    %v3267 = vtanh.pop %v3265
    %v3268 = vmul.f32 %v3266, 0.5
    %v3269 = vmul.f32 %v3267, 0.5
    %v3270 = vadd.f32 %v3268, 0.5
    %v3271 = vadd.f32 %v3269, 0.5
    %v3274 = vrot.slane %v3036, 7
    %v3275 = vrot.slane %v3037, 7
    %v3278 = vmul.f32 %v3270, %v3274
    %v3279 = vmul.f32 %v3271, %v3275
    %v3280 = vmul.f32 %v3252, %v3254
    %v3281 = vmul.f32 %v3253, %v3255
    %v3282 = vadd.f32 %v3278, %v3280
    %v3283 = vadd.f32 %v3279, %v3281
    %v3284 = vtanh.pop %v3282
    %v3285 = vtanh.pop %v3283
    %v3286 = vmul.f32 %v3262, %v3284
    %v3287 = vmul.f32 %v3263, %v3285
    %v3288 = vpack.c.bf16 %v3286, %v3286
    %v3289 = vpack.c.bf16 %v3287, %v3287
    %v3291 = vshrl.u32 %v3288, 16
    %v3293 = vrot.slane %v3291, 3
    %v3295 = vshrl.u32 %v3289, 16
    %v3297 = vrot.slane %v3295, 3
    %3300 = vmatprep.subr.bf16.mxu0 %v1309
    %3301 = vmatpush1.bf16.msra.mxu0 %v1308
    %3302 = vmatprep.subr.bf16.mxu0 %v1317
    %3303 = vmatpush1.bf16.msra.mxu0 %v1316
    %3304 = vmatprep.subr.bf16.mxu0 %v1325
    %3305 = vmatpush1.bf16.msra.mxu0 %v1324
    %3306 = vmatprep.subr.bf16.mxu0 %v1333
    %3307 = vmatpush1.bf16.msra.mxu0 %v1332
    %3308 = vmatprep.subr.bf16.mxu0 %v1341
    %3309 = vmatpush1.bf16.msra.mxu0 %v1340
    %3310 = vmatprep.subr.bf16.mxu0 %v1349
    %3311 = vmatpush1.bf16.msra.mxu0 %v1348
    %3312 = vmatprep.subr.bf16.mxu0 %v1357
    %3313 = vmatpush1.bf16.msra.mxu0 %v1356
    %3314 = vmatprep.subr.bf16.mxu0 %v1365
    %3315 = vmatpush1.bf16.msra.mxu0 %v1364
    %3316 = vmatprep.subr.bf16.mxu0 %v1373
    %3317 = vmatpush1.bf16.msra.mxu0 %v1372
    %3318 = vmatprep.subr.bf16.mxu0 %v1381
    %3319 = vmatpush1.bf16.msra.mxu0 %v1380
    %3320 = vmatprep.subr.bf16.mxu0 %v1389
    %3321 = vmatpush1.bf16.msra.mxu0 %v1388
    %3322 = vmatprep.subr.bf16.mxu0 %v1397
    %3323 = vmatpush1.bf16.msra.mxu0 %v1396
    %3324 = vmatprep.subr.bf16.mxu0 %v1405
    %3325 = vmatpush1.bf16.msra.mxu0 %v1404
    %3326 = vmatprep.subr.bf16.mxu0 %v1413
    %3327 = vmatpush1.bf16.msra.mxu0 %v1412
    %3328 = vmatprep.subr.bf16.mxu0 %v1421
    %3329 = vmatpush1.bf16.msra.mxu0 %v1420
    %3330 = vmatprep.subr.bf16.mxu0 %v1429
    %3331 = vmatpush1.bf16.msra.mxu0 %v1428
    %3332 = vmatprep.mubr.bf16.mxu0 %v3297
    %3333 = vmatmul.mubr.bf16.gmra.mrb[0].mxu0 %v3293
    %v3334 = vpop.f32.mrb[0].mxu0
    %v3335 = vadd.f32 0.0, %v3334
    %v3336 = vpop.f32.mrb[0].mxu0
    %v3337 = vadd.f32 0.0, %v3336
    %v3338 = vpop.f32.mrb[0].mxu0
    %v3339 = vpop.f32.mrb[0].mxu0
    %3340 = vdwg.mxu0
    %3341 = vmatprep.subr.bf16.mxu0 %v1311
    %3342 = vmatpush1.bf16.msra.mxu0 %v1310
    %3343 = vmatprep.subr.bf16.mxu0 %v1319
    %3344 = vmatpush1.bf16.msra.mxu0 %v1318
    %3345 = vmatprep.subr.bf16.mxu0 %v1327
    %3346 = vmatpush1.bf16.msra.mxu0 %v1326
    %3347 = vmatprep.subr.bf16.mxu0 %v1335
    %3348 = vmatpush1.bf16.msra.mxu0 %v1334
    %3349 = vmatprep.subr.bf16.mxu0 %v1343
    %3350 = vmatpush1.bf16.msra.mxu0 %v1342
    %3351 = vmatprep.subr.bf16.mxu0 %v1351
    %3352 = vmatpush1.bf16.msra.mxu0 %v1350
    %3353 = vmatprep.subr.bf16.mxu0 %v1359
    %3354 = vmatpush1.bf16.msra.mxu0 %v1358
    %3355 = vmatprep.subr.bf16.mxu0 %v1367
    %3356 = vmatpush1.bf16.msra.mxu0 %v1366
    %3357 = vmatprep.subr.bf16.mxu0 %v1375
    %3358 = vmatpush1.bf16.msra.mxu0 %v1374
    %3359 = vmatprep.subr.bf16.mxu0 %v1383
    %3360 = vmatpush1.bf16.msra.mxu0 %v1382
    %3361 = vmatprep.subr.bf16.mxu0 %v1391
    %3362 = vmatpush1.bf16.msra.mxu0 %v1390
    %3363 = vmatprep.subr.bf16.mxu0 %v1399
    %3364 = vmatpush1.bf16.msra.mxu0 %v1398
    %3365 = vmatprep.subr.bf16.mxu0 %v1407
    %3366 = vmatpush1.bf16.msra.mxu0 %v1406
    %3367 = vmatprep.subr.bf16.mxu0 %v1415
    %3368 = vmatpush1.bf16.msra.mxu0 %v1414
    %3369 = vmatprep.subr.bf16.mxu0 %v1423
    %3370 = vmatpush1.bf16.msra.mxu0 %v1422
    %3371 = vmatprep.subr.bf16.mxu0 %v1431
    %3372 = vmatpush1.bf16.msra.mxu0 %v1430
    %3373 = vmatprep.mubr.bf16.mxu0 %v3297
    %3374 = vmatmul.mubr.bf16.gmra.mrb[0].mxu0 %v3293
    %v3375 = vpop.f32.mrb[0].mxu0
    %v3376 = vadd.f32 0.0, %v3375
    %v3377 = vpop.f32.mrb[0].mxu0
    %v3378 = vadd.f32 0.0, %v3377
    %v3379 = vpop.f32.mrb[0].mxu0
    %v3380 = vpop.f32.mrb[0].mxu0
    %3381 = vdwg.mxu0
    %3382 = vmatprep.subr.bf16.mxu0 %v1313
    %3383 = vmatpush1.bf16.msra.mxu0 %v1312
    %3384 = vmatprep.subr.bf16.mxu0 %v1321
    %3385 = vmatpush1.bf16.msra.mxu0 %v1320
    %3386 = vmatprep.subr.bf16.mxu0 %v1329
    %3387 = vmatpush1.bf16.msra.mxu0 %v1328
    %3388 = vmatprep.subr.bf16.mxu0 %v1337
    %3389 = vmatpush1.bf16.msra.mxu0 %v1336
    %3390 = vmatprep.subr.bf16.mxu0 %v1345
    %3391 = vmatpush1.bf16.msra.mxu0 %v1344
    %3392 = vmatprep.subr.bf16.mxu0 %v1353
    %3393 = vmatpush1.bf16.msra.mxu0 %v1352
    %3394 = vmatprep.subr.bf16.mxu0 %v1361
    %3395 = vmatpush1.bf16.msra.mxu0 %v1360
    %3396 = vmatprep.subr.bf16.mxu0 %v1369
    %3397 = vmatpush1.bf16.msra.mxu0 %v1368
    %3398 = vmatprep.subr.bf16.mxu0 %v1377
    %3399 = vmatpush1.bf16.msra.mxu0 %v1376
    %3400 = vmatprep.subr.bf16.mxu0 %v1385
    %3401 = vmatpush1.bf16.msra.mxu0 %v1384
    %3402 = vmatprep.subr.bf16.mxu0 %v1393
    %3403 = vmatpush1.bf16.msra.mxu0 %v1392
    %3404 = vmatprep.subr.bf16.mxu0 %v1401
    %3405 = vmatpush1.bf16.msra.mxu0 %v1400
    %3406 = vmatprep.subr.bf16.mxu0 %v1409
    %3407 = vmatpush1.bf16.msra.mxu0 %v1408
    %3408 = vmatprep.subr.bf16.mxu0 %v1417
    %3409 = vmatpush1.bf16.msra.mxu0 %v1416
    %3410 = vmatprep.subr.bf16.mxu0 %v1425
    %3411 = vmatpush1.bf16.msra.mxu0 %v1424
    %3412 = vmatprep.subr.bf16.mxu0 %v1433
    %3413 = vmatpush1.bf16.msra.mxu0 %v1432
    %3414 = vmatprep.mubr.bf16.mxu0 %v3297
    %3415 = vmatmul.mubr.bf16.gmra.mrb[0].mxu0 %v3293
    %v3416 = vpop.f32.mrb[0].mxu0
    %v3417 = vadd.f32 0.0, %v3416
    %v3418 = vpop.f32.mrb[0].mxu0
    %v3419 = vadd.f32 0.0, %v3418
    %v3420 = vpop.f32.mrb[0].mxu0
    %v3421 = vpop.f32.mrb[0].mxu0
    %3422 = vdwg.mxu0
    %3423 = vmatprep.subr.bf16.mxu0 %v1315
    %3424 = vmatpush1.bf16.msra.mxu0 %v1314
    %3425 = vmatprep.subr.bf16.mxu0 %v1323
    %3426 = vmatpush1.bf16.msra.mxu0 %v1322
    %3427 = vmatprep.subr.bf16.mxu0 %v1331
    %3428 = vmatpush1.bf16.msra.mxu0 %v1330
    %3429 = vmatprep.subr.bf16.mxu0 %v1339
    %3430 = vmatpush1.bf16.msra.mxu0 %v1338
    %3431 = vmatprep.subr.bf16.mxu0 %v1347
    %3432 = vmatpush1.bf16.msra.mxu0 %v1346
    %3433 = vmatprep.subr.bf16.mxu0 %v1355
    %3434 = vmatpush1.bf16.msra.mxu0 %v1354
    %3435 = vmatprep.subr.bf16.mxu0 %v1363
    %3436 = vmatpush1.bf16.msra.mxu0 %v1362
    %3437 = vmatprep.subr.bf16.mxu0 %v1371
    %3438 = vmatpush1.bf16.msra.mxu0 %v1370
    %3439 = vmatprep.subr.bf16.mxu0 %v1379
    %3440 = vmatpush1.bf16.msra.mxu0 %v1378
    %3441 = vmatprep.subr.bf16.mxu0 %v1387
    %3442 = vmatpush1.bf16.msra.mxu0 %v1386
    %3443 = vmatprep.subr.bf16.mxu0 %v1395
    %3444 = vmatpush1.bf16.msra.mxu0 %v1394
    %3445 = vmatprep.subr.bf16.mxu0 %v1403
    %3446 = vmatpush1.bf16.msra.mxu0 %v1402
    %3447 = vmatprep.subr.bf16.mxu0 %v1411
    %3448 = vmatpush1.bf16.msra.mxu0 %v1410
    %3449 = vmatprep.subr.bf16.mxu0 %v1419
    %3450 = vmatpush1.bf16.msra.mxu0 %v1418
    %3451 = vmatprep.subr.bf16.mxu0 %v1427
    %3452 = vmatpush1.bf16.msra.mxu0 %v1426
    %3453 = vmatprep.subr.bf16.mxu0 %v1435
    %3454 = vmatpush1.bf16.msra.mxu0 %v1434
    %3455 = vmatprep.mubr.bf16.mxu0 %v3297
    %3456 = vmatmul.mubr.bf16.gmra.mrb[0].mxu0 %v3293
    %v3457 = vpop.f32.mrb[0].mxu0
    %v3458 = vadd.f32 0.0, %v3457
    %v3459 = vpop.f32.mrb[0].mxu0
    %v3460 = vadd.f32 0.0, %v3459
    %v3461 = vpop.f32.mrb[0].mxu0
    %v3462 = vpop.f32.mrb[0].mxu0
    %3463 = vdwg.mxu0
    %v3464 = vadd.f32 %v637, %v3335
    %v3465 = vadd.f32 %v639, %v3337
    %v3466 = vadd.f32 %v680, %v3376
    %v3467 = vadd.f32 %v682, %v3378
    %v3468 = vadd.f32 %v723, %v3417
    %v3469 = vadd.f32 %v725, %v3419
    %v3470 = vadd.f32 %v766, %v3458
    %v3471 = vadd.f32 %v768, %v3460
    %v3472 = vmul.f32 %v3464, 0.5
    %v3473 = vmul.f32 %v3465, 0.5
    %v3474 = vtanh.pop %v3472
    %v3475 = vtanh.pop %v3473
    %v3476 = vmul.f32 %v3474, 0.5
    %v3477 = vmul.f32 %v3475, 0.5
    %v3478 = vadd.f32 %v3476, 0.5
    %v3479 = vadd.f32 %v3477, 0.5
    %v3480 = vtanh.pop %v3468
    %v3481 = vtanh.pop %v3469
    %v3482 = vmul.f32 %v3470, 0.5
    %v3483 = vmul.f32 %v3471, 0.5
    %v3484 = vtanh.pop %v3482
    %v3485 = vtanh.pop %v3483
    %v3486 = vmul.f32 %v3484, 0.5
    %v3487 = vmul.f32 %v3485, 0.5
    %v3488 = vadd.f32 %v3486, 0.5
    %v3489 = vadd.f32 %v3487, 0.5
    %v3490 = vmul.f32 %v3466, 0.5
    %v3491 = vmul.f32 %v3467, 0.5
    %v3492 = vtanh.pop %v3490
    %v3493 = vtanh.pop %v3491
    %v3494 = vmul.f32 %v3492, 0.5
    %v3495 = vmul.f32 %v3493, 0.5
    %v3496 = vadd.f32 %v3494, 0.5
    %v3497 = vadd.f32 %v3495, 0.5
    %v3500 = vrot.slane %v3282, 7
    %v3501 = vrot.slane %v3283, 7
    %v3504 = vmul.f32 %v3496, %v3500
    %v3505 = vmul.f32 %v3497, %v3501
    %v3506 = vmul.f32 %v3478, %v3480
    %v3507 = vmul.f32 %v3479, %v3481
    %v3508 = vadd.f32 %v3504, %v3506
    %v3509 = vadd.f32 %v3505, %v3507
    %v3510 = vtanh.pop %v3508
    %v3511 = vtanh.pop %v3509
    %v3512 = vmul.f32 %v3488, %v3510
    %v3513 = vmul.f32 %v3489, %v3511
    %v3514 = vpack.c.bf16 %v3512, %v3512
    %v3515 = vpack.c.bf16 %v3513, %v3513
    %3516 = vmatprep.subr.bf16.mxu0 %v1309
    %3517 = vmatpush1.bf16.msra.mxu0 %v1308
    %3518 = vmatprep.subr.bf16.mxu0 %v1317
    %3519 = vmatpush1.bf16.msra.mxu0 %v1316
    %3520 = vmatprep.subr.bf16.mxu0 %v1325
    %3521 = vmatpush1.bf16.msra.mxu0 %v1324
    %3522 = vmatprep.subr.bf16.mxu0 %v1333
    %3523 = vmatpush1.bf16.msra.mxu0 %v1332
    %3524 = vmatprep.subr.bf16.mxu0 %v1341
    %3525 = vmatpush1.bf16.msra.mxu0 %v1340
    %3526 = vmatprep.subr.bf16.mxu0 %v1349
    %3527 = vmatpush1.bf16.msra.mxu0 %v1348
    %3528 = vmatprep.subr.bf16.mxu0 %v1357
    %3529 = vmatpush1.bf16.msra.mxu0 %v1356
    %3530 = vmatprep.subr.bf16.mxu0 %v1365
    %3531 = vmatpush1.bf16.msra.mxu0 %v1364
    %3532 = vmatprep.subr.bf16.mxu0 %v1373
    %3533 = vmatpush1.bf16.msra.mxu0 %v1372
    %3534 = vmatprep.subr.bf16.mxu0 %v1381
    %3535 = vmatpush1.bf16.msra.mxu0 %v1380
    %3536 = vmatprep.subr.bf16.mxu0 %v1389
    %3537 = vmatpush1.bf16.msra.mxu0 %v1388
    %3538 = vmatprep.subr.bf16.mxu0 %v1397
    %3539 = vmatpush1.bf16.msra.mxu0 %v1396
    %3540 = vmatprep.subr.bf16.mxu0 %v1405
    %3541 = vmatpush1.bf16.msra.mxu0 %v1404
    %3542 = vmatprep.subr.bf16.mxu0 %v1413
    %3543 = vmatpush1.bf16.msra.mxu0 %v1412
    %3544 = vmatprep.subr.bf16.mxu0 %v1421
    %3545 = vmatpush1.bf16.msra.mxu0 %v1420
    %3546 = vmatprep.subr.bf16.mxu0 %v1429
    %3547 = vmatpush1.bf16.msra.mxu0 %v1428
    %3548 = vmatprep.mubr.bf16.mxu0 %v3515
    %3549 = vmatmul.mubr.bf16.gmra.mrb[0].mxu0 %v3514
    %v3550 = vpop.f32.mrb[0].mxu0
    %v3551 = vadd.f32 0.0, %v3550
    %v3552 = vpop.f32.mrb[0].mxu0
    %v3553 = vadd.f32 0.0, %v3552
    %v3554 = vpop.f32.mrb[0].mxu0
    %v3555 = vpop.f32.mrb[0].mxu0
    %3556 = vdwg.mxu0
    %3557 = vmatprep.subr.bf16.mxu0 %v1311
    %3558 = vmatpush1.bf16.msra.mxu0 %v1310
    %3559 = vmatprep.subr.bf16.mxu0 %v1319
    %3560 = vmatpush1.bf16.msra.mxu0 %v1318
    %3561 = vmatprep.subr.bf16.mxu0 %v1327
    %3562 = vmatpush1.bf16.msra.mxu0 %v1326
    %3563 = vmatprep.subr.bf16.mxu0 %v1335
    %3564 = vmatpush1.bf16.msra.mxu0 %v1334
    %3565 = vmatprep.subr.bf16.mxu0 %v1343
    %3566 = vmatpush1.bf16.msra.mxu0 %v1342
    %3567 = vmatprep.subr.bf16.mxu0 %v1351
    %3568 = vmatpush1.bf16.msra.mxu0 %v1350
    %3569 = vmatprep.subr.bf16.mxu0 %v1359
    %3570 = vmatpush1.bf16.msra.mxu0 %v1358
    %3571 = vmatprep.subr.bf16.mxu0 %v1367
    %3572 = vmatpush1.bf16.msra.mxu0 %v1366
    %3573 = vmatprep.subr.bf16.mxu0 %v1375
    %3574 = vmatpush1.bf16.msra.mxu0 %v1374
    %3575 = vmatprep.subr.bf16.mxu0 %v1383
    %3576 = vmatpush1.bf16.msra.mxu0 %v1382
    %3577 = vmatprep.subr.bf16.mxu0 %v1391
    %3578 = vmatpush1.bf16.msra.mxu0 %v1390
    %3579 = vmatprep.subr.bf16.mxu0 %v1399
    %3580 = vmatpush1.bf16.msra.mxu0 %v1398
    %3581 = vmatprep.subr.bf16.mxu0 %v1407
    %3582 = vmatpush1.bf16.msra.mxu0 %v1406
    %3583 = vmatprep.subr.bf16.mxu0 %v1415
    %3584 = vmatpush1.bf16.msra.mxu0 %v1414
    %3585 = vmatprep.subr.bf16.mxu0 %v1423
    %3586 = vmatpush1.bf16.msra.mxu0 %v1422
    %3587 = vmatprep.subr.bf16.mxu0 %v1431
    %3588 = vmatpush1.bf16.msra.mxu0 %v1430
    %3589 = vmatprep.mubr.bf16.mxu0 %v3515
    %3590 = vmatmul.mubr.bf16.gmra.mrb[0].mxu0 %v3514
    %v3591 = vpop.f32.mrb[0].mxu0
    %v3592 = vadd.f32 0.0, %v3591
    %v3593 = vpop.f32.mrb[0].mxu0
    %v3594 = vadd.f32 0.0, %v3593
    %v3595 = vpop.f32.mrb[0].mxu0
    %v3596 = vpop.f32.mrb[0].mxu0
    %3597 = vdwg.mxu0
    %3598 = vmatprep.subr.bf16.mxu0 %v1313
    %3599 = vmatpush1.bf16.msra.mxu0 %v1312
    %3600 = vmatprep.subr.bf16.mxu0 %v1321
    %3601 = vmatpush1.bf16.msra.mxu0 %v1320
    %3602 = vmatprep.subr.bf16.mxu0 %v1329
    %3603 = vmatpush1.bf16.msra.mxu0 %v1328
    %3604 = vmatprep.subr.bf16.mxu0 %v1337
    %3605 = vmatpush1.bf16.msra.mxu0 %v1336
    %3606 = vmatprep.subr.bf16.mxu0 %v1345
    %3607 = vmatpush1.bf16.msra.mxu0 %v1344
    %3608 = vmatprep.subr.bf16.mxu0 %v1353
    %3609 = vmatpush1.bf16.msra.mxu0 %v1352
    %3610 = vmatprep.subr.bf16.mxu0 %v1361
    %3611 = vmatpush1.bf16.msra.mxu0 %v1360
    %3612 = vmatprep.subr.bf16.mxu0 %v1369
    %3613 = vmatpush1.bf16.msra.mxu0 %v1368
    %3614 = vmatprep.subr.bf16.mxu0 %v1377
    %3615 = vmatpush1.bf16.msra.mxu0 %v1376
    %3616 = vmatprep.subr.bf16.mxu0 %v1385
    %3617 = vmatpush1.bf16.msra.mxu0 %v1384
    %3618 = vmatprep.subr.bf16.mxu0 %v1393
    %3619 = vmatpush1.bf16.msra.mxu0 %v1392
    %3620 = vmatprep.subr.bf16.mxu0 %v1401
    %3621 = vmatpush1.bf16.msra.mxu0 %v1400
    %3622 = vmatprep.subr.bf16.mxu0 %v1409
    %3623 = vmatpush1.bf16.msra.mxu0 %v1408
    %3624 = vmatprep.subr.bf16.mxu0 %v1417
    %3625 = vmatpush1.bf16.msra.mxu0 %v1416
    %3626 = vmatprep.subr.bf16.mxu0 %v1425
    %3627 = vmatpush1.bf16.msra.mxu0 %v1424
    %3628 = vmatprep.subr.bf16.mxu0 %v1433
    %3629 = vmatpush1.bf16.msra.mxu0 %v1432
    %3630 = vmatprep.mubr.bf16.mxu0 %v3515
    %3631 = vmatmul.mubr.bf16.gmra.mrb[0].mxu0 %v3514
    %v3632 = vpop.f32.mrb[0].mxu0
    %v3633 = vadd.f32 0.0, %v3632
    %v3634 = vpop.f32.mrb[0].mxu0
    %v3635 = vadd.f32 0.0, %v3634
    %v3636 = vpop.f32.mrb[0].mxu0
    %v3637 = vpop.f32.mrb[0].mxu0
    %3638 = vdwg.mxu0
    %3639 = vmatprep.subr.bf16.mxu0 %v1315
    %3640 = vmatpush1.bf16.msra.mxu0 %v1314
    %3641 = vmatprep.subr.bf16.mxu0 %v1323
    %3642 = vmatpush1.bf16.msra.mxu0 %v1322
    %3643 = vmatprep.subr.bf16.mxu0 %v1331
    %3644 = vmatpush1.bf16.msra.mxu0 %v1330
    %3645 = vmatprep.subr.bf16.mxu0 %v1339
    %3646 = vmatpush1.bf16.msra.mxu0 %v1338
    %3647 = vmatprep.subr.bf16.mxu0 %v1347
    %3648 = vmatpush1.bf16.msra.mxu0 %v1346
    %3649 = vmatprep.subr.bf16.mxu0 %v1355
    %3650 = vmatpush1.bf16.msra.mxu0 %v1354
    %3651 = vmatprep.subr.bf16.mxu0 %v1363
    %3652 = vmatpush1.bf16.msra.mxu0 %v1362
    %3653 = vmatprep.subr.bf16.mxu0 %v1371
    %3654 = vmatpush1.bf16.msra.mxu0 %v1370
    %3655 = vmatprep.subr.bf16.mxu0 %v1379
    %3656 = vmatpush1.bf16.msra.mxu0 %v1378
    %3657 = vmatprep.subr.bf16.mxu0 %v1387
    %3658 = vmatpush1.bf16.msra.mxu0 %v1386
    %3659 = vmatprep.subr.bf16.mxu0 %v1395
    %3660 = vmatpush1.bf16.msra.mxu0 %v1394
    %3661 = vmatprep.subr.bf16.mxu0 %v1403
    %3662 = vmatpush1.bf16.msra.mxu0 %v1402
    %3663 = vmatprep.subr.bf16.mxu0 %v1411
    %3664 = vmatpush1.bf16.msra.mxu0 %v1410
    %3665 = vmatprep.subr.bf16.mxu0 %v1419
    %3666 = vmatpush1.bf16.msra.mxu0 %v1418
    %3667 = vmatprep.subr.bf16.mxu0 %v1427
    %3668 = vmatpush1.bf16.msra.mxu0 %v1426
    %3669 = vmatprep.subr.bf16.mxu0 %v1435
    %3670 = vmatpush1.bf16.msra.mxu0 %v1434
    %3671 = vmatprep.mubr.bf16.mxu0 %v3515
    %3672 = vmatmul.mubr.bf16.gmra.mrb[0].mxu0 %v3514
    %v3673 = vpop.f32.mrb[0].mxu0
    %v3674 = vadd.f32 0.0, %v3673
    %v3675 = vpop.f32.mrb[0].mxu0
    %v3676 = vadd.f32 0.0, %v3675
    %v3677 = vpop.f32.mrb[0].mxu0
    %v3678 = vpop.f32.mrb[0].mxu0
    %3679 = vdwg.mxu0
    %v3688 = vrot.slane %v3551, 7
    %v3689 = vrot.slane %v3553, 7
    %v3690 = vrot.slane %v3592, 7
    %v3691 = vrot.slane %v3594, 7
    %v3692 = vrot.slane %v3633, 7
    %v3693 = vrot.slane %v3635, 7
    %v3694 = vrot.slane %v3674, 7
    %v3695 = vrot.slane %v3676, 7
    %v3704 = vadd.f32 %v637, %v3688
    %v3705 = vadd.f32 %v639, %v3689
    %v3706 = vadd.f32 %v680, %v3690
    %v3707 = vadd.f32 %v682, %v3691
    %v3708 = vadd.f32 %v723, %v3692
    %v3709 = vadd.f32 %v725, %v3693
    %v3710 = vadd.f32 %v766, %v3694
    %v3711 = vadd.f32 %v768, %v3695
    %v3712 = vmul.f32 %v3704, 0.5
    %v3713 = vmul.f32 %v3705, 0.5
    %v3714 = vtanh.pop %v3712
    %v3715 = vtanh.pop %v3713
    %v3716 = vmul.f32 %v3714, 0.5
    %v3717 = vmul.f32 %v3715, 0.5
    %v3718 = vadd.f32 %v3716, 0.5
    %v3719 = vadd.f32 %v3717, 0.5
    %v3720 = vtanh.pop %v3708
    %v3721 = vtanh.pop %v3709
    %v3722 = vmul.f32 %v3710, 0.5
    %v3723 = vmul.f32 %v3711, 0.5
    %v3724 = vtanh.pop %v3722
    %v3725 = vtanh.pop %v3723
    %v3726 = vmul.f32 %v3724, 0.5
    %v3727 = vmul.f32 %v3725, 0.5
    %v3728 = vadd.f32 %v3726, 0.5
    %v3729 = vadd.f32 %v3727, 0.5
    %v3730 = vmul.f32 %v3706, 0.5
    %v3731 = vmul.f32 %v3707, 0.5
    %v3732 = vtanh.pop %v3730
    %v3733 = vtanh.pop %v3731
    %v3734 = vmul.f32 %v3732, 0.5
    %v3735 = vmul.f32 %v3733, 0.5
    %v3736 = vadd.f32 %v3734, 0.5
    %v3737 = vadd.f32 %v3735, 0.5
    %v3740 = vrot.slane %v3508, 7
    %v3741 = vrot.slane %v3509, 7
    %v3744 = vmul.f32 %v3736, %v3740
    %v3745 = vmul.f32 %v3737, %v3741
    %v3746 = vmul.f32 %v3718, %v3720
    %v3747 = vmul.f32 %v3719, %v3721
    %v3748 = vadd.f32 %v3744, %v3746
    %v3749 = vadd.f32 %v3745, %v3747
    %v3750 = vtanh.pop %v3748
    %v3751 = vtanh.pop %v3749
    %v3752 = vmul.f32 %v3728, %v3750
    %v3753 = vmul.f32 %v3729, %v3751
    %v3756 = vcombine.low %v3752, %v3753
    %v3758 = vunpack.c.l.s4 1966171168
    %v3759 = vunpack.c.0.s8 %v3758
    %v3760 = vlaneseq
    %v3761 = vshrl.u32 %v3760, 7
    %v3762 = vsub.s32 %v3759, %v3761
    %v3763 = vrot.slane %v3756, %v3762
    %v3764 = vcombine.high %v3763, %v3763
    %v3766 = vunpack.c.l.s4 1966171168
    %v3767 = vunpack.c.0.s8 %v3766
    %v3768 = vlaneseq
    %v3769 = vshrl.u32 %v3768, 7
    %v3770 = vsub.s32 %v3767, %v3769
    %v3771 = vrot.slane %v3764, %v3770
    %v3773 = vlaneseq
    %vm3774 = vcmp.ge.s32.totalorder %v3773, 0
    %vm3775 = vcmp.lt.s32.totalorder %v3773, 256
    %vm3776 = vmand %vm3774, %vm3775
    %3777 = vst.msk [vmem:[#allocation8] sm:$0x3] %vm3776, %v3771
    // Predicated region
    $region30: #{tpu_custom_call.1} parent=1 // pred_check
      _
    $region31: #{tpu_custom_call.1} parent=1 // pred_check_branch
      %3779 = sbr.rel (0) target = $region33
    $region32: #{tpu_custom_call.1} parent=1 // pred_region
      %s3781 = ssub.s32 32, 32
      %3782 = vsyncadd [#allocation4], %s3781
      %s3784 = sshll.u32 [#allocation8], 4
      %s3785 = int_to_ptr.vmem [resolvable:$true] %s3784
      %3787 = dma.vmem_to_hbm [thread:$0]  %s3785, 32, %s4, [#allocation4]
    $region33: #{tpu_custom_call.1} parent=1 // pred_fallthru
      _
    // Predicated region
    $region34: #{tpu_custom_call.1} parent=1 // pred_check
      _
    $region35: #{tpu_custom_call.1} parent=1 // pred_check_branch
      %3789 = sbr.rel (0) target = $region37
    $region36: #{tpu_custom_call.1} parent=1 // pred_region
      %3790 = dma.done [#allocation4], 32
    $region37: #{tpu_custom_call.1} parent=1 // pred_fallthru
      _
    %3791 = vsyncpa [#allocation3], 1
    %3792 = vsyncpa [#allocation6], 1
    %3793 = vsyncpa [#allocation4], 1

</llo_original>
